<compile_context>
chip_gen: v5e
topology: v5e:2x2
jax: 0.10.0
libtpu: 0.0.40
codegen_flags: <defaults>
</compile_context>

<pallas_src>
import math

import jax
import jax.numpy as jnp
from jax.experimental import pallas as pl
from jax.experimental.pallas import tpu as pltpu


# ----------------------------------------------------------------------------
# Fused kernel: enc1(+lrelu) -> enc2 -> dec1(+lrelu) -> dec2
# Grid axis (size 2, 'parallel') tiles dec2's output columns; everything else
# is resident (constant block index).
# ----------------------------------------------------------------------------
def _leaky(x):
    # F.leaky_relu default negative_slope = 0.01, applied to real & imag.
    return jnp.where(x >= 0, x, 0.01 * x)


def _dot(a, b_ref):
    return jnp.dot(a, b_ref[...], preferred_element_type=jnp.float32)


def _fused_autoencoder_kernel(
        xr_ref,                      # (Bp, IN)   f32
        w1_ref, b1_ref,              # (IN, 2Hp)  bf16, (1, 2Hp) f32  [wr|wi], [b|b]
        w2r_ref, w2i_ref, b2_ref,    # (Hp, Lp)   bf16 x2, (1, Lp) f32
        w3r_ref, w3i_ref, b3_ref,    # (Lp, Hp)   bf16 x2, (1, Hp) f32
        w4r_ref, w4i_ref, b4_ref,    # (Hp, Ntile) bf16 x2, (1, Ntile) f32
        or_ref, oi_ref):             # (Bp, Ntile) f32 outputs (this grid step's tile)
    h_pad = b3_ref.shape[1]          # padded hidden width

    xr = xr_ref[...].astype(jnp.bfloat16)

    # ---- enc1 + ComplexReLU --------------------------------------------------
    # Imag input is identically zero (torch.complex(x, zeros_like(x))):
    # one output-axis-concatenated dot produces [real | imag].
    h = _dot(xr, w1_ref) + b1_ref[...]
    h = _leaky(h)
    r = h[:, :h_pad].astype(jnp.bfloat16)
    i = h[:, h_pad:].astype(jnp.bfloat16)

    # ---- enc2 (4 direct dots, shared wr/wi refs) -----------------------------
    b2 = b2_ref[...]
    r2 = _dot(r, w2r_ref) - _dot(i, w2i_ref) + b2
    i2 = _dot(r, w2i_ref) + _dot(i, w2r_ref) + b2
    r2 = r2.astype(jnp.bfloat16)
    i2 = i2.astype(jnp.bfloat16)

    # ---- dec1 + ComplexReLU --------------------------------------------------
    b3 = b3_ref[...]
    r3 = _leaky(_dot(r2, w3r_ref) - _dot(i2, w3i_ref) + b3).astype(jnp.bfloat16)
    i3 = _leaky(_dot(r2, w3i_ref) + _dot(i2, w3r_ref) + b3).astype(jnp.bfloat16)

    # ---- dec2 (this grid step's half of the output columns) -----------------
    b4 = b4_ref[...]
    or_ref[...] = _dot(r3, w4r_ref) - _dot(i3, w4i_ref) + b4
    oi_ref[...] = _dot(r3, w4i_ref) + _dot(i3, w4r_ref) + b4


# ----------------------------------------------------------------------------
# Parameter init (matches ComplexLinear.reset_parameters):
#   kaiming_uniform_(a=sqrt(5)) -> Uniform(-1/sqrt(fan_in), 1/sqrt(fan_in))
# ----------------------------------------------------------------------------
def init_complex_linear(key, in_features, out_features):
    k1, k2, k3, k4 = jax.random.split(key, 4)
    bound = 1.0 / math.sqrt(in_features)
    return {
        "w_real": jax.random.uniform(k1, (out_features, in_features),
                                     jnp.float32, -bound, bound),
        "w_imag": jax.random.uniform(k2, (out_features, in_features),
                                     jnp.float32, -bound, bound),
        "b_real": jax.random.uniform(k3, (out_features,),
                                     jnp.float32, -bound, bound),
        # imag_bias exists in the module but is never used in forward()
        "b_imag": jax.random.uniform(k4, (out_features,),
                                     jnp.float32, -bound, bound),
    }


def init_params(key, in_features, hidden, latent):
    ks = jax.random.split(key, 4)
    return {
        "enc1": init_complex_linear(ks[0], in_features, hidden),
        "enc2": init_complex_linear(ks[1], hidden, latent),
        "dec1": init_complex_linear(ks[2], latent, hidden),
        "dec2": init_complex_linear(ks[3], hidden, in_features),
    }


# ----------------------------------------------------------------------------
# One-time packing: transpose to (in, out), zero-pad to lane/sublane-dense
# dims, cast weights to bf16.  Done OUTSIDE the forward path.
# ----------------------------------------------------------------------------
def _pad_to(x, shape):
    return jnp.pad(x, [(0, t - s) for s, t in zip(x.shape, shape)])


def _pack_plain(p, in_pad, out_pad):
    wr = _pad_to(jnp.asarray(p["w_real"], jnp.float32).T,
                 (in_pad, out_pad)).astype(jnp.bfloat16)
    wi = _pad_to(jnp.asarray(p["w_imag"], jnp.float32).T,
                 (in_pad, out_pad)).astype(jnp.bfloat16)
    br = _pad_to(jnp.asarray(p["b_real"], jnp.float32).reshape(1, -1),
                 (1, out_pad))
    return wr, wi, br


def pack_params(params, in_features, hidden_pad, latent_pad):
    # enc1: xi == 0 -> output-axis concat [wr | wi] (no byte duplication),
    # bias [b_real | b_real] so both halves add real_bias (module semantics).
    w1r, w1i, b1r = _pack_plain(params["enc1"], in_features, hidden_pad)
    w1 = jnp.concatenate([w1r, w1i], axis=1)                  # (IN, 2Hp) bf16
    b1 = jnp.concatenate([b1r, b1r], axis=1)                  # (1, 2Hp) f32

    w2r, w2i, b2 = _pack_plain(params["enc2"], hidden_pad, latent_pad)
    w3r, w3i, b3 = _pack_plain(params["dec1"], latent_pad, hidden_pad)
    w4r, w4i, b4 = _pack_plain(params["dec2"], hidden_pad, in_features)
    return (w1, b1, w2r, w2i, b2, w3r, w3i, b3, w4r, w4i, b4)


# ----------------------------------------------------------------------------
# Forward pass == HybridAutoencoder_4.forward (single fused pallas_call)
# ----------------------------------------------------------------------------
def hybrid_autoencoder_forward(packed, x, *, hidden_pad, latent_pad, n_split=2):
    (w1, b1, w2r, w2i, b2, w3r, w3i, b3, w4r, w4i, b4) = packed
    B, C, H, W = x.shape
    in_features = C * H * W                       # nn.Flatten()
    xr = x.reshape(B, in_features).astype(jnp.float32)

    # Keep the whole batch in one block (weights stay resident for the full
    # batch; never re-stream per 8-row chunk).
    b_pad = max(8, ((B + 7) // 8) * 8)
    xr_p = jnp.pad(xr, ((0, b_pad - B), (0, 0)))

    n_tile = in_features // n_split
    assert in_features % n_split == 0 and n_tile % 128 == 0

    def keep(arr):   # resident block: constant block index across the grid
        return pl.BlockSpec(arr.shape, lambda j: (0,) * arr.ndim)

    in_specs = [
        keep(xr_p),
        keep(w1), keep(b1),
        keep(w2r), keep(w2i), keep(b2),
        keep(w3r), keep(w3i), keep(b3),
        pl.BlockSpec((hidden_pad, n_tile), lambda j: (0, j)),   # w4r tiled on N
        pl.BlockSpec((hidden_pad, n_tile), lambda j: (0, j)),   # w4i tiled on N
        pl.BlockSpec((1, n_tile), lambda j: (0, j)),            # b4 tiled on N
    ]
    out_specs = (
        pl.BlockSpec((b_pad, n_tile), lambda j: (0, j)),
        pl.BlockSpec((b_pad, n_tile), lambda j: (0, j)),
    )

    # Advisory cost: this call is memory-bound (weight streaming dominates).
    flops = 2 * b_pad * (in_features * 2 * hidden_pad
                         + 4 * hidden_pad * latent_pad
                         + 4 * latent_pad * hidden_pad
                         + 4 * hidden_pad * in_features)
    bytes_accessed = (xr_p.size * 4
                      + sum(int(a.size) * a.dtype.itemsize for a in packed)
                      + 2 * b_pad * in_features * 4)

    out_r, out_i = pl.pallas_call(
        _fused_autoencoder_kernel,
        grid=(n_split,),
        out_shape=(jax.ShapeDtypeStruct((b_pad, in_features), jnp.float32),
                   jax.ShapeDtypeStruct((b_pad, in_features), jnp.float32)),
        in_specs=in_specs,
        out_specs=out_specs,
        compiler_params=pltpu.CompilerParams(
            dimension_semantics=("parallel",),
            vmem_limit_bytes=64 * 1024 * 1024),
        cost_estimate=pl.CostEstimate(flops=flops, transcendentals=0,
                                      bytes_accessed=bytes_accessed),
    )(xr_p, w1, b1, w2r, w2i, b2, w3r, w3i, b3, w4r, w4i, b4)

    # Strip batch padding; nn.Unflatten(1, (1, H, W)); output is complex.
    out_r = out_r[:B].reshape(B, 1, H, W)
    out_i = out_i[:B].reshape(B, 1, H, W)
    return jax.lax.complex(out_r, out_i)


# ----------------------------------------------------------------------------
# Pure-JAX reference that applies the SAME bf16 quantization of weights and
# activations (f32 accumulation), so it matches the kernel up to matmul
# accumulation-order noise.
# ----------------------------------------------------------------------------
def _bf16_dot(a, b):
    return jnp.dot(a.astype(jnp.bfloat16), b.astype(jnp.bfloat16),
                   preferred_element_type=jnp.float32)


def _ref_layer(xr, xi, p, lrelu):
    wr_t = jnp.asarray(p["w_real"], jnp.float32).T
    wi_t = jnp.asarray(p["w_imag"], jnp.float32).T
    br = jnp.asarray(p["b_real"], jnp.float32)
    real = _bf16_dot(xr, wr_t) - _bf16_dot(xi, wi_t) + br
    imag = _bf16_dot(xr, wi_t) + _bf16_dot(xi, wr_t) + br   # real_bias, per module
    if lrelu:
        real = jnp.where(real >= 0, real, 0.01 * real)
        imag = jnp.where(imag >= 0, imag, 0.01 * imag)
    return real, imag


def reference_forward(params, x):
    B, C, H, W = x.shape
    xr = x.reshape(B, -1).astype(jnp.float32)
    xi = jnp.zeros_like(xr)
    xr, xi = _ref_layer(xr, xi, params["enc1"], True)
    xr, xi = _ref_layer(xr, xi, params["enc2"], False)
    xr, xi = _ref_layer(xr, xi, params["dec1"], True)
    xr, xi = _ref_layer(xr, xi, params["dec2"], False)
    return jax.lax.complex(xr.reshape(B, 1, H, W), xi.reshape(B, 1, H, W))


if __name__ == "__main__":
    # Small shapes consistent with the module: (B, 1, H, W) real input.
    B, H, W = 2, 32, 32
    IN_FEATURES = H * W      # scaled-down stand-in for 1_000_000
    HIDDEN = 200             # as in the module
    LATENT = 10              # self.latentDimensions

    HIDDEN_PAD = 256         # lane-dense padding (weights/bias zero-padded)
    LATENT_PAD = 128

    key = jax.random.PRNGKey(0)
    k_param, k_x = jax.random.split(key)
    params = init_params(k_param, IN_FEATURES, HIDDEN, LATENT)
    packed = pack_params(params, IN_FEATURES, HIDDEN_PAD, LATENT_PAD)
    packed = jax.tree_util.tree_map(jax.block_until_ready, packed)

    x = jax.random.normal(k_x, (B, 1, H, W), dtype=jnp.float32)

    out = hybrid_autoencoder_forward(packed, x,
                                     hidden_pad=HIDDEN_PAD,
                                     latent_pad=LATENT_PAD)
    jax.block_until_ready(out)

    ref = reference_forward(params, x)
    assert out.shape == (B, 1, H, W) and out.dtype == jnp.complex64
    assert jnp.allclose(out.real, ref.real, atol=2e-3, rtol=2e-3), \
        float(jnp.max(jnp.abs(out.real - ref.real)))
    assert jnp.allclose(out.imag, ref.imag, atol=2e-3, rtol=2e-3), \
        float(jnp.max(jnp.abs(out.imag - ref.imag)))

    print("KERNEL_OK")
</pallas_src>

<mosaic_0001>
module attributes {stable_mosaic.version = 11 : i64} {
  func.func @_fused_autoencoder_kernel(%arg0: i32, %arg1: memref<8x1024xf32, #tpu.memory_space<vmem>>, %arg2: memref<1024x512xbf16, #tpu.memory_space<vmem>>, %arg3: memref<1x512xf32, #tpu.memory_space<vmem>>, %arg4: memref<256x128xbf16, #tpu.memory_space<vmem>>, %arg5: memref<256x128xbf16, #tpu.memory_space<vmem>>, %arg6: memref<1x128xf32, #tpu.memory_space<vmem>>, %arg7: memref<128x256xbf16, #tpu.memory_space<vmem>>, %arg8: memref<128x256xbf16, #tpu.memory_space<vmem>>, %arg9: memref<1x256xf32, #tpu.memory_space<vmem>>, %arg10: memref<256x512xbf16, #tpu.memory_space<vmem>>, %arg11: memref<256x512xbf16, #tpu.memory_space<vmem>>, %arg12: memref<1x512xf32, #tpu.memory_space<vmem>>, %arg13: memref<8x512xf32, #tpu.memory_space<vmem>>, %arg14: memref<8x512xf32, #tpu.memory_space<vmem>>) attributes {dimension_semantics = [#tpu.dimension_semantics<parallel>], iteration_bounds = array<i64: 2>, scalar_prefetch = 0 : i64, scratch_operands = 0 : i64, tpu.core_type = #tpu.core_type<tc>, window_params = [{pipeline_mode = #tpu.pipeline_mode<synchronous>, transform_indices = @transform_0, window_bounds = array<i64: 8, 1024>}, {pipeline_mode = #tpu.pipeline_mode<synchronous>, transform_indices = @transform_1, window_bounds = array<i64: 1024, 512>}, {pipeline_mode = #tpu.pipeline_mode<synchronous>, transform_indices = @transform_2, window_bounds = array<i64: 1, 512>}, {pipeline_mode = #tpu.pipeline_mode<synchronous>, transform_indices = @transform_3, window_bounds = array<i64: 256, 128>}, {pipeline_mode = #tpu.pipeline_mode<synchronous>, transform_indices = @transform_4, window_bounds = array<i64: 256, 128>}, {pipeline_mode = #tpu.pipeline_mode<synchronous>, transform_indices = @transform_5, window_bounds = array<i64: 1, 128>}, {pipeline_mode = #tpu.pipeline_mode<synchronous>, transform_indices = @transform_6, window_bounds = array<i64: 128, 256>}, {pipeline_mode = #tpu.pipeline_mode<synchronous>, transform_indices = @transform_7, window_bounds = array<i64: 128, 256>}, {pipeline_mode = #tpu.pipeline_mode<synchronous>, transform_indices = @transform_8, window_bounds = array<i64: 1, 256>}, {transform_indices = @transform_9, window_bounds = array<i64: 256, 512>}, {transform_indices = @transform_10, window_bounds = array<i64: 256, 512>}, {transform_indices = @transform_11, window_bounds = array<i64: 1, 512>}, {transform_indices = @transform_12, window_bounds = array<i64: 8, 512>}, {transform_indices = @transform_13, window_bounds = array<i64: 8, 512>}]} {
    %c0 = arith.constant 0 : index
    %c0_0 = arith.constant 0 : index
    %0 = vector.load %arg1[%c0, %c0_0] : memref<8x1024xf32, #tpu.memory_space<vmem>>, vector<8x1024xf32>
    %1 = arith.truncf %0 : vector<8x1024xf32> to vector<8x1024xbf16>
    %c0_1 = arith.constant 0 : index
    %c0_2 = arith.constant 0 : index
    %2 = vector.load %arg2[%c0_1, %c0_2] : memref<1024x512xbf16, #tpu.memory_space<vmem>>, vector<1024x512xbf16>
    %cst = arith.constant dense<0.000000e+00> : vector<8x512xf32>
    %3 = tpu.matmul %1, %2, %cst {dimension_numbers = #tpu.dot_dimension_numbers<[1], [0], [0], [1], [0, 0, 1, 1], [], []>} : vector<8x1024xbf16>, vector<1024x512xbf16>, vector<8x512xf32> -> vector<8x512xf32>
    %c0_3 = arith.constant 0 : index
    %c0_4 = arith.constant 0 : index
    %4 = vector.load %arg3[%c0_3, %c0_4] : memref<1x512xf32, #tpu.memory_space<vmem>>, vector<1x512xf32>
    %5 = vector.broadcast %4 : vector<1x512xf32> to vector<8x512xf32>
    %6 = arith.addf %3, %5 : vector<8x512xf32>
    %cst_5 = arith.constant 0.000000e+00 : f32
    %7 = vector.broadcast %cst_5 : f32 to vector<8x512xf32>
    %8 = arith.cmpf oge, %6, %7 : vector<8x512xf32>
    %cst_6 = arith.constant 0.00999999977 : f32
    %9 = vector.broadcast %cst_6 : f32 to vector<8x512xf32>
    %10 = arith.mulf %9, %6 : vector<8x512xf32>
    %11 = arith.select %8, %6, %10 : vector<8x512xi1>, vector<8x512xf32>
    %12 = vector.extract_strided_slice %11 {offsets = [0, 0], sizes = [8, 256], strides = [1, 1]} : vector<8x512xf32> to vector<8x256xf32>
    %13 = arith.truncf %12 : vector<8x256xf32> to vector<8x256xbf16>
    %14 = vector.extract_strided_slice %11 {offsets = [0, 256], sizes = [8, 256], strides = [1, 1]} : vector<8x512xf32> to vector<8x256xf32>
    %15 = arith.truncf %14 : vector<8x256xf32> to vector<8x256xbf16>
    %c0_7 = arith.constant 0 : index
    %c0_8 = arith.constant 0 : index
    %16 = vector.load %arg6[%c0_7, %c0_8] : memref<1x128xf32, #tpu.memory_space<vmem>>, vector<1x128xf32>
    %c0_9 = arith.constant 0 : index
    %c0_10 = arith.constant 0 : index
    %17 = vector.load %arg4[%c0_9, %c0_10] : memref<256x128xbf16, #tpu.memory_space<vmem>>, vector<256x128xbf16>
    %cst_11 = arith.constant dense<0.000000e+00> : vector<8x128xf32>
    %18 = tpu.matmul %13, %17, %cst_11 {dimension_numbers = #tpu.dot_dimension_numbers<[1], [0], [0], [1], [0, 0, 1, 1], [], []>} : vector<8x256xbf16>, vector<256x128xbf16>, vector<8x128xf32> -> vector<8x128xf32>
    %c0_12 = arith.constant 0 : index
    %c0_13 = arith.constant 0 : index
    %19 = vector.load %arg5[%c0_12, %c0_13] : memref<256x128xbf16, #tpu.memory_space<vmem>>, vector<256x128xbf16>
    %cst_14 = arith.constant dense<0.000000e+00> : vector<8x128xf32>
    %20 = tpu.matmul %15, %19, %cst_14 {dimension_numbers = #tpu.dot_dimension_numbers<[1], [0], [0], [1], [0, 0, 1, 1], [], []>} : vector<8x256xbf16>, vector<256x128xbf16>, vector<8x128xf32> -> vector<8x128xf32>
    %21 = arith.subf %18, %20 : vector<8x128xf32>
    %22 = vector.broadcast %16 : vector<1x128xf32> to vector<8x128xf32>
    %23 = arith.addf %21, %22 : vector<8x128xf32>
    %c0_15 = arith.constant 0 : index
    %c0_16 = arith.constant 0 : index
    %24 = vector.load %arg5[%c0_15, %c0_16] : memref<256x128xbf16, #tpu.memory_space<vmem>>, vector<256x128xbf16>
    %cst_17 = arith.constant dense<0.000000e+00> : vector<8x128xf32>
    %25 = tpu.matmul %13, %24, %cst_17 {dimension_numbers = #tpu.dot_dimension_numbers<[1], [0], [0], [1], [0, 0, 1, 1], [], []>} : vector<8x256xbf16>, vector<256x128xbf16>, vector<8x128xf32> -> vector<8x128xf32>
    %c0_18 = arith.constant 0 : index
    %c0_19 = arith.constant 0 : index
    %26 = vector.load %arg4[%c0_18, %c0_19] : memref<256x128xbf16, #tpu.memory_space<vmem>>, vector<256x128xbf16>
    %cst_20 = arith.constant dense<0.000000e+00> : vector<8x128xf32>
    %27 = tpu.matmul %15, %26, %cst_20 {dimension_numbers = #tpu.dot_dimension_numbers<[1], [0], [0], [1], [0, 0, 1, 1], [], []>} : vector<8x256xbf16>, vector<256x128xbf16>, vector<8x128xf32> -> vector<8x128xf32>
    %28 = arith.addf %25, %27 : vector<8x128xf32>
    %29 = vector.broadcast %16 : vector<1x128xf32> to vector<8x128xf32>
    %30 = arith.addf %28, %29 : vector<8x128xf32>
    %31 = arith.truncf %23 : vector<8x128xf32> to vector<8x128xbf16>
    %32 = arith.truncf %30 : vector<8x128xf32> to vector<8x128xbf16>
    %c0_21 = arith.constant 0 : index
    %c0_22 = arith.constant 0 : index
    %33 = vector.load %arg9[%c0_21, %c0_22] : memref<1x256xf32, #tpu.memory_space<vmem>>, vector<1x256xf32>
    %c0_23 = arith.constant 0 : index
    %c0_24 = arith.constant 0 : index
    %34 = vector.load %arg7[%c0_23, %c0_24] : memref<128x256xbf16, #tpu.memory_space<vmem>>, vector<128x256xbf16>
    %cst_25 = arith.constant dense<0.000000e+00> : vector<8x256xf32>
    %35 = tpu.matmul %31, %34, %cst_25 {dimension_numbers = #tpu.dot_dimension_numbers<[1], [0], [0], [1], [0, 0, 1, 1], [], []>} : vector<8x128xbf16>, vector<128x256xbf16>, vector<8x256xf32> -> vector<8x256xf32>
    %c0_26 = arith.constant 0 : index
    %c0_27 = arith.constant 0 : index
    %36 = vector.load %arg8[%c0_26, %c0_27] : memref<128x256xbf16, #tpu.memory_space<vmem>>, vector<128x256xbf16>
    %cst_28 = arith.constant dense<0.000000e+00> : vector<8x256xf32>
    %37 = tpu.matmul %32, %36, %cst_28 {dimension_numbers = #tpu.dot_dimension_numbers<[1], [0], [0], [1], [0, 0, 1, 1], [], []>} : vector<8x128xbf16>, vector<128x256xbf16>, vector<8x256xf32> -> vector<8x256xf32>
    %38 = arith.subf %35, %37 : vector<8x256xf32>
    %39 = vector.broadcast %33 : vector<1x256xf32> to vector<8x256xf32>
    %40 = arith.addf %38, %39 : vector<8x256xf32>
    %cst_29 = arith.constant 0.000000e+00 : f32
    %41 = vector.broadcast %cst_29 : f32 to vector<8x256xf32>
    %42 = arith.cmpf oge, %40, %41 : vector<8x256xf32>
    %cst_30 = arith.constant 0.00999999977 : f32
    %43 = vector.broadcast %cst_30 : f32 to vector<8x256xf32>
    %44 = arith.mulf %43, %40 : vector<8x256xf32>
    %45 = arith.select %42, %40, %44 : vector<8x256xi1>, vector<8x256xf32>
    %46 = arith.truncf %45 : vector<8x256xf32> to vector<8x256xbf16>
    %c0_31 = arith.constant 0 : index
    %c0_32 = arith.constant 0 : index
    %47 = vector.load %arg8[%c0_31, %c0_32] : memref<128x256xbf16, #tpu.memory_space<vmem>>, vector<128x256xbf16>
    %cst_33 = arith.constant dense<0.000000e+00> : vector<8x256xf32>
    %48 = tpu.matmul %31, %47, %cst_33 {dimension_numbers = #tpu.dot_dimension_numbers<[1], [0], [0], [1], [0, 0, 1, 1], [], []>} : vector<8x128xbf16>, vector<128x256xbf16>, vector<8x256xf32> -> vector<8x256xf32>
    %c0_34 = arith.constant 0 : index
    %c0_35 = arith.constant 0 : index
    %49 = vector.load %arg7[%c0_34, %c0_35] : memref<128x256xbf16, #tpu.memory_space<vmem>>, vector<128x256xbf16>
    %cst_36 = arith.constant dense<0.000000e+00> : vector<8x256xf32>
    %50 = tpu.matmul %32, %49, %cst_36 {dimension_numbers = #tpu.dot_dimension_numbers<[1], [0], [0], [1], [0, 0, 1, 1], [], []>} : vector<8x128xbf16>, vector<128x256xbf16>, vector<8x256xf32> -> vector<8x256xf32>
    %51 = arith.addf %48, %50 : vector<8x256xf32>
    %52 = vector.broadcast %33 : vector<1x256xf32> to vector<8x256xf32>
    %53 = arith.addf %51, %52 : vector<8x256xf32>
    %cst_37 = arith.constant 0.000000e+00 : f32
    %54 = vector.broadcast %cst_37 : f32 to vector<8x256xf32>
    %55 = arith.cmpf oge, %53, %54 : vector<8x256xf32>
    %cst_38 = arith.constant 0.00999999977 : f32
    %56 = vector.broadcast %cst_38 : f32 to vector<8x256xf32>
    %57 = arith.mulf %56, %53 : vector<8x256xf32>
    %58 = arith.select %55, %53, %57 : vector<8x256xi1>, vector<8x256xf32>
    %59 = arith.truncf %58 : vector<8x256xf32> to vector<8x256xbf16>
    %c0_39 = arith.constant 0 : index
    %c0_40 = arith.constant 0 : index
    %60 = vector.load %arg12[%c0_39, %c0_40] : memref<1x512xf32, #tpu.memory_space<vmem>>, vector<1x512xf32>
    %c0_41 = arith.constant 0 : index
    %c0_42 = arith.constant 0 : index
    %61 = vector.load %arg10[%c0_41, %c0_42] : memref<256x512xbf16, #tpu.memory_space<vmem>>, vector<256x512xbf16>
    %cst_43 = arith.constant dense<0.000000e+00> : vector<8x512xf32>
    %62 = tpu.matmul %46, %61, %cst_43 {dimension_numbers = #tpu.dot_dimension_numbers<[1], [0], [0], [1], [0, 0, 1, 1], [], []>} : vector<8x256xbf16>, vector<256x512xbf16>, vector<8x512xf32> -> vector<8x512xf32>
    %c0_44 = arith.constant 0 : index
    %c0_45 = arith.constant 0 : index
    %63 = vector.load %arg11[%c0_44, %c0_45] : memref<256x512xbf16, #tpu.memory_space<vmem>>, vector<256x512xbf16>
    %cst_46 = arith.constant dense<0.000000e+00> : vector<8x512xf32>
    %64 = tpu.matmul %59, %63, %cst_46 {dimension_numbers = #tpu.dot_dimension_numbers<[1], [0], [0], [1], [0, 0, 1, 1], [], []>} : vector<8x256xbf16>, vector<256x512xbf16>, vector<8x512xf32> -> vector<8x512xf32>
    %65 = arith.subf %62, %64 : vector<8x512xf32>
    %66 = vector.broadcast %60 : vector<1x512xf32> to vector<8x512xf32>
    %67 = arith.addf %65, %66 : vector<8x512xf32>
    %c0_47 = arith.constant 0 : index
    %c0_48 = arith.constant 0 : index
    %68 = vector.load %arg13[%c0_47, %c0_48] : memref<8x512xf32, #tpu.memory_space<vmem>>, vector<8x512xf32>
    tpu.vector_store %arg13[%c0_47, %c0_48], %67 {strides = array<i32>} : memref<8x512xf32, #tpu.memory_space<vmem>>, vector<8x512xf32>,
    %c0_49 = arith.constant 0 : index
    %c0_50 = arith.constant 0 : index
    %69 = vector.load %arg11[%c0_49, %c0_50] : memref<256x512xbf16, #tpu.memory_space<vmem>>, vector<256x512xbf16>
    %cst_51 = arith.constant dense<0.000000e+00> : vector<8x512xf32>
    %70 = tpu.matmul %46, %69, %cst_51 {dimension_numbers = #tpu.dot_dimension_numbers<[1], [0], [0], [1], [0, 0, 1, 1], [], []>} : vector<8x256xbf16>, vector<256x512xbf16>, vector<8x512xf32> -> vector<8x512xf32>
    %c0_52 = arith.constant 0 : index
    %c0_53 = arith.constant 0 : index
    %71 = vector.load %arg10[%c0_52, %c0_53] : memref<256x512xbf16, #tpu.memory_space<vmem>>, vector<256x512xbf16>
    %cst_54 = arith.constant dense<0.000000e+00> : vector<8x512xf32>
    %72 = tpu.matmul %59, %71, %cst_54 {dimension_numbers = #tpu.dot_dimension_numbers<[1], [0], [0], [1], [0, 0, 1, 1], [], []>} : vector<8x256xbf16>, vector<256x512xbf16>, vector<8x512xf32> -> vector<8x512xf32>
    %73 = arith.addf %70, %72 : vector<8x512xf32>
    %74 = vector.broadcast %60 : vector<1x512xf32> to vector<8x512xf32>
    %75 = arith.addf %73, %74 : vector<8x512xf32>
    %c0_55 = arith.constant 0 : index
    %c0_56 = arith.constant 0 : index
    %76 = vector.load %arg14[%c0_55, %c0_56] : memref<8x512xf32, #tpu.memory_space<vmem>>, vector<8x512xf32>
    tpu.vector_store %arg14[%c0_55, %c0_56], %75 {strides = array<i32>} : memref<8x512xf32, #tpu.memory_space<vmem>>, vector<8x512xf32>,
    return
  }
  func.func @transform_0(%arg0: i32) -> (i32, i32) {
    %c0_i32 = arith.constant 0 : i32
    %c0_i32_0 = arith.constant 0 : i32
    %c0_i32_1 = arith.constant 0 : i32
    return %c0_i32, %c0_i32_0 : i32, i32
  }
  func.func @transform_1(%arg0: i32) -> (i32, i32) {
    %c0_i32 = arith.constant 0 : i32
    %c0_i32_0 = arith.constant 0 : i32
    %c0_i32_1 = arith.constant 0 : i32
    return %c0_i32, %c0_i32_0 : i32, i32
  }
  func.func @transform_2(%arg0: i32) -> (i32, i32) {
    %c0_i32 = arith.constant 0 : i32
    %c0_i32_0 = arith.constant 0 : i32
    %c0_i32_1 = arith.constant 0 : i32
    return %c0_i32, %c0_i32_0 : i32, i32
  }
  func.func @transform_3(%arg0: i32) -> (i32, i32) {
    %c0_i32 = arith.constant 0 : i32
    %c0_i32_0 = arith.constant 0 : i32
    %c0_i32_1 = arith.constant 0 : i32
    return %c0_i32, %c0_i32_0 : i32, i32
  }
  func.func @transform_4(%arg0: i32) -> (i32, i32) {
    %c0_i32 = arith.constant 0 : i32
    %c0_i32_0 = arith.constant 0 : i32
    %c0_i32_1 = arith.constant 0 : i32
    return %c0_i32, %c0_i32_0 : i32, i32
  }
  func.func @transform_5(%arg0: i32) -> (i32, i32) {
    %c0_i32 = arith.constant 0 : i32
    %c0_i32_0 = arith.constant 0 : i32
    %c0_i32_1 = arith.constant 0 : i32
    return %c0_i32, %c0_i32_0 : i32, i32
  }
  func.func @transform_6(%arg0: i32) -> (i32, i32) {
    %c0_i32 = arith.constant 0 : i32
    %c0_i32_0 = arith.constant 0 : i32
    %c0_i32_1 = arith.constant 0 : i32
    return %c0_i32, %c0_i32_0 : i32, i32
  }
  func.func @transform_7(%arg0: i32) -> (i32, i32) {
    %c0_i32 = arith.constant 0 : i32
    %c0_i32_0 = arith.constant 0 : i32
    %c0_i32_1 = arith.constant 0 : i32
    return %c0_i32, %c0_i32_0 : i32, i32
  }
  func.func @transform_8(%arg0: i32) -> (i32, i32) {
    %c0_i32 = arith.constant 0 : i32
    %c0_i32_0 = arith.constant 0 : i32
    %c0_i32_1 = arith.constant 0 : i32
    return %c0_i32, %c0_i32_0 : i32, i32
  }
  func.func @transform_9(%arg0: i32) -> (i32, i32) {
    %c0_i32 = arith.constant 0 : i32
    %c0_i32_0 = arith.constant 0 : i32
    return %c0_i32, %arg0 : i32, i32
  }
  func.func @transform_10(%arg0: i32) -> (i32, i32) {
    %c0_i32 = arith.constant 0 : i32
    %c0_i32_0 = arith.constant 0 : i32
    return %c0_i32, %arg0 : i32, i32
  }
  func.func @transform_11(%arg0: i32) -> (i32, i32) {
    %c0_i32 = arith.constant 0 : i32
    %c0_i32_0 = arith.constant 0 : i32
    return %c0_i32, %arg0 : i32, i32
  }
  func.func @transform_12(%arg0: i32) -> (i32, i32) {
    %c0_i32 = arith.constant 0 : i32
    %c0_i32_0 = arith.constant 0 : i32
    return %c0_i32, %arg0 : i32, i32
  }
  func.func @transform_13(%arg0: i32) -> (i32, i32) {
    %c0_i32 = arith.constant 0 : i32
    %c0_i32_0 = arith.constant 0 : i32
    return %c0_i32, %arg0 : i32, i32
  }
}

</mosaic_0001>

<llo_original>
// kernel: tpu_custom_call.1
$region0: #{tpu_custom_call.1}
  #allocation0 [shape = 'u32[]', space=smem, size = 0x4, offset = 0x4, fixed_abs, tag = 'smem constant byte address 0x4 - core index']
  #allocation1 [shape = 'u32[72,128]{1,0:T(1,128)}', space=vmem, size = 0x9000, scoped, tag = 'internal scratch']
  %s0 = inlined_call_operand.hbm [shape: f32[8,1024], index: 0, kind: input, shape index: {}]
  %s1 = inlined_call_operand.hbm [shape: bf16[1024,512], index: 1, kind: input, shape index: {}]
  %s2 = inlined_call_operand.hbm [shape: f32[1,512], index: 2, kind: input, shape index: {}]
  %s3 = inlined_call_operand.hbm [shape: bf16[256,128], index: 3, kind: input, shape index: {}]
  %s4 = inlined_call_operand.hbm [shape: bf16[256,128], index: 4, kind: input, shape index: {}]
  %s5 = inlined_call_operand.hbm [shape: f32[1,128], index: 5, kind: input, shape index: {}]
  %s6 = inlined_call_operand.hbm [shape: bf16[128,256], index: 6, kind: input, shape index: {}]
  %s7 = inlined_call_operand.hbm [shape: bf16[128,256], index: 7, kind: input, shape index: {}]
  %s8 = inlined_call_operand.vmem [shape: f32[1,256], index: 8, kind: input, shape index: {}]
  %s9 = inlined_call_operand.hbm [shape: bf16[256,1024], index: 9, kind: input, shape index: {}]
  %s10 = inlined_call_operand.hbm [shape: bf16[256,1024], index: 10, kind: input, shape index: {}]
  %s11 = inlined_call_operand.vmem [shape: f32[1,1024], index: 11, kind: input, shape index: {}]
  %s12 = inlined_call_operand.hbm [shape: f32[8,1024], index: 12, kind: output, shape index: {0}]
  %s13 = inlined_call_operand.hbm [shape: f32[8,1024], index: 13, kind: output, shape index: {1}]
  %14 = xla_tuple %s12, %s13
  %s15 = sld [smem:[#allocation0]]
  $region129: #{tpu_custom_call.1} parent=0
    _
  %s17 = ssub.s32 1, %s15
  %s18 = scalar_select 0, %s17, %s15
  $region1: #{tpu_custom_call.1} parent=0
    #allocation2 [shape = 'u8[32768]{0}', space=vmem, size = 0x8000, scoped, tag = 'input window, operand 0, single buffered']
    #allocation3 [shape = 's32[2]{0}', space=sflag, size = 0x8, scoped, tag = 'scoped memory for tpu_custom_call.1']
    #allocation4 [shape = 's32[2]{0}', space=sflag, size = 0x8, scoped, tag = 'scoped memory for tpu_custom_call.1']
    #allocation5 [shape = 'u8[1048576]{0}', space=vmem, size = 0x100000, scoped, tag = 'input window, operand 1, single buffered']
    #allocation6 [shape = 's32[1]{0}', space=sflag, size = 0x4, scoped, tag = 'scoped memory for tpu_custom_call.1']
    #allocation7 [shape = 'u8[2048]{0}', space=vmem, size = 0x800, scoped, tag = 'input window, operand 2, single buffered']
    #allocation8 [shape = 'u8[65536]{0}', space=vmem, size = 0x10000, scoped, tag = 'input window, operand 3, single buffered']
    #allocation9 [shape = 's32[1]{0}', space=sflag, size = 0x4, scoped, tag = 'scoped memory for tpu_custom_call.1']
    #allocation10 [shape = 'u8[65536]{0}', space=vmem, size = 0x10000, scoped, tag = 'input window, operand 4, single buffered']
    #allocation11 [shape = 'u8[512]{0}', space=vmem, size = 0x400, scoped, tag = 'input window, operand 5, single buffered']
    #allocation12 [shape = 's32[1]{0}', space=sflag, size = 0x4, scoped, tag = 'scoped memory for tpu_custom_call.1']
    #allocation13 [shape = 'u8[65536]{0}', space=vmem, size = 0x10000, scoped, tag = 'input window, operand 6, single buffered']
    #allocation14 [shape = 'u8[65536]{0}', space=vmem, size = 0x10000, scoped, tag = 'input window, operand 7, single buffered']
    #allocation15 [shape = 's32[1]{0}', space=sflag, size = 0x4, scoped, tag = 'scoped memory for tpu_custom_call.1']
    #allocation16 [shape = 'u8[524288]{0}', space=vmem, size = 0x80000, scoped, tag = 'input window, operand 9']
    #allocation17 [shape = 'u8[524288]{0}', space=vmem, size = 0x80000, scoped, tag = 'input window, operand 10']
    #allocation18 [shape = 'u8[32768]{0}', space=vmem, size = 0x8000, scoped, tag = 'output window, operand 0']
    #allocation19 [shape = 'u8[32768]{0}', space=vmem, size = 0x8000, scoped, tag = 'output window, operand 1']
    #allocation20 [shape = 's32[2]{0}', space=sflag, size = 0x8, scoped, tag = 'scoped memory for tpu_custom_call.1']
    %19 = vsyncpa [#allocation3], 0
    %20 = vsyncpa [#allocation6], 0
    %21 = vsyncpa [#allocation9], 0
    %22 = vsyncpa [#allocation12], 0
    %23 = vsyncpa [#allocation15], 0
    %24 = vsyncpa [#allocation4], 0
    %s25 = scalar_lea.sflag [#allocation4], 1
    %26 = vsyncpa %s25, 0
    %27 = vsyncpa [#allocation20], 0
    %s28 = scalar_lea.sflag [#allocation20], 1
    %29 = vsyncpa %s28, 0
    loop: start=0, step=1, limit=4
    $region2: #{tpu_custom_call.1} parent=1 // loop_pre_header
      _
    $region3: #{tpu_custom_call.1} parent=1 // loop_header
      %s31 = sphi 0, %s35
      %p32 = scmp.ge.s32.totalorder %s31, 4
      %s39 = sphi 0, %s39
      %s41 = sphi 0, %s39
      %s42 = sphi 0, %s41
      %s56 = sphi 0, %s42
      %s60 = sphi 0, %s60
      %s62 = sphi 0, %s60
      %s63 = sphi 0, %s62
      %s77 = sphi 0, %s63
      %s81 = sphi 0, %s81
      %s83 = sphi 0, %s81
      %s84 = sphi 0, %s83
      %s98 = sphi 0, %s84
      %s102 = sphi 0, %s102
      %s104 = sphi 0, %s102
      %s105 = sphi 0, %s104
      %s119 = sphi 0, %s105
      %s123 = sphi 0, %s123
      %s125 = sphi 0, %s123
      %s126 = sphi 0, %s125
      %s140 = sphi 0, %s126
      %s144 = sphi 0, %s144
      %s146 = sphi 0, %s144
      %s147 = sphi 0, %s146
      %s161 = sphi 0, %s147
      %s165 = sphi 0, %s165
      %s167 = sphi 0, %s165
      %s168 = sphi 0, %s167
      %s182 = sphi 0, %s168
      %s186 = sphi 0, %s186
      %s188 = sphi 0, %s186
      %s189 = sphi 0, %s188
      %s203 = sphi 0, %s189
      %s207 = sphi 0, %s207
      %s209 = sphi 0, %s207
      %s210 = sphi 0, %s209
      %s224 = sphi 0, %s210
      %s230 = sphi 0, %s232
      %s233 = sphi 0, %s230
      %s234 = sphi 0, %s233
      %s250 = sphi 0, %s234
      %s256 = sphi 0, %s258
      %s259 = sphi 0, %s256
      %s260 = sphi 0, %s259
      %s276 = sphi 0, %s260
      %s282 = sphi 0, %s284
      %s285 = sphi 0, %s282
      %s286 = sphi 0, %s285
      %s302 = sphi 0, %s286
      %s308 = sphi 0, %s310
      %s311 = sphi 0, %s308
      %s312 = sphi 0, %s311
      %s328 = sphi 0, %s312
      %s334 = sphi 0, %s336
      %s337 = sphi 0, %s334
      %s338 = sphi 0, %s337
      %s354 = sphi 0, %s338
    $region4: #{tpu_custom_call.1} parent=1 // loop_header_branch
      %34 = sbr.rel (%p32) target = $region8
    $region5: #{tpu_custom_call.1} parent=1 // loop_body
      %s36 = ssub.s32 %s31, 1
      %s37 = ssub.s32 %s31, 2
      %s38 = sadd.s32 %s31, 1
      %s40 = sadd.s32 %s39, 1
      %p43 = scmp.eq.s32.totalorder %s31, 1
      %p44 = scmp.ne.s32.totalorder %s39, %s41
      %p45 = scmp.eq.s32.totalorder %s31, 0
      %p46 = por %p44, %p45
      %p47 = scmp.ne.s32.totalorder %s39, %s41
      %p48 = scmp.eq.s32.totalorder %s36, 1
      %p49 = por %p47, %p48
      %p50 = scmp.ne.s32.totalorder %s41, %s42
      %p51 = scmp.eq.s32.totalorder %s36, 0
      %p52 = por %p50, %p51
      %p53 = scmp.ne.s32.totalorder %s41, %s42
      %p54 = scmp.eq.s32.totalorder %s37, 1
      %p55 = por %p53, %p54
      %p57 = scmp.ne.s32.totalorder %s42, %s56
      %p58 = scmp.eq.s32.totalorder %s37, 0
      %p59 = por %p57, %p58
      %s61 = sadd.s32 %s60, 1
      %p64 = scmp.eq.s32.totalorder %s31, 1
      %p65 = scmp.ne.s32.totalorder %s60, %s62
      %p66 = scmp.eq.s32.totalorder %s31, 0
      %p67 = por %p65, %p66
      %p68 = scmp.ne.s32.totalorder %s60, %s62
      %p69 = scmp.eq.s32.totalorder %s36, 1
      %p70 = por %p68, %p69
      %p71 = scmp.ne.s32.totalorder %s62, %s63
      %p72 = scmp.eq.s32.totalorder %s36, 0
      %p73 = por %p71, %p72
      %p74 = scmp.ne.s32.totalorder %s62, %s63
      %p75 = scmp.eq.s32.totalorder %s37, 1
      %p76 = por %p74, %p75
      %p78 = scmp.ne.s32.totalorder %s63, %s77
      %p79 = scmp.eq.s32.totalorder %s37, 0
      %p80 = por %p78, %p79
      %s82 = sadd.s32 %s81, 1
      %p85 = scmp.eq.s32.totalorder %s31, 1
      %p86 = scmp.ne.s32.totalorder %s81, %s83
      %p87 = scmp.eq.s32.totalorder %s31, 0
      %p88 = por %p86, %p87
      %p89 = scmp.ne.s32.totalorder %s81, %s83
      %p90 = scmp.eq.s32.totalorder %s36, 1
      %p91 = por %p89, %p90
      %p92 = scmp.ne.s32.totalorder %s83, %s84
      %p93 = scmp.eq.s32.totalorder %s36, 0
      %p94 = por %p92, %p93
      %p95 = scmp.ne.s32.totalorder %s83, %s84
      %p96 = scmp.eq.s32.totalorder %s37, 1
      %p97 = por %p95, %p96
      %p99 = scmp.ne.s32.totalorder %s84, %s98
      %p100 = scmp.eq.s32.totalorder %s37, 0
      %p101 = por %p99, %p100
      %s103 = sadd.s32 %s102, 1
      %p106 = scmp.eq.s32.totalorder %s31, 1
      %p107 = scmp.ne.s32.totalorder %s102, %s104
      %p108 = scmp.eq.s32.totalorder %s31, 0
      %p109 = por %p107, %p108
      %p110 = scmp.ne.s32.totalorder %s102, %s104
      %p111 = scmp.eq.s32.totalorder %s36, 1
      %p112 = por %p110, %p111
      %p113 = scmp.ne.s32.totalorder %s104, %s105
      %p114 = scmp.eq.s32.totalorder %s36, 0
      %p115 = por %p113, %p114
      %p116 = scmp.ne.s32.totalorder %s104, %s105
      %p117 = scmp.eq.s32.totalorder %s37, 1
      %p118 = por %p116, %p117
      %p120 = scmp.ne.s32.totalorder %s105, %s119
      %p121 = scmp.eq.s32.totalorder %s37, 0
      %p122 = por %p120, %p121
      %s124 = sadd.s32 %s123, 1
      %p127 = scmp.eq.s32.totalorder %s31, 1
      %p128 = scmp.ne.s32.totalorder %s123, %s125
      %p129 = scmp.eq.s32.totalorder %s31, 0
      %p130 = por %p128, %p129
      %p131 = scmp.ne.s32.totalorder %s123, %s125
      %p132 = scmp.eq.s32.totalorder %s36, 1
      %p133 = por %p131, %p132
      %p134 = scmp.ne.s32.totalorder %s125, %s126
      %p135 = scmp.eq.s32.totalorder %s36, 0
      %p136 = por %p134, %p135
      %p137 = scmp.ne.s32.totalorder %s125, %s126
      %p138 = scmp.eq.s32.totalorder %s37, 1
      %p139 = por %p137, %p138
      %p141 = scmp.ne.s32.totalorder %s126, %s140
      %p142 = scmp.eq.s32.totalorder %s37, 0
      %p143 = por %p141, %p142
      %s145 = sadd.s32 %s144, 1
      %p148 = scmp.eq.s32.totalorder %s31, 1
      %p149 = scmp.ne.s32.totalorder %s144, %s146
      %p150 = scmp.eq.s32.totalorder %s31, 0
      %p151 = por %p149, %p150
      %p152 = scmp.ne.s32.totalorder %s144, %s146
      %p153 = scmp.eq.s32.totalorder %s36, 1
      %p154 = por %p152, %p153
      %p155 = scmp.ne.s32.totalorder %s146, %s147
      %p156 = scmp.eq.s32.totalorder %s36, 0
      %p157 = por %p155, %p156
      %p158 = scmp.ne.s32.totalorder %s146, %s147
      %p159 = scmp.eq.s32.totalorder %s37, 1
      %p160 = por %p158, %p159
      %p162 = scmp.ne.s32.totalorder %s147, %s161
      %p163 = scmp.eq.s32.totalorder %s37, 0
      %p164 = por %p162, %p163
      %s166 = sadd.s32 %s165, 1
      %p169 = scmp.eq.s32.totalorder %s31, 1
      %p170 = scmp.ne.s32.totalorder %s165, %s167
      %p171 = scmp.eq.s32.totalorder %s31, 0
      %p172 = por %p170, %p171
      %p173 = scmp.ne.s32.totalorder %s165, %s167
      %p174 = scmp.eq.s32.totalorder %s36, 1
      %p175 = por %p173, %p174
      %p176 = scmp.ne.s32.totalorder %s167, %s168
      %p177 = scmp.eq.s32.totalorder %s36, 0
      %p178 = por %p176, %p177
      %p179 = scmp.ne.s32.totalorder %s167, %s168
      %p180 = scmp.eq.s32.totalorder %s37, 1
      %p181 = por %p179, %p180
      %p183 = scmp.ne.s32.totalorder %s168, %s182
      %p184 = scmp.eq.s32.totalorder %s37, 0
      %p185 = por %p183, %p184
      %s187 = sadd.s32 %s186, 1
      %p190 = scmp.eq.s32.totalorder %s31, 1
      %p191 = scmp.ne.s32.totalorder %s186, %s188
      %p192 = scmp.eq.s32.totalorder %s31, 0
      %p193 = por %p191, %p192
      %p194 = scmp.ne.s32.totalorder %s186, %s188
      %p195 = scmp.eq.s32.totalorder %s36, 1
      %p196 = por %p194, %p195
      %p197 = scmp.ne.s32.totalorder %s188, %s189
      %p198 = scmp.eq.s32.totalorder %s36, 0
      %p199 = por %p197, %p198
      %p200 = scmp.ne.s32.totalorder %s188, %s189
      %p201 = scmp.eq.s32.totalorder %s37, 1
      %p202 = por %p200, %p201
      %p204 = scmp.ne.s32.totalorder %s189, %s203
      %p205 = scmp.eq.s32.totalorder %s37, 0
      %p206 = por %p204, %p205
      %s208 = sadd.s32 %s207, 1
      %p211 = scmp.eq.s32.totalorder %s31, 1
      %p212 = scmp.ne.s32.totalorder %s207, %s209
      %p213 = scmp.eq.s32.totalorder %s31, 0
      %p214 = por %p212, %p213
      %p215 = scmp.ne.s32.totalorder %s207, %s209
      %p216 = scmp.eq.s32.totalorder %s36, 1
      %p217 = por %p215, %p216
      %p218 = scmp.ne.s32.totalorder %s209, %s210
      %p219 = scmp.eq.s32.totalorder %s36, 0
      %p220 = por %p218, %p219
      %p221 = scmp.ne.s32.totalorder %s209, %s210
      %p222 = scmp.eq.s32.totalorder %s37, 1
      %p223 = por %p221, %p222
      %p225 = scmp.ne.s32.totalorder %s210, %s224
      %p226 = scmp.eq.s32.totalorder %s37, 0
      %p227 = por %p225, %p226
      %s228 = ssub.s32 %s31, %s38
      %p229 = scmp.eq.s32.totalorder %s228, 0
      %s231 = sadd.s32 %s230, 1
      %s232 = scalar_select %p229, %s230, %s231
      %p235 = pneg %p229
      %p236 = scmp.eq.s32.totalorder %s31, 1
      %p237 = por %p235, %p236
      %p238 = scmp.ne.s32.totalorder %s230, %s233
      %p239 = scmp.eq.s32.totalorder %s31, 0
      %p240 = por %p238, %p239
      %p241 = scmp.ne.s32.totalorder %s230, %s233
      %p242 = scmp.eq.s32.totalorder %s36, 1
      %p243 = por %p241, %p242
      %p244 = scmp.ne.s32.totalorder %s233, %s234
      %p245 = scmp.eq.s32.totalorder %s36, 0
      %p246 = por %p244, %p245
      %p247 = scmp.ne.s32.totalorder %s233, %s234
      %p248 = scmp.eq.s32.totalorder %s37, 1
      %p249 = por %p247, %p248
      %p251 = scmp.ne.s32.totalorder %s234, %s250
      %p252 = scmp.eq.s32.totalorder %s37, 0
      %p253 = por %p251, %p252
      %s254 = ssub.s32 %s31, %s38
      %p255 = scmp.eq.s32.totalorder %s254, 0
      %s257 = sadd.s32 %s256, 1
      %s258 = scalar_select %p255, %s256, %s257
      %p261 = pneg %p255
      %p262 = scmp.eq.s32.totalorder %s31, 1
      %p263 = por %p261, %p262
      %p264 = scmp.ne.s32.totalorder %s256, %s259
      %p265 = scmp.eq.s32.totalorder %s31, 0
      %p266 = por %p264, %p265
      %p267 = scmp.ne.s32.totalorder %s256, %s259
      %p268 = scmp.eq.s32.totalorder %s36, 1
      %p269 = por %p267, %p268
      %p270 = scmp.ne.s32.totalorder %s259, %s260
      %p271 = scmp.eq.s32.totalorder %s36, 0
      %p272 = por %p270, %p271
      %p273 = scmp.ne.s32.totalorder %s259, %s260
      %p274 = scmp.eq.s32.totalorder %s37, 1
      %p275 = por %p273, %p274
      %p277 = scmp.ne.s32.totalorder %s260, %s276
      %p278 = scmp.eq.s32.totalorder %s37, 0
      %p279 = por %p277, %p278
      %s280 = ssub.s32 %s31, %s38
      %p281 = scmp.eq.s32.totalorder %s280, 0
      %s283 = sadd.s32 %s282, 1
      %s284 = scalar_select %p281, %s282, %s283
      %p287 = pneg %p281
      %p288 = scmp.eq.s32.totalorder %s31, 1
      %p289 = por %p287, %p288
      %p290 = scmp.ne.s32.totalorder %s282, %s285
      %p291 = scmp.eq.s32.totalorder %s31, 0
      %p292 = por %p290, %p291
      %p293 = scmp.ne.s32.totalorder %s282, %s285
      %p294 = scmp.eq.s32.totalorder %s36, 1
      %p295 = por %p293, %p294
      %p296 = scmp.ne.s32.totalorder %s285, %s286
      %p297 = scmp.eq.s32.totalorder %s36, 0
      %p298 = por %p296, %p297
      %p299 = scmp.ne.s32.totalorder %s285, %s286
      %p300 = scmp.eq.s32.totalorder %s37, 1
      %p301 = por %p299, %p300
      %p303 = scmp.ne.s32.totalorder %s286, %s302
      %p304 = scmp.eq.s32.totalorder %s37, 0
      %p305 = por %p303, %p304
      %s306 = ssub.s32 %s31, %s38
      %p307 = scmp.eq.s32.totalorder %s306, 0
      %s309 = sadd.s32 %s308, 1
      %s310 = scalar_select %p307, %s308, %s309
      %p313 = pneg %p307
      %p314 = scmp.eq.s32.totalorder %s31, 1
      %p315 = por %p313, %p314
      %p316 = scmp.ne.s32.totalorder %s308, %s311
      %p317 = scmp.eq.s32.totalorder %s31, 0
      %p318 = por %p316, %p317
      %p319 = scmp.ne.s32.totalorder %s308, %s311
      %p320 = scmp.eq.s32.totalorder %s36, 1
      %p321 = por %p319, %p320
      %p322 = scmp.ne.s32.totalorder %s311, %s312
      %p323 = scmp.eq.s32.totalorder %s36, 0
      %p324 = por %p322, %p323
      %p325 = scmp.ne.s32.totalorder %s311, %s312
      %p326 = scmp.eq.s32.totalorder %s37, 1
      %p327 = por %p325, %p326
      %p329 = scmp.ne.s32.totalorder %s312, %s328
      %p330 = scmp.eq.s32.totalorder %s37, 0
      %p331 = por %p329, %p330
      %s332 = ssub.s32 %s31, %s38
      %p333 = scmp.eq.s32.totalorder %s332, 0
      %s335 = sadd.s32 %s334, 1
      %s336 = scalar_select %p333, %s334, %s335
      %p339 = pneg %p333
      %p340 = scmp.eq.s32.totalorder %s31, 1
      %p341 = por %p339, %p340
      %p342 = scmp.ne.s32.totalorder %s334, %s337
      %p343 = scmp.eq.s32.totalorder %s31, 0
      %p344 = por %p342, %p343
      %p345 = scmp.ne.s32.totalorder %s334, %s337
      %p346 = scmp.eq.s32.totalorder %s36, 1
      %p347 = por %p345, %p346
      %p348 = scmp.ne.s32.totalorder %s337, %s338
      %p349 = scmp.eq.s32.totalorder %s36, 0
      %p350 = por %p348, %p349
      %p351 = scmp.ne.s32.totalorder %s337, %s338
      %p352 = scmp.eq.s32.totalorder %s37, 1
      %p353 = por %p351, %p352
      %p355 = scmp.ne.s32.totalorder %s338, %s354
      %p356 = scmp.eq.s32.totalorder %s37, 0
      %p357 = por %p355, %p356
      %p358 = scmp.le.s32.totalorder 1, %s31
      %p359 = scmp.lt.s32.totalorder %s31, 3
      %p360 = pnand %p358, %p359
      %p361 = pneg %p360
      // Predicated region
      $region9: #{tpu_custom_call.1} parent=5 // pred_check
        _
      $region10: #{tpu_custom_call.1} parent=5 // pred_check_branch
        %363 = sbr.rel (%p360) target = $region12
      $region11: #{tpu_custom_call.1} parent=5 // pred_region
        %s364 = ssub.s32 %s31, 1
        // Predicated region
        $region13: #{tpu_custom_call.1} parent=11 // pred_check
          %p365 = pneg %p52
        $region14: #{tpu_custom_call.1} parent=11 // pred_check_branch
          %367 = sbr.rel (%p365) target = $region16
        $region15: #{tpu_custom_call.1} parent=11 // pred_region
          %369 = vsyncadd [#allocation3], 0
          %s371 = sshll.u32 %s0, 4
          %s372 = int_to_ptr.hbm [resolvable:$true] %s371
          %s373 = sshll.u32 [#allocation2], 4
          %s374 = int_to_ptr.vmem [resolvable:$true] %s373
          %376 = dma.hbm_to_vmem [thread:$0]  %s372, 1024, %s374, [#allocation3]
        $region16: #{tpu_custom_call.1} parent=11 // pred_fallthru
          _
        // Predicated region
        $region17: #{tpu_custom_call.1} parent=11 // pred_check
          %p377 = pneg %p73
        $region18: #{tpu_custom_call.1} parent=11 // pred_check_branch
          %379 = sbr.rel (%p377) target = $region20
        $region19: #{tpu_custom_call.1} parent=11 // pred_region
          %381 = vsyncadd [#allocation6], 0
          %s382 = sshll.u32 %s1, 4
          %s383 = int_to_ptr.hbm [resolvable:$true] %s382
          %s384 = sshll.u32 [#allocation5], 4
          %s385 = int_to_ptr.vmem [resolvable:$true] %s384
          %390 = dma.hbm_to_vmem [thread:$0]  %s383, 32768, %s385, [#allocation6], 256, 256, 16
        $region20: #{tpu_custom_call.1} parent=11 // pred_fallthru
          _
        // Predicated region
        $region21: #{tpu_custom_call.1} parent=11 // pred_check
          %p391 = pneg %p94
        $region22: #{tpu_custom_call.1} parent=11 // pred_check_branch
          %393 = sbr.rel (%p391) target = $region24
        $region23: #{tpu_custom_call.1} parent=11 // pred_region
          %395 = vsyncadd [#allocation6], 0
          %s397 = sshll.u32 %s2, 4
          %s398 = int_to_ptr.hbm [resolvable:$true] %s397
          %s399 = sshll.u32 [#allocation7], 4
          %s400 = int_to_ptr.vmem [resolvable:$true] %s399
          %402 = dma.hbm_to_vmem [thread:$0]  %s398, 64, %s400, [#allocation6]
        $region24: #{tpu_custom_call.1} parent=11 // pred_fallthru
          _
        // Predicated region
        $region25: #{tpu_custom_call.1} parent=11 // pred_check
          %p403 = pneg %p115
        $region26: #{tpu_custom_call.1} parent=11 // pred_check_branch
          %405 = sbr.rel (%p403) target = $region28
        $region27: #{tpu_custom_call.1} parent=11 // pred_region
          %407 = vsyncadd [#allocation9], 0
          %s408 = sshll.u32 %s3, 4
          %s409 = int_to_ptr.hbm [resolvable:$true] %s408
          %s410 = sshll.u32 [#allocation8], 4
          %s411 = int_to_ptr.vmem [resolvable:$true] %s410
          %416 = dma.hbm_to_vmem [thread:$0]  %s409, 2048, %s411, [#allocation9], 64, 64, 4
        $region28: #{tpu_custom_call.1} parent=11 // pred_fallthru
          _
        // Predicated region
        $region29: #{tpu_custom_call.1} parent=11 // pred_check
          %p417 = pneg %p136
        $region30: #{tpu_custom_call.1} parent=11 // pred_check_branch
          %419 = sbr.rel (%p417) target = $region32
        $region31: #{tpu_custom_call.1} parent=11 // pred_region
          %421 = vsyncadd [#allocation9], 0
          %s422 = sshll.u32 %s4, 4
          %s423 = int_to_ptr.hbm [resolvable:$true] %s422
          %s424 = sshll.u32 [#allocation10], 4
          %s425 = int_to_ptr.vmem [resolvable:$true] %s424
          %430 = dma.hbm_to_vmem [thread:$0]  %s423, 2048, %s425, [#allocation9], 64, 64, 4
        $region32: #{tpu_custom_call.1} parent=11 // pred_fallthru
          _
        // Predicated region
        $region33: #{tpu_custom_call.1} parent=11 // pred_check
          %p431 = pneg %p157
        $region34: #{tpu_custom_call.1} parent=11 // pred_check_branch
          %433 = sbr.rel (%p431) target = $region36
        $region35: #{tpu_custom_call.1} parent=11 // pred_region
          %435 = vsyncadd [#allocation12], 0
          %s437 = sshll.u32 %s5, 4
          %s438 = int_to_ptr.hbm [resolvable:$true] %s437
          %s439 = sshll.u32 [#allocation11], 4
          %s440 = int_to_ptr.vmem [resolvable:$true] %s439
          %442 = dma.hbm_to_vmem [thread:$0]  %s438, 16, %s440, [#allocation12]
        $region36: #{tpu_custom_call.1} parent=11 // pred_fallthru
          _
        // Predicated region
        $region37: #{tpu_custom_call.1} parent=11 // pred_check
          %p443 = pneg %p178
        $region38: #{tpu_custom_call.1} parent=11 // pred_check_branch
          %445 = sbr.rel (%p443) target = $region40
        $region39: #{tpu_custom_call.1} parent=11 // pred_region
          %447 = vsyncadd [#allocation12], 0
          %s448 = sshll.u32 %s6, 4
          %s449 = int_to_ptr.hbm [resolvable:$true] %s448
          %s450 = sshll.u32 [#allocation13], 4
          %s451 = int_to_ptr.vmem [resolvable:$true] %s450
          %456 = dma.hbm_to_vmem [thread:$0]  %s449, 2048, %s451, [#allocation12], 128, 128, 8
        $region40: #{tpu_custom_call.1} parent=11 // pred_fallthru
          _
        // Predicated region
        $region41: #{tpu_custom_call.1} parent=11 // pred_check
          %p457 = pneg %p199
        $region42: #{tpu_custom_call.1} parent=11 // pred_check_branch
          %459 = sbr.rel (%p457) target = $region44
        $region43: #{tpu_custom_call.1} parent=11 // pred_region
          %461 = vsyncadd [#allocation15], 0
          %s462 = sshll.u32 %s7, 4
          %s463 = int_to_ptr.hbm [resolvable:$true] %s462
          %s464 = sshll.u32 [#allocation14], 4
          %s465 = int_to_ptr.vmem [resolvable:$true] %s464
          %470 = dma.hbm_to_vmem [thread:$0]  %s463, 2048, %s465, [#allocation15], 128, 128, 8
        $region44: #{tpu_custom_call.1} parent=11 // pred_fallthru
          _
        // Predicated region
        $region45: #{tpu_custom_call.1} parent=11 // pred_check
          %p471 = pneg %p220
        $region46: #{tpu_custom_call.1} parent=11 // pred_check_branch
          %473 = sbr.rel (%p471) target = $region48
        $region47: #{tpu_custom_call.1} parent=11 // pred_region
          _
        $region48: #{tpu_custom_call.1} parent=11 // pred_fallthru
          _
      $region12: #{tpu_custom_call.1} parent=5 // pred_fallthru
        _
      %p474 = scmp.lt.s32.totalorder %s31, 2
      // Predicated region
      $region49: #{tpu_custom_call.1} parent=5 // pred_check
        %p475 = pneg %p474
      $region50: #{tpu_custom_call.1} parent=5 // pred_check_branch
        %477 = sbr.rel (%p475) target = $region52
      $region51: #{tpu_custom_call.1} parent=5 // pred_region
        // Predicated region
        $region53: #{tpu_custom_call.1} parent=51 // pred_check
          %p478 = pneg %p240
        $region54: #{tpu_custom_call.1} parent=51 // pred_check_branch
          %480 = sbr.rel (%p478) target = $region56
        $region55: #{tpu_custom_call.1} parent=51 // pred_region
          %s481 = sand.u32 %s31, 1
          %s482 = scalar_lea.sflag [#allocation3], %s481
          %s483 = sand.u32 %s230, 1
          %s484 = smul.addr %s483, 512
          %s485 = scalar_lea.vmem [#allocation16], %s484
          %s486 = smul.u32 4, %s31
          %488 = vsyncadd %s482, 0
          %s489 = smul.addr %s486, 4
          %s490 = scalar_lea.hbm %s9, %s489
          %s491 = sshll.u32 %s490, 4
          %s492 = int_to_ptr.hbm [resolvable:$true] %s491
          %s493 = sshll.u32 %s485, 4
          %s494 = int_to_ptr.vmem [resolvable:$true] %s493
          %499 = dma.hbm_to_vmem [thread:$0]  %s492, 8192, %s494, %s482, 512, 256, 16
        $region56: #{tpu_custom_call.1} parent=51 // pred_fallthru
          _
        // Predicated region
        $region57: #{tpu_custom_call.1} parent=51 // pred_check
          %p500 = pneg %p266
        $region58: #{tpu_custom_call.1} parent=51 // pred_check_branch
          %502 = sbr.rel (%p500) target = $region60
        $region59: #{tpu_custom_call.1} parent=51 // pred_region
          %s503 = sand.u32 %s31, 1
          %s504 = scalar_lea.sflag [#allocation3], %s503
          %s505 = sand.u32 %s256, 1
          %s506 = smul.addr %s505, 512
          %s507 = scalar_lea.vmem [#allocation17], %s506
          %s508 = smul.u32 4, %s31
          %510 = vsyncadd %s504, 0
          %s511 = smul.addr %s508, 4
          %s512 = scalar_lea.hbm %s10, %s511
          %s513 = sshll.u32 %s512, 4
          %s514 = int_to_ptr.hbm [resolvable:$true] %s513
          %s515 = sshll.u32 %s507, 4
          %s516 = int_to_ptr.vmem [resolvable:$true] %s515
          %521 = dma.hbm_to_vmem [thread:$0]  %s514, 8192, %s516, %s504, 512, 256, 16
        $region60: #{tpu_custom_call.1} parent=51 // pred_fallthru
          _
        // Predicated region
        $region61: #{tpu_custom_call.1} parent=51 // pred_check
          %p522 = pneg %p292
        $region62: #{tpu_custom_call.1} parent=51 // pred_check_branch
          %524 = sbr.rel (%p522) target = $region64
        $region63: #{tpu_custom_call.1} parent=51 // pred_region
          %s525 = smul.u32 4, %s31
          %p526 = scmp.lt.s32.totalorder %s525, 7
          %s527 = scalar_select %p526, %s525, 7
          %s528 = scalar_lea.vmem %s11, %s527
          %s529 = smul.u32 4, %s31
        $region64: #{tpu_custom_call.1} parent=51 // pred_fallthru
          _
      $region52: #{tpu_custom_call.1} parent=5 // pred_fallthru
        _
      %p530 = scmp.le.s32.totalorder 1, %s31
      %p531 = scmp.lt.s32.totalorder %s31, 3
      %p532 = pnand %p530, %p531
      %p533 = pneg %p532
      // Predicated region
      $region65: #{tpu_custom_call.1} parent=5 // pred_check
        _
      $region66: #{tpu_custom_call.1} parent=5 // pred_check_branch
        %535 = sbr.rel (%p532) target = $region68
      $region67: #{tpu_custom_call.1} parent=5 // pred_region
        %s536 = ssub.s32 %s31, 1
        // Predicated region
        $region69: #{tpu_custom_call.1} parent=67 // pred_check
          %p537 = pneg %p52
        $region70: #{tpu_custom_call.1} parent=67 // pred_check_branch
          %539 = sbr.rel (%p537) target = $region72
        $region71: #{tpu_custom_call.1} parent=67 // pred_region
          %541 = dma.done [#allocation3], 1024
        $region72: #{tpu_custom_call.1} parent=67 // pred_fallthru
          _
        // Predicated region
        $region73: #{tpu_custom_call.1} parent=67 // pred_check
          %p542 = pneg %p73
        $region74: #{tpu_custom_call.1} parent=67 // pred_check_branch
          %544 = sbr.rel (%p542) target = $region76
        $region75: #{tpu_custom_call.1} parent=67 // pred_region
          %546 = dma.done [#allocation6], 32768
        $region76: #{tpu_custom_call.1} parent=67 // pred_fallthru
          _
        // Predicated region
        $region77: #{tpu_custom_call.1} parent=67 // pred_check
          %p547 = pneg %p94
        $region78: #{tpu_custom_call.1} parent=67 // pred_check_branch
          %549 = sbr.rel (%p547) target = $region80
        $region79: #{tpu_custom_call.1} parent=67 // pred_region
          %551 = dma.done [#allocation6], 64
        $region80: #{tpu_custom_call.1} parent=67 // pred_fallthru
          _
        // Predicated region
        $region81: #{tpu_custom_call.1} parent=67 // pred_check
          %p552 = pneg %p115
        $region82: #{tpu_custom_call.1} parent=67 // pred_check_branch
          %554 = sbr.rel (%p552) target = $region84
        $region83: #{tpu_custom_call.1} parent=67 // pred_region
          %556 = dma.done [#allocation9], 2048
        $region84: #{tpu_custom_call.1} parent=67 // pred_fallthru
          _
        // Predicated region
        $region85: #{tpu_custom_call.1} parent=67 // pred_check
          %p557 = pneg %p136
        $region86: #{tpu_custom_call.1} parent=67 // pred_check_branch
          %559 = sbr.rel (%p557) target = $region88
        $region87: #{tpu_custom_call.1} parent=67 // pred_region
          %561 = dma.done [#allocation9], 2048
        $region88: #{tpu_custom_call.1} parent=67 // pred_fallthru
          _
        // Predicated region
        $region89: #{tpu_custom_call.1} parent=67 // pred_check
          %p562 = pneg %p157
        $region90: #{tpu_custom_call.1} parent=67 // pred_check_branch
          %564 = sbr.rel (%p562) target = $region92
        $region91: #{tpu_custom_call.1} parent=67 // pred_region
          %566 = dma.done [#allocation12], 16
        $region92: #{tpu_custom_call.1} parent=67 // pred_fallthru
          _
        // Predicated region
        $region93: #{tpu_custom_call.1} parent=67 // pred_check
          %p567 = pneg %p178
        $region94: #{tpu_custom_call.1} parent=67 // pred_check_branch
          %569 = sbr.rel (%p567) target = $region96
        $region95: #{tpu_custom_call.1} parent=67 // pred_region
          %571 = dma.done [#allocation12], 2048
        $region96: #{tpu_custom_call.1} parent=67 // pred_fallthru
          _
        // Predicated region
        $region97: #{tpu_custom_call.1} parent=67 // pred_check
          %p572 = pneg %p199
        $region98: #{tpu_custom_call.1} parent=67 // pred_check_branch
          %574 = sbr.rel (%p572) target = $region100
        $region99: #{tpu_custom_call.1} parent=67 // pred_region
          %576 = dma.done [#allocation15], 2048
        $region100: #{tpu_custom_call.1} parent=67 // pred_fallthru
          _
        %s577 = sand.u32 %s36, 1
        %s578 = scalar_lea.sflag [#allocation3], %s577
        %s579 = sand.u32 %s233, 1
        %s580 = smul.addr %s579, 512
        %s581 = scalar_lea.vmem [#allocation16], %s580
        // Predicated region
        $region101: #{tpu_custom_call.1} parent=67 // pred_check
          %p582 = pneg %p246
        $region102: #{tpu_custom_call.1} parent=67 // pred_check_branch
          %584 = sbr.rel (%p582) target = $region104
        $region103: #{tpu_custom_call.1} parent=67 // pred_region
          %586 = dma.done %s578, 8192
        $region104: #{tpu_custom_call.1} parent=67 // pred_fallthru
          _
        %s587 = sand.u32 %s36, 1
        %s588 = scalar_lea.sflag [#allocation3], %s587
        %s589 = sand.u32 %s259, 1
        %s590 = smul.addr %s589, 512
        %s591 = scalar_lea.vmem [#allocation17], %s590
        // Predicated region
        $region105: #{tpu_custom_call.1} parent=67 // pred_check
          %p592 = pneg %p272
        $region106: #{tpu_custom_call.1} parent=67 // pred_check_branch
          %594 = sbr.rel (%p592) target = $region108
        $region107: #{tpu_custom_call.1} parent=67 // pred_region
          %596 = dma.done %s588, 8192
        $region108: #{tpu_custom_call.1} parent=67 // pred_fallthru
          _
        %p597 = pneg %p52
        %p598 = pneg %p49
        %p599 = pneg %p73
        %p600 = pneg %p70
        %p601 = pneg %p94
        %p602 = pneg %p91
        %p603 = pneg %p115
        %p604 = pneg %p112
        %p605 = pneg %p136
        %p606 = pneg %p133
        %p607 = pneg %p157
        %p608 = pneg %p154
        %p609 = pneg %p178
        %p610 = pneg %p175
        %p611 = pneg %p199
        %p612 = pneg %p196
        %p613 = pneg %p220
        %p614 = pneg %p217
        %s615 = sand.u32 %s36, 1
        %s616 = scalar_lea.sflag [#allocation3], %s615
        %s617 = sand.u32 %s233, 1
        %s618 = smul.addr %s617, 512
        %s619 = scalar_lea.vmem [#allocation16], %s618
        %p620 = pneg %p246
        %p621 = pneg %p243
        %s622 = sand.u32 %s36, 1
        %s623 = scalar_lea.sflag [#allocation3], %s622
        %s624 = sand.u32 %s259, 1
        %s625 = smul.addr %s624, 512
        %s626 = scalar_lea.vmem [#allocation17], %s625
        %p627 = pneg %p272
        %p628 = pneg %p269
        %s629 = smul.u32 4, %s36
        %p630 = scmp.lt.s32.totalorder %s629, 7
        %s631 = scalar_select %p630, %s629, 7
        %s632 = scalar_lea.vmem %s11, %s631
        %p633 = pneg %p298
        %p634 = pneg %p295
        %p635 = pneg %p324
        %p636 = pneg %p321
        %s637 = sand.u32 %s311, 1
        %s638 = scalar_lea.sflag [#allocation4], %s637
        %s639 = sand.u32 %s311, 1
        %s640 = smul.addr %s639, 32
        %s641 = scalar_lea.vmem [#allocation18], %s640
        %p642 = pneg %p350
        %p643 = pneg %p347
        %s644 = sand.u32 %s337, 1
        %s645 = scalar_lea.sflag [#allocation20], %s644
        %s646 = sand.u32 %s337, 1
        %s647 = smul.addr %s646, 32
        %s648 = scalar_lea.vmem [#allocation19], %s647
        %s649 = smul.u32 4, %s36
        %s650 = smul.u32 4, %s36
        %s651 = smul.u32 4, %s36
        %p652 = scmp.lt.s32.totalorder %s651, 7
        %s653 = scalar_select %p652, %s651, 7
        %s654 = scalar_lea.vmem %s11, %s653
        %s655 = smul.u32 4, %s36
        %s656 = smul.u32 4, %s36
        %s657 = smul.u32 4, %s36
        %v658 = vld [vmem:[#allocation2] sm:$0xff]
        %v659 = vld [vmem:[#allocation2 + $0x8] sm:$0xff]
        %v660 = vld [vmem:[#allocation2 + $0x10] sm:$0xff]
        %v661 = vld [vmem:[#allocation2 + $0x18] sm:$0xff]
        %v662 = vld [vmem:[#allocation2 + $0x20] sm:$0xff]
        %v663 = vld [vmem:[#allocation2 + $0x28] sm:$0xff]
        %v664 = vld [vmem:[#allocation2 + $0x30] sm:$0xff]
        %v665 = vld [vmem:[#allocation2 + $0x38] sm:$0xff]
        %v666 = vpack.c.bf16 %v658, %v658
        %v667 = vpack.c.bf16 %v659, %v659
        %v668 = vpack.c.bf16 %v660, %v660
        %v669 = vpack.c.bf16 %v661, %v661
        %v670 = vpack.c.bf16 %v662, %v662
        %v671 = vpack.c.bf16 %v663, %v663
        %v672 = vpack.c.bf16 %v664, %v664
        %v673 = vpack.c.bf16 %v665, %v665
        %v674 = vld [vmem:[#allocation5] sm:$0xff]
        %v675 = vld [vmem:[#allocation5 + $0x8] sm:$0xff]
        %v676 = vld [vmem:[#allocation5 + $0x10] sm:$0xff]
        %v677 = vld [vmem:[#allocation5 + $0x18] sm:$0xff]
        %v678 = vld [vmem:[#allocation5 + $0x20] sm:$0xff]
        %v679 = vld [vmem:[#allocation5 + $0x28] sm:$0xff]
        %v680 = vld [vmem:[#allocation5 + $0x30] sm:$0xff]
        %v681 = vld [vmem:[#allocation5 + $0x38] sm:$0xff]
        %v682 = vld [vmem:[#allocation5 + $0x40] sm:$0xff]
        %v683 = vld [vmem:[#allocation5 + $0x48] sm:$0xff]
        %v684 = vld [vmem:[#allocation5 + $0x50] sm:$0xff]
        %v685 = vld [vmem:[#allocation5 + $0x58] sm:$0xff]
        %v686 = vld [vmem:[#allocation5 + $0x60] sm:$0xff]
        %v687 = vld [vmem:[#allocation5 + $0x68] sm:$0xff]
        %v688 = vld [vmem:[#allocation5 + $0x70] sm:$0xff]
        %v689 = vld [vmem:[#allocation5 + $0x78] sm:$0xff]
        %v690 = vld [vmem:[#allocation5 + $0x80] sm:$0xff]
        %v691 = vld [vmem:[#allocation5 + $0x88] sm:$0xff]
        %v692 = vld [vmem:[#allocation5 + $0x90] sm:$0xff]
        %v693 = vld [vmem:[#allocation5 + $0x98] sm:$0xff]
        %v694 = vld [vmem:[#allocation5 + $0xa0] sm:$0xff]
        %v695 = vld [vmem:[#allocation5 + $0xa8] sm:$0xff]
        %v696 = vld [vmem:[#allocation5 + $0xb0] sm:$0xff]
        %v697 = vld [vmem:[#allocation5 + $0xb8] sm:$0xff]
        %v698 = vld [vmem:[#allocation5 + $0xc0] sm:$0xff]
        %v699 = vld [vmem:[#allocation5 + $0xc8] sm:$0xff]
        %v700 = vld [vmem:[#allocation5 + $0xd0] sm:$0xff]
        %v701 = vld [vmem:[#allocation5 + $0xd8] sm:$0xff]
        %v702 = vld [vmem:[#allocation5 + $0xe0] sm:$0xff]
        %v703 = vld [vmem:[#allocation5 + $0xe8] sm:$0xff]
        %v704 = vld [vmem:[#allocation5 + $0xf0] sm:$0xff]
        %v705 = vld [vmem:[#allocation5 + $0xf8] sm:$0xff]
        %v706 = vld [vmem:[#allocation5 + $0x100] sm:$0xff]
        %v707 = vld [vmem:[#allocation5 + $0x108] sm:$0xff]
        %v708 = vld [vmem:[#allocation5 + $0x110] sm:$0xff]
        %v709 = vld [vmem:[#allocation5 + $0x118] sm:$0xff]
        %v710 = vld [vmem:[#allocation5 + $0x120] sm:$0xff]
        %v711 = vld [vmem:[#allocation5 + $0x128] sm:$0xff]
        %v712 = vld [vmem:[#allocation5 + $0x130] sm:$0xff]
        %v713 = vld [vmem:[#allocation5 + $0x138] sm:$0xff]
        %v714 = vld [vmem:[#allocation5 + $0x140] sm:$0xff]
        %v715 = vld [vmem:[#allocation5 + $0x148] sm:$0xff]
        %v716 = vld [vmem:[#allocation5 + $0x150] sm:$0xff]
        %v717 = vld [vmem:[#allocation5 + $0x158] sm:$0xff]
        %v718 = vld [vmem:[#allocation5 + $0x160] sm:$0xff]
        %v719 = vld [vmem:[#allocation5 + $0x168] sm:$0xff]
        %v720 = vld [vmem:[#allocation5 + $0x170] sm:$0xff]
        %v721 = vld [vmem:[#allocation5 + $0x178] sm:$0xff]
        %v722 = vld [vmem:[#allocation5 + $0x180] sm:$0xff]
        %v723 = vld [vmem:[#allocation5 + $0x188] sm:$0xff]
        %v724 = vld [vmem:[#allocation5 + $0x190] sm:$0xff]
        %v725 = vld [vmem:[#allocation5 + $0x198] sm:$0xff]
        %v726 = vld [vmem:[#allocation5 + $0x1a0] sm:$0xff]
        %v727 = vld [vmem:[#allocation5 + $0x1a8] sm:$0xff]
        %v728 = vld [vmem:[#allocation5 + $0x1b0] sm:$0xff]
        %v729 = vld [vmem:[#allocation5 + $0x1b8] sm:$0xff]
        %v730 = vld [vmem:[#allocation5 + $0x1c0] sm:$0xff]
        %v731 = vld [vmem:[#allocation5 + $0x1c8] sm:$0xff]
        %v732 = vld [vmem:[#allocation5 + $0x1d0] sm:$0xff]
        %v733 = vld [vmem:[#allocation5 + $0x1d8] sm:$0xff]
        %v734 = vld [vmem:[#allocation5 + $0x1e0] sm:$0xff]
        %v735 = vld [vmem:[#allocation5 + $0x1e8] sm:$0xff]
        %v736 = vld [vmem:[#allocation5 + $0x1f0] sm:$0xff]
        %v737 = vld [vmem:[#allocation5 + $0x1f8] sm:$0xff]
        %v738 = vld [vmem:[#allocation5 + $0x200] sm:$0xff]
        %v739 = vld [vmem:[#allocation5 + $0x208] sm:$0xff]
        %v740 = vld [vmem:[#allocation5 + $0x210] sm:$0xff]
        %v741 = vld [vmem:[#allocation5 + $0x218] sm:$0xff]
        %v742 = vld [vmem:[#allocation5 + $0x220] sm:$0xff]
        %v743 = vld [vmem:[#allocation5 + $0x228] sm:$0xff]
        %v744 = vld [vmem:[#allocation5 + $0x230] sm:$0xff]
        %v745 = vld [vmem:[#allocation5 + $0x238] sm:$0xff]
        %v746 = vld [vmem:[#allocation5 + $0x240] sm:$0xff]
        %v747 = vld [vmem:[#allocation5 + $0x248] sm:$0xff]
        %v748 = vld [vmem:[#allocation5 + $0x250] sm:$0xff]
        %v749 = vld [vmem:[#allocation5 + $0x258] sm:$0xff]
        %v750 = vld [vmem:[#allocation5 + $0x260] sm:$0xff]
        %v751 = vld [vmem:[#allocation5 + $0x268] sm:$0xff]
        %v752 = vld [vmem:[#allocation5 + $0x270] sm:$0xff]
        %v753 = vld [vmem:[#allocation5 + $0x278] sm:$0xff]
        %v754 = vld [vmem:[#allocation5 + $0x280] sm:$0xff]
        %v755 = vld [vmem:[#allocation5 + $0x288] sm:$0xff]
        %v756 = vld [vmem:[#allocation5 + $0x290] sm:$0xff]
        %v757 = vld [vmem:[#allocation5 + $0x298] sm:$0xff]
        %v758 = vld [vmem:[#allocation5 + $0x2a0] sm:$0xff]
        %v759 = vld [vmem:[#allocation5 + $0x2a8] sm:$0xff]
        %v760 = vld [vmem:[#allocation5 + $0x2b0] sm:$0xff]
        %v761 = vld [vmem:[#allocation5 + $0x2b8] sm:$0xff]
        %v762 = vld [vmem:[#allocation5 + $0x2c0] sm:$0xff]
        %v763 = vld [vmem:[#allocation5 + $0x2c8] sm:$0xff]
        %v764 = vld [vmem:[#allocation5 + $0x2d0] sm:$0xff]
        %v765 = vld [vmem:[#allocation5 + $0x2d8] sm:$0xff]
        %v766 = vld [vmem:[#allocation5 + $0x2e0] sm:$0xff]
        %v767 = vld [vmem:[#allocation5 + $0x2e8] sm:$0xff]
        %v768 = vld [vmem:[#allocation5 + $0x2f0] sm:$0xff]
        %v769 = vld [vmem:[#allocation5 + $0x2f8] sm:$0xff]
        %v770 = vld [vmem:[#allocation5 + $0x300] sm:$0xff]
        %v771 = vld [vmem:[#allocation5 + $0x308] sm:$0xff]
        %v772 = vld [vmem:[#allocation5 + $0x310] sm:$0xff]
        %v773 = vld [vmem:[#allocation5 + $0x318] sm:$0xff]
        %v774 = vld [vmem:[#allocation5 + $0x320] sm:$0xff]
        %v775 = vld [vmem:[#allocation5 + $0x328] sm:$0xff]
        %v776 = vld [vmem:[#allocation5 + $0x330] sm:$0xff]
        %v777 = vld [vmem:[#allocation5 + $0x338] sm:$0xff]
        %v778 = vld [vmem:[#allocation5 + $0x340] sm:$0xff]
        %v779 = vld [vmem:[#allocation5 + $0x348] sm:$0xff]
        %v780 = vld [vmem:[#allocation5 + $0x350] sm:$0xff]
        %v781 = vld [vmem:[#allocation5 + $0x358] sm:$0xff]
        %v782 = vld [vmem:[#allocation5 + $0x360] sm:$0xff]
        %v783 = vld [vmem:[#allocation5 + $0x368] sm:$0xff]
        %v784 = vld [vmem:[#allocation5 + $0x370] sm:$0xff]
        %v785 = vld [vmem:[#allocation5 + $0x378] sm:$0xff]
        %v786 = vld [vmem:[#allocation5 + $0x380] sm:$0xff]
        %v787 = vld [vmem:[#allocation5 + $0x388] sm:$0xff]
        %v788 = vld [vmem:[#allocation5 + $0x390] sm:$0xff]
        %v789 = vld [vmem:[#allocation5 + $0x398] sm:$0xff]
        %v790 = vld [vmem:[#allocation5 + $0x3a0] sm:$0xff]
        %v791 = vld [vmem:[#allocation5 + $0x3a8] sm:$0xff]
        %v792 = vld [vmem:[#allocation5 + $0x3b0] sm:$0xff]
        %v793 = vld [vmem:[#allocation5 + $0x3b8] sm:$0xff]
        %v794 = vld [vmem:[#allocation5 + $0x3c0] sm:$0xff]
        %v795 = vld [vmem:[#allocation5 + $0x3c8] sm:$0xff]
        %v796 = vld [vmem:[#allocation5 + $0x3d0] sm:$0xff]
        %v797 = vld [vmem:[#allocation5 + $0x3d8] sm:$0xff]
        %v798 = vld [vmem:[#allocation5 + $0x3e0] sm:$0xff]
        %v799 = vld [vmem:[#allocation5 + $0x3e8] sm:$0xff]
        %v800 = vld [vmem:[#allocation5 + $0x3f0] sm:$0xff]
        %v801 = vld [vmem:[#allocation5 + $0x3f8] sm:$0xff]
        %v802 = vld [vmem:[#allocation5 + $0x400] sm:$0xff]
        %v803 = vld [vmem:[#allocation5 + $0x408] sm:$0xff]
        %v804 = vld [vmem:[#allocation5 + $0x410] sm:$0xff]
        %v805 = vld [vmem:[#allocation5 + $0x418] sm:$0xff]
        %v806 = vld [vmem:[#allocation5 + $0x420] sm:$0xff]
        %v807 = vld [vmem:[#allocation5 + $0x428] sm:$0xff]
        %v808 = vld [vmem:[#allocation5 + $0x430] sm:$0xff]
        %v809 = vld [vmem:[#allocation5 + $0x438] sm:$0xff]
        %v810 = vld [vmem:[#allocation5 + $0x440] sm:$0xff]
        %v811 = vld [vmem:[#allocation5 + $0x448] sm:$0xff]
        %v812 = vld [vmem:[#allocation5 + $0x450] sm:$0xff]
        %v813 = vld [vmem:[#allocation5 + $0x458] sm:$0xff]
        %v814 = vld [vmem:[#allocation5 + $0x460] sm:$0xff]
        %v815 = vld [vmem:[#allocation5 + $0x468] sm:$0xff]
        %v816 = vld [vmem:[#allocation5 + $0x470] sm:$0xff]
        %v817 = vld [vmem:[#allocation5 + $0x478] sm:$0xff]
        %v818 = vld [vmem:[#allocation5 + $0x480] sm:$0xff]
        %v819 = vld [vmem:[#allocation5 + $0x488] sm:$0xff]
        %v820 = vld [vmem:[#allocation5 + $0x490] sm:$0xff]
        %v821 = vld [vmem:[#allocation5 + $0x498] sm:$0xff]
        %v822 = vld [vmem:[#allocation5 + $0x4a0] sm:$0xff]
        %v823 = vld [vmem:[#allocation5 + $0x4a8] sm:$0xff]
        %v824 = vld [vmem:[#allocation5 + $0x4b0] sm:$0xff]
        %v825 = vld [vmem:[#allocation5 + $0x4b8] sm:$0xff]
        %v826 = vld [vmem:[#allocation5 + $0x4c0] sm:$0xff]
        %v827 = vld [vmem:[#allocation5 + $0x4c8] sm:$0xff]
        %v828 = vld [vmem:[#allocation5 + $0x4d0] sm:$0xff]
        %v829 = vld [vmem:[#allocation5 + $0x4d8] sm:$0xff]
        %v830 = vld [vmem:[#allocation5 + $0x4e0] sm:$0xff]
        %v831 = vld [vmem:[#allocation5 + $0x4e8] sm:$0xff]
        %v832 = vld [vmem:[#allocation5 + $0x4f0] sm:$0xff]
        %v833 = vld [vmem:[#allocation5 + $0x4f8] sm:$0xff]
        %v834 = vld [vmem:[#allocation5 + $0x500] sm:$0xff]
        %v835 = vld [vmem:[#allocation5 + $0x508] sm:$0xff]
        %v836 = vld [vmem:[#allocation5 + $0x510] sm:$0xff]
        %v837 = vld [vmem:[#allocation5 + $0x518] sm:$0xff]
        %v838 = vld [vmem:[#allocation5 + $0x520] sm:$0xff]
        %v839 = vld [vmem:[#allocation5 + $0x528] sm:$0xff]
        %v840 = vld [vmem:[#allocation5 + $0x530] sm:$0xff]
        %v841 = vld [vmem:[#allocation5 + $0x538] sm:$0xff]
        %v842 = vld [vmem:[#allocation5 + $0x540] sm:$0xff]
        %v843 = vld [vmem:[#allocation5 + $0x548] sm:$0xff]
        %v844 = vld [vmem:[#allocation5 + $0x550] sm:$0xff]
        %v845 = vld [vmem:[#allocation5 + $0x558] sm:$0xff]
        %v846 = vld [vmem:[#allocation5 + $0x560] sm:$0xff]
        %v847 = vld [vmem:[#allocation5 + $0x568] sm:$0xff]
        %v848 = vld [vmem:[#allocation5 + $0x570] sm:$0xff]
        %v849 = vld [vmem:[#allocation5 + $0x578] sm:$0xff]
        %v850 = vld [vmem:[#allocation5 + $0x580] sm:$0xff]
        %v851 = vld [vmem:[#allocation5 + $0x588] sm:$0xff]
        %v852 = vld [vmem:[#allocation5 + $0x590] sm:$0xff]
        %v853 = vld [vmem:[#allocation5 + $0x598] sm:$0xff]
        %v854 = vld [vmem:[#allocation5 + $0x5a0] sm:$0xff]
        %v855 = vld [vmem:[#allocation5 + $0x5a8] sm:$0xff]
        %v856 = vld [vmem:[#allocation5 + $0x5b0] sm:$0xff]
        %v857 = vld [vmem:[#allocation5 + $0x5b8] sm:$0xff]
        %v858 = vld [vmem:[#allocation5 + $0x5c0] sm:$0xff]
        %v859 = vld [vmem:[#allocation5 + $0x5c8] sm:$0xff]
        %v860 = vld [vmem:[#allocation5 + $0x5d0] sm:$0xff]
        %v861 = vld [vmem:[#allocation5 + $0x5d8] sm:$0xff]
        %v862 = vld [vmem:[#allocation5 + $0x5e0] sm:$0xff]
        %v863 = vld [vmem:[#allocation5 + $0x5e8] sm:$0xff]
        %v864 = vld [vmem:[#allocation5 + $0x5f0] sm:$0xff]
        %v865 = vld [vmem:[#allocation5 + $0x5f8] sm:$0xff]
        %v866 = vld [vmem:[#allocation5 + $0x600] sm:$0xff]
        %v867 = vld [vmem:[#allocation5 + $0x608] sm:$0xff]
        %v868 = vld [vmem:[#allocation5 + $0x610] sm:$0xff]
        %v869 = vld [vmem:[#allocation5 + $0x618] sm:$0xff]
        %v870 = vld [vmem:[#allocation5 + $0x620] sm:$0xff]
        %v871 = vld [vmem:[#allocation5 + $0x628] sm:$0xff]
        %v872 = vld [vmem:[#allocation5 + $0x630] sm:$0xff]
        %v873 = vld [vmem:[#allocation5 + $0x638] sm:$0xff]
        %v874 = vld [vmem:[#allocation5 + $0x640] sm:$0xff]
        %v875 = vld [vmem:[#allocation5 + $0x648] sm:$0xff]
        %v876 = vld [vmem:[#allocation5 + $0x650] sm:$0xff]
        %v877 = vld [vmem:[#allocation5 + $0x658] sm:$0xff]
        %v878 = vld [vmem:[#allocation5 + $0x660] sm:$0xff]
        %v879 = vld [vmem:[#allocation5 + $0x668] sm:$0xff]
        %v880 = vld [vmem:[#allocation5 + $0x670] sm:$0xff]
        %v881 = vld [vmem:[#allocation5 + $0x678] sm:$0xff]
        %v882 = vld [vmem:[#allocation5 + $0x680] sm:$0xff]
        %v883 = vld [vmem:[#allocation5 + $0x688] sm:$0xff]
        %v884 = vld [vmem:[#allocation5 + $0x690] sm:$0xff]
        %v885 = vld [vmem:[#allocation5 + $0x698] sm:$0xff]
        %v886 = vld [vmem:[#allocation5 + $0x6a0] sm:$0xff]
        %v887 = vld [vmem:[#allocation5 + $0x6a8] sm:$0xff]
        %v888 = vld [vmem:[#allocation5 + $0x6b0] sm:$0xff]
        %v889 = vld [vmem:[#allocation5 + $0x6b8] sm:$0xff]
        %v890 = vld [vmem:[#allocation5 + $0x6c0] sm:$0xff]
        %v891 = vld [vmem:[#allocation5 + $0x6c8] sm:$0xff]
        %v892 = vld [vmem:[#allocation5 + $0x6d0] sm:$0xff]
        %v893 = vld [vmem:[#allocation5 + $0x6d8] sm:$0xff]
        %v894 = vld [vmem:[#allocation5 + $0x6e0] sm:$0xff]
        %v895 = vld [vmem:[#allocation5 + $0x6e8] sm:$0xff]
        %v896 = vld [vmem:[#allocation5 + $0x6f0] sm:$0xff]
        %v897 = vld [vmem:[#allocation5 + $0x6f8] sm:$0xff]
        %v898 = vld [vmem:[#allocation5 + $0x700] sm:$0xff]
        %v899 = vld [vmem:[#allocation5 + $0x708] sm:$0xff]
        %v900 = vld [vmem:[#allocation5 + $0x710] sm:$0xff]
        %v901 = vld [vmem:[#allocation5 + $0x718] sm:$0xff]
        %v902 = vld [vmem:[#allocation5 + $0x720] sm:$0xff]
        %v903 = vld [vmem:[#allocation5 + $0x728] sm:$0xff]
        %v904 = vld [vmem:[#allocation5 + $0x730] sm:$0xff]
        %v905 = vld [vmem:[#allocation5 + $0x738] sm:$0xff]
        %v906 = vld [vmem:[#allocation5 + $0x740] sm:$0xff]
        %v907 = vld [vmem:[#allocation5 + $0x748] sm:$0xff]
        %v908 = vld [vmem:[#allocation5 + $0x750] sm:$0xff]
        %v909 = vld [vmem:[#allocation5 + $0x758] sm:$0xff]
        %v910 = vld [vmem:[#allocation5 + $0x760] sm:$0xff]
        %v911 = vld [vmem:[#allocation5 + $0x768] sm:$0xff]
        %v912 = vld [vmem:[#allocation5 + $0x770] sm:$0xff]
        %v913 = vld [vmem:[#allocation5 + $0x778] sm:$0xff]
        %v914 = vld [vmem:[#allocation5 + $0x780] sm:$0xff]
        %v915 = vld [vmem:[#allocation5 + $0x788] sm:$0xff]
        %v916 = vld [vmem:[#allocation5 + $0x790] sm:$0xff]
        %v917 = vld [vmem:[#allocation5 + $0x798] sm:$0xff]
        %v918 = vld [vmem:[#allocation5 + $0x7a0] sm:$0xff]
        %v919 = vld [vmem:[#allocation5 + $0x7a8] sm:$0xff]
        %v920 = vld [vmem:[#allocation5 + $0x7b0] sm:$0xff]
        %v921 = vld [vmem:[#allocation5 + $0x7b8] sm:$0xff]
        %v922 = vld [vmem:[#allocation5 + $0x7c0] sm:$0xff]
        %v923 = vld [vmem:[#allocation5 + $0x7c8] sm:$0xff]
        %v924 = vld [vmem:[#allocation5 + $0x7d0] sm:$0xff]
        %v925 = vld [vmem:[#allocation5 + $0x7d8] sm:$0xff]
        %v926 = vld [vmem:[#allocation5 + $0x7e0] sm:$0xff]
        %v927 = vld [vmem:[#allocation5 + $0x7e8] sm:$0xff]
        %v928 = vld [vmem:[#allocation5 + $0x7f0] sm:$0xff]
        %v929 = vld [vmem:[#allocation5 + $0x7f8] sm:$0xff]
        %v930 = vld [vmem:[#allocation7] sm:$0xf]
        %v932 = vperm.slane %v930, 0
        %v933 = vperm.slane %v930, 1
        %v934 = vperm.slane %v930, 2
        %v935 = vperm.slane %v930, 3
        %v1196 = vunpack.c.l.b16 %v674
        %v1197 = vunpack.c.h.b16 %v674
        %v1198 = vunpack.c.l.b16 %v675
        %v1199 = vunpack.c.h.b16 %v675
        %v1200 = vunpack.c.l.b16 %v676
        %v1201 = vunpack.c.h.b16 %v676
        %v1202 = vunpack.c.l.b16 %v677
        %v1203 = vunpack.c.h.b16 %v677
        %v1204 = vunpack.c.l.b16 %v678
        %v1205 = vunpack.c.h.b16 %v678
        %v1206 = vunpack.c.l.b16 %v679
        %v1207 = vunpack.c.h.b16 %v679
        %v1208 = vunpack.c.l.b16 %v680
        %v1209 = vunpack.c.h.b16 %v680
        %v1210 = vunpack.c.l.b16 %v681
        %v1211 = vunpack.c.h.b16 %v681
        %v1212 = vunpack.c.l.b16 %v682
        %v1213 = vunpack.c.h.b16 %v682
        %v1214 = vunpack.c.l.b16 %v683
        %v1215 = vunpack.c.h.b16 %v683
        %v1216 = vunpack.c.l.b16 %v684
        %v1217 = vunpack.c.h.b16 %v684
        %v1218 = vunpack.c.l.b16 %v685
        %v1219 = vunpack.c.h.b16 %v685
        %v1220 = vunpack.c.l.b16 %v686
        %v1221 = vunpack.c.h.b16 %v686
        %v1222 = vunpack.c.l.b16 %v687
        %v1223 = vunpack.c.h.b16 %v687
        %v1224 = vunpack.c.l.b16 %v688
        %v1225 = vunpack.c.h.b16 %v688
        %v1226 = vunpack.c.l.b16 %v689
        %v1227 = vunpack.c.h.b16 %v689
        %v1228 = vunpack.c.l.b16 %v690
        %v1229 = vunpack.c.h.b16 %v690
        %v1230 = vunpack.c.l.b16 %v691
        %v1231 = vunpack.c.h.b16 %v691
        %v1232 = vunpack.c.l.b16 %v692
        %v1233 = vunpack.c.h.b16 %v692
        %v1234 = vunpack.c.l.b16 %v693
        %v1235 = vunpack.c.h.b16 %v693
        %v1236 = vunpack.c.l.b16 %v694
        %v1237 = vunpack.c.h.b16 %v694
        %v1238 = vunpack.c.l.b16 %v695
        %v1239 = vunpack.c.h.b16 %v695
        %v1240 = vunpack.c.l.b16 %v696
        %v1241 = vunpack.c.h.b16 %v696
        %v1242 = vunpack.c.l.b16 %v697
        %v1243 = vunpack.c.h.b16 %v697
        %v1244 = vunpack.c.l.b16 %v698
        %v1245 = vunpack.c.h.b16 %v698
        %v1246 = vunpack.c.l.b16 %v699
        %v1247 = vunpack.c.h.b16 %v699
        %v1248 = vunpack.c.l.b16 %v700
        %v1249 = vunpack.c.h.b16 %v700
        %v1250 = vunpack.c.l.b16 %v701
        %v1251 = vunpack.c.h.b16 %v701
        %v1252 = vunpack.c.l.b16 %v702
        %v1253 = vunpack.c.h.b16 %v702
        %v1254 = vunpack.c.l.b16 %v703
        %v1255 = vunpack.c.h.b16 %v703
        %v1256 = vunpack.c.l.b16 %v704
        %v1257 = vunpack.c.h.b16 %v704
        %v1258 = vunpack.c.l.b16 %v705
        %v1259 = vunpack.c.h.b16 %v705
        %v1260 = vunpack.c.l.b16 %v706
        %v1261 = vunpack.c.h.b16 %v706
        %v1262 = vunpack.c.l.b16 %v707
        %v1263 = vunpack.c.h.b16 %v707
        %v1264 = vunpack.c.l.b16 %v708
        %v1265 = vunpack.c.h.b16 %v708
        %v1266 = vunpack.c.l.b16 %v709
        %v1267 = vunpack.c.h.b16 %v709
        %v1268 = vunpack.c.l.b16 %v710
        %v1269 = vunpack.c.h.b16 %v710
        %v1270 = vunpack.c.l.b16 %v711
        %v1271 = vunpack.c.h.b16 %v711
        %v1272 = vunpack.c.l.b16 %v712
        %v1273 = vunpack.c.h.b16 %v712
        %v1274 = vunpack.c.l.b16 %v713
        %v1275 = vunpack.c.h.b16 %v713
        %v1276 = vunpack.c.l.b16 %v714
        %v1277 = vunpack.c.h.b16 %v714
        %v1278 = vunpack.c.l.b16 %v715
        %v1279 = vunpack.c.h.b16 %v715
        %v1280 = vunpack.c.l.b16 %v716
        %v1281 = vunpack.c.h.b16 %v716
        %v1282 = vunpack.c.l.b16 %v717
        %v1283 = vunpack.c.h.b16 %v717
        %v1284 = vunpack.c.l.b16 %v718
        %v1285 = vunpack.c.h.b16 %v718
        %v1286 = vunpack.c.l.b16 %v719
        %v1287 = vunpack.c.h.b16 %v719
        %v1288 = vunpack.c.l.b16 %v720
        %v1289 = vunpack.c.h.b16 %v720
        %v1290 = vunpack.c.l.b16 %v721
        %v1291 = vunpack.c.h.b16 %v721
        %v1292 = vunpack.c.l.b16 %v722
        %v1293 = vunpack.c.h.b16 %v722
        %v1294 = vunpack.c.l.b16 %v723
        %v1295 = vunpack.c.h.b16 %v723
        %v1296 = vunpack.c.l.b16 %v724
        %v1297 = vunpack.c.h.b16 %v724
        %v1298 = vunpack.c.l.b16 %v725
        %v1299 = vunpack.c.h.b16 %v725
        %v1300 = vunpack.c.l.b16 %v726
        %v1301 = vunpack.c.h.b16 %v726
        %v1302 = vunpack.c.l.b16 %v727
        %v1303 = vunpack.c.h.b16 %v727
        %v1304 = vunpack.c.l.b16 %v728
        %v1305 = vunpack.c.h.b16 %v728
        %v1306 = vunpack.c.l.b16 %v729
        %v1307 = vunpack.c.h.b16 %v729
        %v1308 = vunpack.c.l.b16 %v730
        %v1309 = vunpack.c.h.b16 %v730
        %v1310 = vunpack.c.l.b16 %v731
        %v1311 = vunpack.c.h.b16 %v731
        %v1312 = vunpack.c.l.b16 %v732
        %v1313 = vunpack.c.h.b16 %v732
        %v1314 = vunpack.c.l.b16 %v733
        %v1315 = vunpack.c.h.b16 %v733
        %v1316 = vunpack.c.l.b16 %v734
        %v1317 = vunpack.c.h.b16 %v734
        %v1318 = vunpack.c.l.b16 %v735
        %v1319 = vunpack.c.h.b16 %v735
        %v1320 = vunpack.c.l.b16 %v736
        %v1321 = vunpack.c.h.b16 %v736
        %v1322 = vunpack.c.l.b16 %v737
        %v1323 = vunpack.c.h.b16 %v737
        %v1324 = vunpack.c.l.b16 %v738
        %v1325 = vunpack.c.h.b16 %v738
        %v1326 = vunpack.c.l.b16 %v739
        %v1327 = vunpack.c.h.b16 %v739
        %v1328 = vunpack.c.l.b16 %v740
        %v1329 = vunpack.c.h.b16 %v740
        %v1330 = vunpack.c.l.b16 %v741
        %v1331 = vunpack.c.h.b16 %v741
        %v1332 = vunpack.c.l.b16 %v742
        %v1333 = vunpack.c.h.b16 %v742
        %v1334 = vunpack.c.l.b16 %v743
        %v1335 = vunpack.c.h.b16 %v743
        %v1336 = vunpack.c.l.b16 %v744
        %v1337 = vunpack.c.h.b16 %v744
        %v1338 = vunpack.c.l.b16 %v745
        %v1339 = vunpack.c.h.b16 %v745
        %v1340 = vunpack.c.l.b16 %v746
        %v1341 = vunpack.c.h.b16 %v746
        %v1342 = vunpack.c.l.b16 %v747
        %v1343 = vunpack.c.h.b16 %v747
        %v1344 = vunpack.c.l.b16 %v748
        %v1345 = vunpack.c.h.b16 %v748
        %v1346 = vunpack.c.l.b16 %v749
        %v1347 = vunpack.c.h.b16 %v749
        %v1348 = vunpack.c.l.b16 %v750
        %v1349 = vunpack.c.h.b16 %v750
        %v1350 = vunpack.c.l.b16 %v751
        %v1351 = vunpack.c.h.b16 %v751
        %v1352 = vunpack.c.l.b16 %v752
        %v1353 = vunpack.c.h.b16 %v752
        %v1354 = vunpack.c.l.b16 %v753
        %v1355 = vunpack.c.h.b16 %v753
        %v1356 = vunpack.c.l.b16 %v754
        %v1357 = vunpack.c.h.b16 %v754
        %v1358 = vunpack.c.l.b16 %v755
        %v1359 = vunpack.c.h.b16 %v755
        %v1360 = vunpack.c.l.b16 %v756
        %v1361 = vunpack.c.h.b16 %v756
        %v1362 = vunpack.c.l.b16 %v757
        %v1363 = vunpack.c.h.b16 %v757
        %v1364 = vunpack.c.l.b16 %v758
        %v1365 = vunpack.c.h.b16 %v758
        %v1366 = vunpack.c.l.b16 %v759
        %v1367 = vunpack.c.h.b16 %v759
        %v1368 = vunpack.c.l.b16 %v760
        %v1369 = vunpack.c.h.b16 %v760
        %v1370 = vunpack.c.l.b16 %v761
        %v1371 = vunpack.c.h.b16 %v761
        %v1372 = vunpack.c.l.b16 %v762
        %v1373 = vunpack.c.h.b16 %v762
        %v1374 = vunpack.c.l.b16 %v763
        %v1375 = vunpack.c.h.b16 %v763
        %v1376 = vunpack.c.l.b16 %v764
        %v1377 = vunpack.c.h.b16 %v764
        %v1378 = vunpack.c.l.b16 %v765
        %v1379 = vunpack.c.h.b16 %v765
        %v1380 = vunpack.c.l.b16 %v766
        %v1381 = vunpack.c.h.b16 %v766
        %v1382 = vunpack.c.l.b16 %v767
        %v1383 = vunpack.c.h.b16 %v767
        %v1384 = vunpack.c.l.b16 %v768
        %v1385 = vunpack.c.h.b16 %v768
        %v1386 = vunpack.c.l.b16 %v769
        %v1387 = vunpack.c.h.b16 %v769
        %v1388 = vunpack.c.l.b16 %v770
        %v1389 = vunpack.c.h.b16 %v770
        %v1390 = vunpack.c.l.b16 %v771
        %v1391 = vunpack.c.h.b16 %v771
        %v1392 = vunpack.c.l.b16 %v772
        %v1393 = vunpack.c.h.b16 %v772
        %v1394 = vunpack.c.l.b16 %v773
        %v1395 = vunpack.c.h.b16 %v773
        %v1396 = vunpack.c.l.b16 %v774
        %v1397 = vunpack.c.h.b16 %v774
        %v1398 = vunpack.c.l.b16 %v775
        %v1399 = vunpack.c.h.b16 %v775
        %v1400 = vunpack.c.l.b16 %v776
        %v1401 = vunpack.c.h.b16 %v776
        %v1402 = vunpack.c.l.b16 %v777
        %v1403 = vunpack.c.h.b16 %v777
        %v1404 = vunpack.c.l.b16 %v778
        %v1405 = vunpack.c.h.b16 %v778
        %v1406 = vunpack.c.l.b16 %v779
        %v1407 = vunpack.c.h.b16 %v779
        %v1408 = vunpack.c.l.b16 %v780
        %v1409 = vunpack.c.h.b16 %v780
        %v1410 = vunpack.c.l.b16 %v781
        %v1411 = vunpack.c.h.b16 %v781
        %v1412 = vunpack.c.l.b16 %v782
        %v1413 = vunpack.c.h.b16 %v782
        %v1414 = vunpack.c.l.b16 %v783
        %v1415 = vunpack.c.h.b16 %v783
        %v1416 = vunpack.c.l.b16 %v784
        %v1417 = vunpack.c.h.b16 %v784
        %v1418 = vunpack.c.l.b16 %v785
        %v1419 = vunpack.c.h.b16 %v785
        %v1420 = vunpack.c.l.b16 %v786
        %v1421 = vunpack.c.h.b16 %v786
        %v1422 = vunpack.c.l.b16 %v787
        %v1423 = vunpack.c.h.b16 %v787
        %v1424 = vunpack.c.l.b16 %v788
        %v1425 = vunpack.c.h.b16 %v788
        %v1426 = vunpack.c.l.b16 %v789
        %v1427 = vunpack.c.h.b16 %v789
        %v1428 = vunpack.c.l.b16 %v790
        %v1429 = vunpack.c.h.b16 %v790
        %v1430 = vunpack.c.l.b16 %v791
        %v1431 = vunpack.c.h.b16 %v791
        %v1432 = vunpack.c.l.b16 %v792
        %v1433 = vunpack.c.h.b16 %v792
        %v1434 = vunpack.c.l.b16 %v793
        %v1435 = vunpack.c.h.b16 %v793
        %v1436 = vunpack.c.l.b16 %v794
        %v1437 = vunpack.c.h.b16 %v794
        %v1438 = vunpack.c.l.b16 %v795
        %v1439 = vunpack.c.h.b16 %v795
        %v1440 = vunpack.c.l.b16 %v796
        %v1441 = vunpack.c.h.b16 %v796
        %v1442 = vunpack.c.l.b16 %v797
        %v1443 = vunpack.c.h.b16 %v797
        %v1444 = vunpack.c.l.b16 %v798
        %v1445 = vunpack.c.h.b16 %v798
        %v1446 = vunpack.c.l.b16 %v799
        %v1447 = vunpack.c.h.b16 %v799
        %v1448 = vunpack.c.l.b16 %v800
        %v1449 = vunpack.c.h.b16 %v800
        %v1450 = vunpack.c.l.b16 %v801
        %v1451 = vunpack.c.h.b16 %v801
        %v1452 = vunpack.c.l.b16 %v802
        %v1453 = vunpack.c.h.b16 %v802
        %v1454 = vunpack.c.l.b16 %v803
        %v1455 = vunpack.c.h.b16 %v803
        %v1456 = vunpack.c.l.b16 %v804
        %v1457 = vunpack.c.h.b16 %v804
        %v1458 = vunpack.c.l.b16 %v805
        %v1459 = vunpack.c.h.b16 %v805
        %v1460 = vunpack.c.l.b16 %v806
        %v1461 = vunpack.c.h.b16 %v806
        %v1462 = vunpack.c.l.b16 %v807
        %v1463 = vunpack.c.h.b16 %v807
        %v1464 = vunpack.c.l.b16 %v808
        %v1465 = vunpack.c.h.b16 %v808
        %v1466 = vunpack.c.l.b16 %v809
        %v1467 = vunpack.c.h.b16 %v809
        %v1468 = vunpack.c.l.b16 %v810
        %v1469 = vunpack.c.h.b16 %v810
        %v1470 = vunpack.c.l.b16 %v811
        %v1471 = vunpack.c.h.b16 %v811
        %v1472 = vunpack.c.l.b16 %v812
        %v1473 = vunpack.c.h.b16 %v812
        %v1474 = vunpack.c.l.b16 %v813
        %v1475 = vunpack.c.h.b16 %v813
        %v1476 = vunpack.c.l.b16 %v814
        %v1477 = vunpack.c.h.b16 %v814
        %v1478 = vunpack.c.l.b16 %v815
        %v1479 = vunpack.c.h.b16 %v815
        %v1480 = vunpack.c.l.b16 %v816
        %v1481 = vunpack.c.h.b16 %v816
        %v1482 = vunpack.c.l.b16 %v817
        %v1483 = vunpack.c.h.b16 %v817
        %v1484 = vunpack.c.l.b16 %v818
        %v1485 = vunpack.c.h.b16 %v818
        %v1486 = vunpack.c.l.b16 %v819
        %v1487 = vunpack.c.h.b16 %v819
        %v1488 = vunpack.c.l.b16 %v820
        %v1489 = vunpack.c.h.b16 %v820
        %v1490 = vunpack.c.l.b16 %v821
        %v1491 = vunpack.c.h.b16 %v821
        %v1492 = vunpack.c.l.b16 %v822
        %v1493 = vunpack.c.h.b16 %v822
        %v1494 = vunpack.c.l.b16 %v823
        %v1495 = vunpack.c.h.b16 %v823
        %v1496 = vunpack.c.l.b16 %v824
        %v1497 = vunpack.c.h.b16 %v824
        %v1498 = vunpack.c.l.b16 %v825
        %v1499 = vunpack.c.h.b16 %v825
        %v1500 = vunpack.c.l.b16 %v826
        %v1501 = vunpack.c.h.b16 %v826
        %v1502 = vunpack.c.l.b16 %v827
        %v1503 = vunpack.c.h.b16 %v827
        %v1504 = vunpack.c.l.b16 %v828
        %v1505 = vunpack.c.h.b16 %v828
        %v1506 = vunpack.c.l.b16 %v829
        %v1507 = vunpack.c.h.b16 %v829
        %v1508 = vunpack.c.l.b16 %v830
        %v1509 = vunpack.c.h.b16 %v830
        %v1510 = vunpack.c.l.b16 %v831
        %v1511 = vunpack.c.h.b16 %v831
        %v1512 = vunpack.c.l.b16 %v832
        %v1513 = vunpack.c.h.b16 %v832
        %v1514 = vunpack.c.l.b16 %v833
        %v1515 = vunpack.c.h.b16 %v833
        %v1516 = vunpack.c.l.b16 %v834
        %v1517 = vunpack.c.h.b16 %v834
        %v1518 = vunpack.c.l.b16 %v835
        %v1519 = vunpack.c.h.b16 %v835
        %v1520 = vunpack.c.l.b16 %v836
        %v1521 = vunpack.c.h.b16 %v836
        %v1522 = vunpack.c.l.b16 %v837
        %v1523 = vunpack.c.h.b16 %v837
        %v1524 = vunpack.c.l.b16 %v838
        %v1525 = vunpack.c.h.b16 %v838
        %v1526 = vunpack.c.l.b16 %v839
        %v1527 = vunpack.c.h.b16 %v839
        %v1528 = vunpack.c.l.b16 %v840
        %v1529 = vunpack.c.h.b16 %v840
        %v1530 = vunpack.c.l.b16 %v841
        %v1531 = vunpack.c.h.b16 %v841
        %v1532 = vunpack.c.l.b16 %v842
        %v1533 = vunpack.c.h.b16 %v842
        %v1534 = vunpack.c.l.b16 %v843
        %v1535 = vunpack.c.h.b16 %v843
        %v1536 = vunpack.c.l.b16 %v844
        %v1537 = vunpack.c.h.b16 %v844
        %v1538 = vunpack.c.l.b16 %v845
        %v1539 = vunpack.c.h.b16 %v845
        %v1540 = vunpack.c.l.b16 %v846
        %v1541 = vunpack.c.h.b16 %v846
        %v1542 = vunpack.c.l.b16 %v847
        %v1543 = vunpack.c.h.b16 %v847
        %v1544 = vunpack.c.l.b16 %v848
        %v1545 = vunpack.c.h.b16 %v848
        %v1546 = vunpack.c.l.b16 %v849
        %v1547 = vunpack.c.h.b16 %v849
        %v1548 = vunpack.c.l.b16 %v850
        %v1549 = vunpack.c.h.b16 %v850
        %v1550 = vunpack.c.l.b16 %v851
        %v1551 = vunpack.c.h.b16 %v851
        %v1552 = vunpack.c.l.b16 %v852
        %v1553 = vunpack.c.h.b16 %v852
        %v1554 = vunpack.c.l.b16 %v853
        %v1555 = vunpack.c.h.b16 %v853
        %v1556 = vunpack.c.l.b16 %v854
        %v1557 = vunpack.c.h.b16 %v854
        %v1558 = vunpack.c.l.b16 %v855
        %v1559 = vunpack.c.h.b16 %v855
        %v1560 = vunpack.c.l.b16 %v856
        %v1561 = vunpack.c.h.b16 %v856
        %v1562 = vunpack.c.l.b16 %v857
        %v1563 = vunpack.c.h.b16 %v857
        %v1564 = vunpack.c.l.b16 %v858
        %v1565 = vunpack.c.h.b16 %v858
        %v1566 = vunpack.c.l.b16 %v859
        %v1567 = vunpack.c.h.b16 %v859
        %v1568 = vunpack.c.l.b16 %v860
        %v1569 = vunpack.c.h.b16 %v860
        %v1570 = vunpack.c.l.b16 %v861
        %v1571 = vunpack.c.h.b16 %v861
        %v1572 = vunpack.c.l.b16 %v862
        %v1573 = vunpack.c.h.b16 %v862
        %v1574 = vunpack.c.l.b16 %v863
        %v1575 = vunpack.c.h.b16 %v863
        %v1576 = vunpack.c.l.b16 %v864
        %v1577 = vunpack.c.h.b16 %v864
        %v1578 = vunpack.c.l.b16 %v865
        %v1579 = vunpack.c.h.b16 %v865
        %v1580 = vunpack.c.l.b16 %v866
        %v1581 = vunpack.c.h.b16 %v866
        %v1582 = vunpack.c.l.b16 %v867
        %v1583 = vunpack.c.h.b16 %v867
        %v1584 = vunpack.c.l.b16 %v868
        %v1585 = vunpack.c.h.b16 %v868
        %v1586 = vunpack.c.l.b16 %v869
        %v1587 = vunpack.c.h.b16 %v869
        %v1588 = vunpack.c.l.b16 %v870
        %v1589 = vunpack.c.h.b16 %v870
        %v1590 = vunpack.c.l.b16 %v871
        %v1591 = vunpack.c.h.b16 %v871
        %v1592 = vunpack.c.l.b16 %v872
        %v1593 = vunpack.c.h.b16 %v872
        %v1594 = vunpack.c.l.b16 %v873
        %v1595 = vunpack.c.h.b16 %v873
        %v1596 = vunpack.c.l.b16 %v874
        %v1597 = vunpack.c.h.b16 %v874
        %v1598 = vunpack.c.l.b16 %v875
        %v1599 = vunpack.c.h.b16 %v875
        %v1600 = vunpack.c.l.b16 %v876
        %v1601 = vunpack.c.h.b16 %v876
        %v1602 = vunpack.c.l.b16 %v877
        %v1603 = vunpack.c.h.b16 %v877
        %v1604 = vunpack.c.l.b16 %v878
        %v1605 = vunpack.c.h.b16 %v878
        %v1606 = vunpack.c.l.b16 %v879
        %v1607 = vunpack.c.h.b16 %v879
        %v1608 = vunpack.c.l.b16 %v880
        %v1609 = vunpack.c.h.b16 %v880
        %v1610 = vunpack.c.l.b16 %v881
        %v1611 = vunpack.c.h.b16 %v881
        %v1612 = vunpack.c.l.b16 %v882
        %v1613 = vunpack.c.h.b16 %v882
        %v1614 = vunpack.c.l.b16 %v883
        %v1615 = vunpack.c.h.b16 %v883
        %v1616 = vunpack.c.l.b16 %v884
        %v1617 = vunpack.c.h.b16 %v884
        %v1618 = vunpack.c.l.b16 %v885
        %v1619 = vunpack.c.h.b16 %v885
        %v1620 = vunpack.c.l.b16 %v886
        %v1621 = vunpack.c.h.b16 %v886
        %v1622 = vunpack.c.l.b16 %v887
        %v1623 = vunpack.c.h.b16 %v887
        %v1624 = vunpack.c.l.b16 %v888
        %v1625 = vunpack.c.h.b16 %v888
        %v1626 = vunpack.c.l.b16 %v889
        %v1627 = vunpack.c.h.b16 %v889
        %v1628 = vunpack.c.l.b16 %v890
        %v1629 = vunpack.c.h.b16 %v890
        %v1630 = vunpack.c.l.b16 %v891
        %v1631 = vunpack.c.h.b16 %v891
        %v1632 = vunpack.c.l.b16 %v892
        %v1633 = vunpack.c.h.b16 %v892
        %v1634 = vunpack.c.l.b16 %v893
        %v1635 = vunpack.c.h.b16 %v893
        %v1636 = vunpack.c.l.b16 %v894
        %v1637 = vunpack.c.h.b16 %v894
        %v1638 = vunpack.c.l.b16 %v895
        %v1639 = vunpack.c.h.b16 %v895
        %v1640 = vunpack.c.l.b16 %v896
        %v1641 = vunpack.c.h.b16 %v896
        %v1642 = vunpack.c.l.b16 %v897
        %v1643 = vunpack.c.h.b16 %v897
        %v1644 = vunpack.c.l.b16 %v898
        %v1645 = vunpack.c.h.b16 %v898
        %v1646 = vunpack.c.l.b16 %v899
        %v1647 = vunpack.c.h.b16 %v899
        %v1648 = vunpack.c.l.b16 %v900
        %v1649 = vunpack.c.h.b16 %v900
        %v1650 = vunpack.c.l.b16 %v901
        %v1651 = vunpack.c.h.b16 %v901
        %v1652 = vunpack.c.l.b16 %v902
        %v1653 = vunpack.c.h.b16 %v902
        %v1654 = vunpack.c.l.b16 %v903
        %v1655 = vunpack.c.h.b16 %v903
        %v1656 = vunpack.c.l.b16 %v904
        %v1657 = vunpack.c.h.b16 %v904
        %v1658 = vunpack.c.l.b16 %v905
        %v1659 = vunpack.c.h.b16 %v905
        %v1660 = vunpack.c.l.b16 %v906
        %v1661 = vunpack.c.h.b16 %v906
        %v1662 = vunpack.c.l.b16 %v907
        %v1663 = vunpack.c.h.b16 %v907
        %v1664 = vunpack.c.l.b16 %v908
        %v1665 = vunpack.c.h.b16 %v908
        %v1666 = vunpack.c.l.b16 %v909
        %v1667 = vunpack.c.h.b16 %v909
        %v1668 = vunpack.c.l.b16 %v910
        %v1669 = vunpack.c.h.b16 %v910
        %v1670 = vunpack.c.l.b16 %v911
        %v1671 = vunpack.c.h.b16 %v911
        %v1672 = vunpack.c.l.b16 %v912
        %v1673 = vunpack.c.h.b16 %v912
        %v1674 = vunpack.c.l.b16 %v913
        %v1675 = vunpack.c.h.b16 %v913
        %v1676 = vunpack.c.l.b16 %v914
        %v1677 = vunpack.c.h.b16 %v914
        %v1678 = vunpack.c.l.b16 %v915
        %v1679 = vunpack.c.h.b16 %v915
        %v1680 = vunpack.c.l.b16 %v916
        %v1681 = vunpack.c.h.b16 %v916
        %v1682 = vunpack.c.l.b16 %v917
        %v1683 = vunpack.c.h.b16 %v917
        %v1684 = vunpack.c.l.b16 %v918
        %v1685 = vunpack.c.h.b16 %v918
        %v1686 = vunpack.c.l.b16 %v919
        %v1687 = vunpack.c.h.b16 %v919
        %v1688 = vunpack.c.l.b16 %v920
        %v1689 = vunpack.c.h.b16 %v920
        %v1690 = vunpack.c.l.b16 %v921
        %v1691 = vunpack.c.h.b16 %v921
        %v1692 = vunpack.c.l.b16 %v922
        %v1693 = vunpack.c.h.b16 %v922
        %v1694 = vunpack.c.l.b16 %v923
        %v1695 = vunpack.c.h.b16 %v923
        %v1696 = vunpack.c.l.b16 %v924
        %v1697 = vunpack.c.h.b16 %v924
        %v1698 = vunpack.c.l.b16 %v925
        %v1699 = vunpack.c.h.b16 %v925
        %v1700 = vunpack.c.l.b16 %v926
        %v1701 = vunpack.c.h.b16 %v926
        %v1702 = vunpack.c.l.b16 %v927
        %v1703 = vunpack.c.h.b16 %v927
        %v1704 = vunpack.c.l.b16 %v928
        %v1705 = vunpack.c.h.b16 %v928
        %v1706 = vunpack.c.l.b16 %v929
        %v1707 = vunpack.c.h.b16 %v929
        %v1708 = vpack.c.b16 %v1200, %v1196
        %v1709 = vpack.c.b16 %v1201, %v1197
        %v1710 = vpack.c.b16 %v1202, %v1198
        %v1711 = vpack.c.b16 %v1203, %v1199
        %v1712 = vpack.c.b16 %v1208, %v1204
        %v1713 = vpack.c.b16 %v1209, %v1205
        %v1714 = vpack.c.b16 %v1210, %v1206
        %v1715 = vpack.c.b16 %v1211, %v1207
        %v1716 = vpack.c.b16 %v1216, %v1212
        %v1717 = vpack.c.b16 %v1217, %v1213
        %v1718 = vpack.c.b16 %v1218, %v1214
        %v1719 = vpack.c.b16 %v1219, %v1215
        %v1720 = vpack.c.b16 %v1224, %v1220
        %v1721 = vpack.c.b16 %v1225, %v1221
        %v1722 = vpack.c.b16 %v1226, %v1222
        %v1723 = vpack.c.b16 %v1227, %v1223
        %v1724 = vpack.c.b16 %v1232, %v1228
        %v1725 = vpack.c.b16 %v1233, %v1229
        %v1726 = vpack.c.b16 %v1234, %v1230
        %v1727 = vpack.c.b16 %v1235, %v1231
        %v1728 = vpack.c.b16 %v1240, %v1236
        %v1729 = vpack.c.b16 %v1241, %v1237
        %v1730 = vpack.c.b16 %v1242, %v1238
        %v1731 = vpack.c.b16 %v1243, %v1239
        %v1732 = vpack.c.b16 %v1248, %v1244
        %v1733 = vpack.c.b16 %v1249, %v1245
        %v1734 = vpack.c.b16 %v1250, %v1246
        %v1735 = vpack.c.b16 %v1251, %v1247
        %v1736 = vpack.c.b16 %v1256, %v1252
        %v1737 = vpack.c.b16 %v1257, %v1253
        %v1738 = vpack.c.b16 %v1258, %v1254
        %v1739 = vpack.c.b16 %v1259, %v1255
        %v1740 = vpack.c.b16 %v1264, %v1260
        %v1741 = vpack.c.b16 %v1265, %v1261
        %v1742 = vpack.c.b16 %v1266, %v1262
        %v1743 = vpack.c.b16 %v1267, %v1263
        %v1744 = vpack.c.b16 %v1272, %v1268
        %v1745 = vpack.c.b16 %v1273, %v1269
        %v1746 = vpack.c.b16 %v1274, %v1270
        %v1747 = vpack.c.b16 %v1275, %v1271
        %v1748 = vpack.c.b16 %v1280, %v1276
        %v1749 = vpack.c.b16 %v1281, %v1277
        %v1750 = vpack.c.b16 %v1282, %v1278
        %v1751 = vpack.c.b16 %v1283, %v1279
        %v1752 = vpack.c.b16 %v1288, %v1284
        %v1753 = vpack.c.b16 %v1289, %v1285
        %v1754 = vpack.c.b16 %v1290, %v1286
        %v1755 = vpack.c.b16 %v1291, %v1287
        %v1756 = vpack.c.b16 %v1296, %v1292
        %v1757 = vpack.c.b16 %v1297, %v1293
        %v1758 = vpack.c.b16 %v1298, %v1294
        %v1759 = vpack.c.b16 %v1299, %v1295
        %v1760 = vpack.c.b16 %v1304, %v1300
        %v1761 = vpack.c.b16 %v1305, %v1301
        %v1762 = vpack.c.b16 %v1306, %v1302
        %v1763 = vpack.c.b16 %v1307, %v1303
        %v1764 = vpack.c.b16 %v1312, %v1308
        %v1765 = vpack.c.b16 %v1313, %v1309
        %v1766 = vpack.c.b16 %v1314, %v1310
        %v1767 = vpack.c.b16 %v1315, %v1311
        %v1768 = vpack.c.b16 %v1320, %v1316
        %v1769 = vpack.c.b16 %v1321, %v1317
        %v1770 = vpack.c.b16 %v1322, %v1318
        %v1771 = vpack.c.b16 %v1323, %v1319
        %v1772 = vpack.c.b16 %v1328, %v1324
        %v1773 = vpack.c.b16 %v1329, %v1325
        %v1774 = vpack.c.b16 %v1330, %v1326
        %v1775 = vpack.c.b16 %v1331, %v1327
        %v1776 = vpack.c.b16 %v1336, %v1332
        %v1777 = vpack.c.b16 %v1337, %v1333
        %v1778 = vpack.c.b16 %v1338, %v1334
        %v1779 = vpack.c.b16 %v1339, %v1335
        %v1780 = vpack.c.b16 %v1344, %v1340
        %v1781 = vpack.c.b16 %v1345, %v1341
        %v1782 = vpack.c.b16 %v1346, %v1342
        %v1783 = vpack.c.b16 %v1347, %v1343
        %v1784 = vpack.c.b16 %v1352, %v1348
        %v1785 = vpack.c.b16 %v1353, %v1349
        %v1786 = vpack.c.b16 %v1354, %v1350
        %v1787 = vpack.c.b16 %v1355, %v1351
        %v1788 = vpack.c.b16 %v1360, %v1356
        %v1789 = vpack.c.b16 %v1361, %v1357
        %v1790 = vpack.c.b16 %v1362, %v1358
        %v1791 = vpack.c.b16 %v1363, %v1359
        %v1792 = vpack.c.b16 %v1368, %v1364
        %v1793 = vpack.c.b16 %v1369, %v1365
        %v1794 = vpack.c.b16 %v1370, %v1366
        %v1795 = vpack.c.b16 %v1371, %v1367
        %v1796 = vpack.c.b16 %v1376, %v1372
        %v1797 = vpack.c.b16 %v1377, %v1373
        %v1798 = vpack.c.b16 %v1378, %v1374
        %v1799 = vpack.c.b16 %v1379, %v1375
        %v1800 = vpack.c.b16 %v1384, %v1380
        %v1801 = vpack.c.b16 %v1385, %v1381
        %v1802 = vpack.c.b16 %v1386, %v1382
        %v1803 = vpack.c.b16 %v1387, %v1383
        %v1804 = vpack.c.b16 %v1392, %v1388
        %v1805 = vpack.c.b16 %v1393, %v1389
        %v1806 = vpack.c.b16 %v1394, %v1390
        %v1807 = vpack.c.b16 %v1395, %v1391
        %v1808 = vpack.c.b16 %v1400, %v1396
        %v1809 = vpack.c.b16 %v1401, %v1397
        %v1810 = vpack.c.b16 %v1402, %v1398
        %v1811 = vpack.c.b16 %v1403, %v1399
        %v1812 = vpack.c.b16 %v1408, %v1404
        %v1813 = vpack.c.b16 %v1409, %v1405
        %v1814 = vpack.c.b16 %v1410, %v1406
        %v1815 = vpack.c.b16 %v1411, %v1407
        %v1816 = vpack.c.b16 %v1416, %v1412
        %v1817 = vpack.c.b16 %v1417, %v1413
        %v1818 = vpack.c.b16 %v1418, %v1414
        %v1819 = vpack.c.b16 %v1419, %v1415
        %v1820 = vpack.c.b16 %v1424, %v1420
        %v1821 = vpack.c.b16 %v1425, %v1421
        %v1822 = vpack.c.b16 %v1426, %v1422
        %v1823 = vpack.c.b16 %v1427, %v1423
        %v1824 = vpack.c.b16 %v1432, %v1428
        %v1825 = vpack.c.b16 %v1433, %v1429
        %v1826 = vpack.c.b16 %v1434, %v1430
        %v1827 = vpack.c.b16 %v1435, %v1431
        %v1828 = vpack.c.b16 %v1440, %v1436
        %v1829 = vpack.c.b16 %v1441, %v1437
        %v1830 = vpack.c.b16 %v1442, %v1438
        %v1831 = vpack.c.b16 %v1443, %v1439
        %v1832 = vpack.c.b16 %v1448, %v1444
        %v1833 = vpack.c.b16 %v1449, %v1445
        %v1834 = vpack.c.b16 %v1450, %v1446
        %v1835 = vpack.c.b16 %v1451, %v1447
        %v1836 = vpack.c.b16 %v1456, %v1452
        %v1837 = vpack.c.b16 %v1457, %v1453
        %v1838 = vpack.c.b16 %v1458, %v1454
        %v1839 = vpack.c.b16 %v1459, %v1455
        %v1840 = vpack.c.b16 %v1464, %v1460
        %v1841 = vpack.c.b16 %v1465, %v1461
        %v1842 = vpack.c.b16 %v1466, %v1462
        %v1843 = vpack.c.b16 %v1467, %v1463
        %v1844 = vpack.c.b16 %v1472, %v1468
        %v1845 = vpack.c.b16 %v1473, %v1469
        %v1846 = vpack.c.b16 %v1474, %v1470
        %v1847 = vpack.c.b16 %v1475, %v1471
        %v1848 = vpack.c.b16 %v1480, %v1476
        %v1849 = vpack.c.b16 %v1481, %v1477
        %v1850 = vpack.c.b16 %v1482, %v1478
        %v1851 = vpack.c.b16 %v1483, %v1479
        %v1852 = vpack.c.b16 %v1488, %v1484
        %v1853 = vpack.c.b16 %v1489, %v1485
        %v1854 = vpack.c.b16 %v1490, %v1486
        %v1855 = vpack.c.b16 %v1491, %v1487
        %v1856 = vpack.c.b16 %v1496, %v1492
        %v1857 = vpack.c.b16 %v1497, %v1493
        %v1858 = vpack.c.b16 %v1498, %v1494
        %v1859 = vpack.c.b16 %v1499, %v1495
        %v1860 = vpack.c.b16 %v1504, %v1500
        %v1861 = vpack.c.b16 %v1505, %v1501
        %v1862 = vpack.c.b16 %v1506, %v1502
        %v1863 = vpack.c.b16 %v1507, %v1503
        %v1864 = vpack.c.b16 %v1512, %v1508
        %v1865 = vpack.c.b16 %v1513, %v1509
        %v1866 = vpack.c.b16 %v1514, %v1510
        %v1867 = vpack.c.b16 %v1515, %v1511
        %v1868 = vpack.c.b16 %v1520, %v1516
        %v1869 = vpack.c.b16 %v1521, %v1517
        %v1870 = vpack.c.b16 %v1522, %v1518
        %v1871 = vpack.c.b16 %v1523, %v1519
        %v1872 = vpack.c.b16 %v1528, %v1524
        %v1873 = vpack.c.b16 %v1529, %v1525
        %v1874 = vpack.c.b16 %v1530, %v1526
        %v1875 = vpack.c.b16 %v1531, %v1527
        %v1876 = vpack.c.b16 %v1536, %v1532
        %v1877 = vpack.c.b16 %v1537, %v1533
        %v1878 = vpack.c.b16 %v1538, %v1534
        %v1879 = vpack.c.b16 %v1539, %v1535
        %v1880 = vpack.c.b16 %v1544, %v1540
        %v1881 = vpack.c.b16 %v1545, %v1541
        %v1882 = vpack.c.b16 %v1546, %v1542
        %v1883 = vpack.c.b16 %v1547, %v1543
        %v1884 = vpack.c.b16 %v1552, %v1548
        %v1885 = vpack.c.b16 %v1553, %v1549
        %v1886 = vpack.c.b16 %v1554, %v1550
        %v1887 = vpack.c.b16 %v1555, %v1551
        %v1888 = vpack.c.b16 %v1560, %v1556
        %v1889 = vpack.c.b16 %v1561, %v1557
        %v1890 = vpack.c.b16 %v1562, %v1558
        %v1891 = vpack.c.b16 %v1563, %v1559
        %v1892 = vpack.c.b16 %v1568, %v1564
        %v1893 = vpack.c.b16 %v1569, %v1565
        %v1894 = vpack.c.b16 %v1570, %v1566
        %v1895 = vpack.c.b16 %v1571, %v1567
        %v1896 = vpack.c.b16 %v1576, %v1572
        %v1897 = vpack.c.b16 %v1577, %v1573
        %v1898 = vpack.c.b16 %v1578, %v1574
        %v1899 = vpack.c.b16 %v1579, %v1575
        %v1900 = vpack.c.b16 %v1584, %v1580
        %v1901 = vpack.c.b16 %v1585, %v1581
        %v1902 = vpack.c.b16 %v1586, %v1582
        %v1903 = vpack.c.b16 %v1587, %v1583
        %v1904 = vpack.c.b16 %v1592, %v1588
        %v1905 = vpack.c.b16 %v1593, %v1589
        %v1906 = vpack.c.b16 %v1594, %v1590
        %v1907 = vpack.c.b16 %v1595, %v1591
        %v1908 = vpack.c.b16 %v1600, %v1596
        %v1909 = vpack.c.b16 %v1601, %v1597
        %v1910 = vpack.c.b16 %v1602, %v1598
        %v1911 = vpack.c.b16 %v1603, %v1599
        %v1912 = vpack.c.b16 %v1608, %v1604
        %v1913 = vpack.c.b16 %v1609, %v1605
        %v1914 = vpack.c.b16 %v1610, %v1606
        %v1915 = vpack.c.b16 %v1611, %v1607
        %v1916 = vpack.c.b16 %v1616, %v1612
        %v1917 = vpack.c.b16 %v1617, %v1613
        %v1918 = vpack.c.b16 %v1618, %v1614
        %v1919 = vpack.c.b16 %v1619, %v1615
        %v1920 = vpack.c.b16 %v1624, %v1620
        %v1921 = vpack.c.b16 %v1625, %v1621
        %v1922 = vpack.c.b16 %v1626, %v1622
        %v1923 = vpack.c.b16 %v1627, %v1623
        %v1924 = vpack.c.b16 %v1632, %v1628
        %v1925 = vpack.c.b16 %v1633, %v1629
        %v1926 = vpack.c.b16 %v1634, %v1630
        %v1927 = vpack.c.b16 %v1635, %v1631
        %v1928 = vpack.c.b16 %v1640, %v1636
        %v1929 = vpack.c.b16 %v1641, %v1637
        %v1930 = vpack.c.b16 %v1642, %v1638
        %v1931 = vpack.c.b16 %v1643, %v1639
        %v1932 = vpack.c.b16 %v1648, %v1644
        %v1933 = vpack.c.b16 %v1649, %v1645
        %v1934 = vpack.c.b16 %v1650, %v1646
        %v1935 = vpack.c.b16 %v1651, %v1647
        %v1936 = vpack.c.b16 %v1656, %v1652
        %v1937 = vpack.c.b16 %v1657, %v1653
        %v1938 = vpack.c.b16 %v1658, %v1654
        %v1939 = vpack.c.b16 %v1659, %v1655
        %v1940 = vpack.c.b16 %v1664, %v1660
        %v1941 = vpack.c.b16 %v1665, %v1661
        %v1942 = vpack.c.b16 %v1666, %v1662
        %v1943 = vpack.c.b16 %v1667, %v1663
        %v1944 = vpack.c.b16 %v1672, %v1668
        %v1945 = vpack.c.b16 %v1673, %v1669
        %v1946 = vpack.c.b16 %v1674, %v1670
        %v1947 = vpack.c.b16 %v1675, %v1671
        %v1948 = vpack.c.b16 %v1680, %v1676
        %v1949 = vpack.c.b16 %v1681, %v1677
        %v1950 = vpack.c.b16 %v1682, %v1678
        %v1951 = vpack.c.b16 %v1683, %v1679
        %v1952 = vpack.c.b16 %v1688, %v1684
        %v1953 = vpack.c.b16 %v1689, %v1685
        %v1954 = vpack.c.b16 %v1690, %v1686
        %v1955 = vpack.c.b16 %v1691, %v1687
        %v1956 = vpack.c.b16 %v1696, %v1692
        %v1957 = vpack.c.b16 %v1697, %v1693
        %v1958 = vpack.c.b16 %v1698, %v1694
        %v1959 = vpack.c.b16 %v1699, %v1695
        %v1960 = vpack.c.b16 %v1704, %v1700
        %v1961 = vpack.c.b16 %v1705, %v1701
        %v1962 = vpack.c.b16 %v1706, %v1702
        %v1963 = vpack.c.b16 %v1707, %v1703
        %2220 = vmatpush.bf16.msra.mxu0 %v1736
        %2221 = vmatpush.bf16.msra.mxu0 %v1732
        %2222 = vmatpush.bf16.msra.mxu0 %v1728
        %2223 = vmatpush.bf16.msra.mxu0 %v1724
        %2224 = vmatpush.bf16.msra.mxu0 %v1720
        %2225 = vmatpush.bf16.msra.mxu0 %v1716
        %2226 = vmatpush.bf16.msra.mxu0 %v1712
        %2227 = vmatpush.bf16.msra.mxu0 %v1708
        %2228 = vmatmul.bf16.gmra.mxu0 %v666
        %v2229 = vpop.f32.mrf.mxu0
        %v2230 = vadd.f32 %v932, %v2229
        %v2231 = vpop.f32.mrf.mxu0
        %2232 = vdwg.mxu0
        %2233 = vmatpush.bf16.msra.mxu0 %v1768
        %2234 = vmatpush.bf16.msra.mxu0 %v1764
        %2235 = vmatpush.bf16.msra.mxu0 %v1760
        %2236 = vmatpush.bf16.msra.mxu0 %v1756
        %2237 = vmatpush.bf16.msra.mxu0 %v1752
        %2238 = vmatpush.bf16.msra.mxu0 %v1748
        %2239 = vmatpush.bf16.msra.mxu0 %v1744
        %2240 = vmatpush.bf16.msra.mxu0 %v1740
        %2241 = vmatmul.bf16.gmra.mxu0 %v667
        %v2242 = vpop.f32.mrf.mxu0
        %v2243 = vadd.f32 %v2230, %v2242
        %v2244 = vpop.f32.mrf.mxu0
        %2245 = vdwg.mxu0
        %2246 = vmatpush.bf16.msra.mxu0 %v1800
        %2247 = vmatpush.bf16.msra.mxu0 %v1796
        %2248 = vmatpush.bf16.msra.mxu0 %v1792
        %2249 = vmatpush.bf16.msra.mxu0 %v1788
        %2250 = vmatpush.bf16.msra.mxu0 %v1784
        %2251 = vmatpush.bf16.msra.mxu0 %v1780
        %2252 = vmatpush.bf16.msra.mxu0 %v1776
        %2253 = vmatpush.bf16.msra.mxu0 %v1772
        %2254 = vmatmul.bf16.gmra.mxu0 %v668
        %v2255 = vpop.f32.mrf.mxu0
        %v2256 = vadd.f32 %v2243, %v2255
        %v2257 = vpop.f32.mrf.mxu0
        %2258 = vdwg.mxu0
        %2259 = vmatpush.bf16.msra.mxu0 %v1832
        %2260 = vmatpush.bf16.msra.mxu0 %v1828
        %2261 = vmatpush.bf16.msra.mxu0 %v1824
        %2262 = vmatpush.bf16.msra.mxu0 %v1820
        %2263 = vmatpush.bf16.msra.mxu0 %v1816
        %2264 = vmatpush.bf16.msra.mxu0 %v1812
        %2265 = vmatpush.bf16.msra.mxu0 %v1808
        %2266 = vmatpush.bf16.msra.mxu0 %v1804
        %2267 = vmatmul.bf16.gmra.mxu0 %v669
        %v2268 = vpop.f32.mrf.mxu0
        %v2269 = vadd.f32 %v2256, %v2268
        %v2270 = vpop.f32.mrf.mxu0
        %2271 = vdwg.mxu0
        %2272 = vmatpush.bf16.msra.mxu0 %v1864
        %2273 = vmatpush.bf16.msra.mxu0 %v1860
        %2274 = vmatpush.bf16.msra.mxu0 %v1856
        %2275 = vmatpush.bf16.msra.mxu0 %v1852
        %2276 = vmatpush.bf16.msra.mxu0 %v1848
        %2277 = vmatpush.bf16.msra.mxu0 %v1844
        %2278 = vmatpush.bf16.msra.mxu0 %v1840
        %2279 = vmatpush.bf16.msra.mxu0 %v1836
        %2280 = vmatmul.bf16.gmra.mxu0 %v670
        %v2281 = vpop.f32.mrf.mxu0
        %v2282 = vadd.f32 %v2269, %v2281
        %v2283 = vpop.f32.mrf.mxu0
        %2284 = vdwg.mxu0
        %2285 = vmatpush.bf16.msra.mxu0 %v1896
        %2286 = vmatpush.bf16.msra.mxu0 %v1892
        %2287 = vmatpush.bf16.msra.mxu0 %v1888
        %2288 = vmatpush.bf16.msra.mxu0 %v1884
        %2289 = vmatpush.bf16.msra.mxu0 %v1880
        %2290 = vmatpush.bf16.msra.mxu0 %v1876
        %2291 = vmatpush.bf16.msra.mxu0 %v1872
        %2292 = vmatpush.bf16.msra.mxu0 %v1868
        %2293 = vmatmul.bf16.gmra.mxu0 %v671
        %v2294 = vpop.f32.mrf.mxu0
        %v2295 = vadd.f32 %v2282, %v2294
        %v2296 = vpop.f32.mrf.mxu0
        %2297 = vdwg.mxu0
        %2298 = vmatpush.bf16.msra.mxu0 %v1928
        %2299 = vmatpush.bf16.msra.mxu0 %v1924
        %2300 = vmatpush.bf16.msra.mxu0 %v1920
        %2301 = vmatpush.bf16.msra.mxu0 %v1916
        %2302 = vmatpush.bf16.msra.mxu0 %v1912
        %2303 = vmatpush.bf16.msra.mxu0 %v1908
        %2304 = vmatpush.bf16.msra.mxu0 %v1904
        %2305 = vmatpush.bf16.msra.mxu0 %v1900
        %2306 = vmatmul.bf16.gmra.mxu0 %v672
        %v2307 = vpop.f32.mrf.mxu0
        %v2308 = vadd.f32 %v2295, %v2307
        %v2309 = vpop.f32.mrf.mxu0
        %2310 = vdwg.mxu0
        %2311 = vmatpush.bf16.msra.mxu0 %v1960
        %2312 = vmatpush.bf16.msra.mxu0 %v1956
        %2313 = vmatpush.bf16.msra.mxu0 %v1952
        %2314 = vmatpush.bf16.msra.mxu0 %v1948
        %2315 = vmatpush.bf16.msra.mxu0 %v1944
        %2316 = vmatpush.bf16.msra.mxu0 %v1940
        %2317 = vmatpush.bf16.msra.mxu0 %v1936
        %2318 = vmatpush.bf16.msra.mxu0 %v1932
        %2319 = vmatmul.bf16.gmra.mxu0 %v673
        %v2320 = vpop.f32.mrf.mxu0
        %v2321 = vadd.f32 %v2308, %v2320
        %v2322 = vpop.f32.mrf.mxu0
        %2323 = vdwg.mxu0
        %2324 = vmatpush.bf16.msra.mxu0 %v1737
        %2325 = vmatpush.bf16.msra.mxu0 %v1733
        %2326 = vmatpush.bf16.msra.mxu0 %v1729
        %2327 = vmatpush.bf16.msra.mxu0 %v1725
        %2328 = vmatpush.bf16.msra.mxu0 %v1721
        %2329 = vmatpush.bf16.msra.mxu0 %v1717
        %2330 = vmatpush.bf16.msra.mxu0 %v1713
        %2331 = vmatpush.bf16.msra.mxu0 %v1709
        %2332 = vmatmul.bf16.gmra.mxu0 %v666
        %v2333 = vpop.f32.mrf.mxu0
        %v2334 = vadd.f32 %v933, %v2333
        %v2335 = vpop.f32.mrf.mxu0
        %2336 = vdwg.mxu0
        %2337 = vmatpush.bf16.msra.mxu0 %v1769
        %2338 = vmatpush.bf16.msra.mxu0 %v1765
        %2339 = vmatpush.bf16.msra.mxu0 %v1761
        %2340 = vmatpush.bf16.msra.mxu0 %v1757
        %2341 = vmatpush.bf16.msra.mxu0 %v1753
        %2342 = vmatpush.bf16.msra.mxu0 %v1749
        %2343 = vmatpush.bf16.msra.mxu0 %v1745
        %2344 = vmatpush.bf16.msra.mxu0 %v1741
        %2345 = vmatmul.bf16.gmra.mxu0 %v667
        %v2346 = vpop.f32.mrf.mxu0
        %v2347 = vadd.f32 %v2334, %v2346
        %v2348 = vpop.f32.mrf.mxu0
        %2349 = vdwg.mxu0
        %2350 = vmatpush.bf16.msra.mxu0 %v1801
        %2351 = vmatpush.bf16.msra.mxu0 %v1797
        %2352 = vmatpush.bf16.msra.mxu0 %v1793
        %2353 = vmatpush.bf16.msra.mxu0 %v1789
        %2354 = vmatpush.bf16.msra.mxu0 %v1785
        %2355 = vmatpush.bf16.msra.mxu0 %v1781
        %2356 = vmatpush.bf16.msra.mxu0 %v1777
        %2357 = vmatpush.bf16.msra.mxu0 %v1773
        %2358 = vmatmul.bf16.gmra.mxu0 %v668
        %v2359 = vpop.f32.mrf.mxu0
        %v2360 = vadd.f32 %v2347, %v2359
        %v2361 = vpop.f32.mrf.mxu0
        %2362 = vdwg.mxu0
        %2363 = vmatpush.bf16.msra.mxu0 %v1833
        %2364 = vmatpush.bf16.msra.mxu0 %v1829
        %2365 = vmatpush.bf16.msra.mxu0 %v1825
        %2366 = vmatpush.bf16.msra.mxu0 %v1821
        %2367 = vmatpush.bf16.msra.mxu0 %v1817
        %2368 = vmatpush.bf16.msra.mxu0 %v1813
        %2369 = vmatpush.bf16.msra.mxu0 %v1809
        %2370 = vmatpush.bf16.msra.mxu0 %v1805
        %2371 = vmatmul.bf16.gmra.mxu0 %v669
        %v2372 = vpop.f32.mrf.mxu0
        %v2373 = vadd.f32 %v2360, %v2372
        %v2374 = vpop.f32.mrf.mxu0
        %2375 = vdwg.mxu0
        %2376 = vmatpush.bf16.msra.mxu0 %v1865
        %2377 = vmatpush.bf16.msra.mxu0 %v1861
        %2378 = vmatpush.bf16.msra.mxu0 %v1857
        %2379 = vmatpush.bf16.msra.mxu0 %v1853
        %2380 = vmatpush.bf16.msra.mxu0 %v1849
        %2381 = vmatpush.bf16.msra.mxu0 %v1845
        %2382 = vmatpush.bf16.msra.mxu0 %v1841
        %2383 = vmatpush.bf16.msra.mxu0 %v1837
        %2384 = vmatmul.bf16.gmra.mxu0 %v670
        %v2385 = vpop.f32.mrf.mxu0
        %v2386 = vadd.f32 %v2373, %v2385
        %v2387 = vpop.f32.mrf.mxu0
        %2388 = vdwg.mxu0
        %2389 = vmatpush.bf16.msra.mxu0 %v1897
        %2390 = vmatpush.bf16.msra.mxu0 %v1893
        %2391 = vmatpush.bf16.msra.mxu0 %v1889
        %2392 = vmatpush.bf16.msra.mxu0 %v1885
        %2393 = vmatpush.bf16.msra.mxu0 %v1881
        %2394 = vmatpush.bf16.msra.mxu0 %v1877
        %2395 = vmatpush.bf16.msra.mxu0 %v1873
        %2396 = vmatpush.bf16.msra.mxu0 %v1869
        %2397 = vmatmul.bf16.gmra.mxu0 %v671
        %v2398 = vpop.f32.mrf.mxu0
        %v2399 = vadd.f32 %v2386, %v2398
        %v2400 = vpop.f32.mrf.mxu0
        %2401 = vdwg.mxu0
        %2402 = vmatpush.bf16.msra.mxu0 %v1929
        %2403 = vmatpush.bf16.msra.mxu0 %v1925
        %2404 = vmatpush.bf16.msra.mxu0 %v1921
        %2405 = vmatpush.bf16.msra.mxu0 %v1917
        %2406 = vmatpush.bf16.msra.mxu0 %v1913
        %2407 = vmatpush.bf16.msra.mxu0 %v1909
        %2408 = vmatpush.bf16.msra.mxu0 %v1905
        %2409 = vmatpush.bf16.msra.mxu0 %v1901
        %2410 = vmatmul.bf16.gmra.mxu0 %v672
        %v2411 = vpop.f32.mrf.mxu0
        %v2412 = vadd.f32 %v2399, %v2411
        %v2413 = vpop.f32.mrf.mxu0
        %2414 = vdwg.mxu0
        %2415 = vmatpush.bf16.msra.mxu0 %v1961
        %2416 = vmatpush.bf16.msra.mxu0 %v1957
        %2417 = vmatpush.bf16.msra.mxu0 %v1953
        %2418 = vmatpush.bf16.msra.mxu0 %v1949
        %2419 = vmatpush.bf16.msra.mxu0 %v1945
        %2420 = vmatpush.bf16.msra.mxu0 %v1941
        %2421 = vmatpush.bf16.msra.mxu0 %v1937
        %2422 = vmatpush.bf16.msra.mxu0 %v1933
        %2423 = vmatmul.bf16.gmra.mxu0 %v673
        %v2424 = vpop.f32.mrf.mxu0
        %v2425 = vadd.f32 %v2412, %v2424
        %v2426 = vpop.f32.mrf.mxu0
        %2427 = vdwg.mxu0
        %2428 = vmatpush.bf16.msra.mxu0 %v1738
        %2429 = vmatpush.bf16.msra.mxu0 %v1734
        %2430 = vmatpush.bf16.msra.mxu0 %v1730
        %2431 = vmatpush.bf16.msra.mxu0 %v1726
        %2432 = vmatpush.bf16.msra.mxu0 %v1722
        %2433 = vmatpush.bf16.msra.mxu0 %v1718
        %2434 = vmatpush.bf16.msra.mxu0 %v1714
        %2435 = vmatpush.bf16.msra.mxu0 %v1710
        %2436 = vmatmul.bf16.gmra.mxu0 %v666
        %v2437 = vpop.f32.mrf.mxu0
        %v2438 = vadd.f32 %v934, %v2437
        %v2439 = vpop.f32.mrf.mxu0
        %2440 = vdwg.mxu0
        %2441 = vmatpush.bf16.msra.mxu0 %v1770
        %2442 = vmatpush.bf16.msra.mxu0 %v1766
        %2443 = vmatpush.bf16.msra.mxu0 %v1762
        %2444 = vmatpush.bf16.msra.mxu0 %v1758
        %2445 = vmatpush.bf16.msra.mxu0 %v1754
        %2446 = vmatpush.bf16.msra.mxu0 %v1750
        %2447 = vmatpush.bf16.msra.mxu0 %v1746
        %2448 = vmatpush.bf16.msra.mxu0 %v1742
        %2449 = vmatmul.bf16.gmra.mxu0 %v667
        %v2450 = vpop.f32.mrf.mxu0
        %v2451 = vadd.f32 %v2438, %v2450
        %v2452 = vpop.f32.mrf.mxu0
        %2453 = vdwg.mxu0
        %2454 = vmatpush.bf16.msra.mxu0 %v1802
        %2455 = vmatpush.bf16.msra.mxu0 %v1798
        %2456 = vmatpush.bf16.msra.mxu0 %v1794
        %2457 = vmatpush.bf16.msra.mxu0 %v1790
        %2458 = vmatpush.bf16.msra.mxu0 %v1786
        %2459 = vmatpush.bf16.msra.mxu0 %v1782
        %2460 = vmatpush.bf16.msra.mxu0 %v1778
        %2461 = vmatpush.bf16.msra.mxu0 %v1774
        %2462 = vmatmul.bf16.gmra.mxu0 %v668
        %v2463 = vpop.f32.mrf.mxu0
        %v2464 = vadd.f32 %v2451, %v2463
        %v2465 = vpop.f32.mrf.mxu0
        %2466 = vdwg.mxu0
        %2467 = vmatpush.bf16.msra.mxu0 %v1834
        %2468 = vmatpush.bf16.msra.mxu0 %v1830
        %2469 = vmatpush.bf16.msra.mxu0 %v1826
        %2470 = vmatpush.bf16.msra.mxu0 %v1822
        %2471 = vmatpush.bf16.msra.mxu0 %v1818
        %2472 = vmatpush.bf16.msra.mxu0 %v1814
        %2473 = vmatpush.bf16.msra.mxu0 %v1810
        %2474 = vmatpush.bf16.msra.mxu0 %v1806
        %2475 = vmatmul.bf16.gmra.mxu0 %v669
        %v2476 = vpop.f32.mrf.mxu0
        %v2477 = vadd.f32 %v2464, %v2476
        %v2478 = vpop.f32.mrf.mxu0
        %2479 = vdwg.mxu0
        %2480 = vmatpush.bf16.msra.mxu0 %v1866
        %2481 = vmatpush.bf16.msra.mxu0 %v1862
        %2482 = vmatpush.bf16.msra.mxu0 %v1858
        %2483 = vmatpush.bf16.msra.mxu0 %v1854
        %2484 = vmatpush.bf16.msra.mxu0 %v1850
        %2485 = vmatpush.bf16.msra.mxu0 %v1846
        %2486 = vmatpush.bf16.msra.mxu0 %v1842
        %2487 = vmatpush.bf16.msra.mxu0 %v1838
        %2488 = vmatmul.bf16.gmra.mxu0 %v670
        %v2489 = vpop.f32.mrf.mxu0
        %v2490 = vadd.f32 %v2477, %v2489
        %v2491 = vpop.f32.mrf.mxu0
        %2492 = vdwg.mxu0
        %2493 = vmatpush.bf16.msra.mxu0 %v1898
        %2494 = vmatpush.bf16.msra.mxu0 %v1894
        %2495 = vmatpush.bf16.msra.mxu0 %v1890
        %2496 = vmatpush.bf16.msra.mxu0 %v1886
        %2497 = vmatpush.bf16.msra.mxu0 %v1882
        %2498 = vmatpush.bf16.msra.mxu0 %v1878
        %2499 = vmatpush.bf16.msra.mxu0 %v1874
        %2500 = vmatpush.bf16.msra.mxu0 %v1870
        %2501 = vmatmul.bf16.gmra.mxu0 %v671
        %v2502 = vpop.f32.mrf.mxu0
        %v2503 = vadd.f32 %v2490, %v2502
        %v2504 = vpop.f32.mrf.mxu0
        %2505 = vdwg.mxu0
        %2506 = vmatpush.bf16.msra.mxu0 %v1930
        %2507 = vmatpush.bf16.msra.mxu0 %v1926
        %2508 = vmatpush.bf16.msra.mxu0 %v1922
        %2509 = vmatpush.bf16.msra.mxu0 %v1918
        %2510 = vmatpush.bf16.msra.mxu0 %v1914
        %2511 = vmatpush.bf16.msra.mxu0 %v1910
        %2512 = vmatpush.bf16.msra.mxu0 %v1906
        %2513 = vmatpush.bf16.msra.mxu0 %v1902
        %2514 = vmatmul.bf16.gmra.mxu0 %v672
        %v2515 = vpop.f32.mrf.mxu0
        %v2516 = vadd.f32 %v2503, %v2515
        %v2517 = vpop.f32.mrf.mxu0
        %2518 = vdwg.mxu0
        %2519 = vmatpush.bf16.msra.mxu0 %v1962
        %2520 = vmatpush.bf16.msra.mxu0 %v1958
        %2521 = vmatpush.bf16.msra.mxu0 %v1954
        %2522 = vmatpush.bf16.msra.mxu0 %v1950
        %2523 = vmatpush.bf16.msra.mxu0 %v1946
        %2524 = vmatpush.bf16.msra.mxu0 %v1942
        %2525 = vmatpush.bf16.msra.mxu0 %v1938
        %2526 = vmatpush.bf16.msra.mxu0 %v1934
        %2527 = vmatmul.bf16.gmra.mxu0 %v673
        %v2528 = vpop.f32.mrf.mxu0
        %v2529 = vadd.f32 %v2516, %v2528
        %v2530 = vpop.f32.mrf.mxu0
        %2531 = vdwg.mxu0
        %2532 = vmatpush.bf16.msra.mxu0 %v1739
        %2533 = vmatpush.bf16.msra.mxu0 %v1735
        %2534 = vmatpush.bf16.msra.mxu0 %v1731
        %2535 = vmatpush.bf16.msra.mxu0 %v1727
        %2536 = vmatpush.bf16.msra.mxu0 %v1723
        %2537 = vmatpush.bf16.msra.mxu0 %v1719
        %2538 = vmatpush.bf16.msra.mxu0 %v1715
        %2539 = vmatpush.bf16.msra.mxu0 %v1711
        %2540 = vmatmul.bf16.gmra.mxu0 %v666
        %v2541 = vpop.f32.mrf.mxu0
        %v2542 = vadd.f32 %v935, %v2541
        %v2543 = vpop.f32.mrf.mxu0
        %2544 = vdwg.mxu0
        %2545 = vmatpush.bf16.msra.mxu0 %v1771
        %2546 = vmatpush.bf16.msra.mxu0 %v1767
        %2547 = vmatpush.bf16.msra.mxu0 %v1763
        %2548 = vmatpush.bf16.msra.mxu0 %v1759
        %2549 = vmatpush.bf16.msra.mxu0 %v1755
        %2550 = vmatpush.bf16.msra.mxu0 %v1751
        %2551 = vmatpush.bf16.msra.mxu0 %v1747
        %2552 = vmatpush.bf16.msra.mxu0 %v1743
        %2553 = vmatmul.bf16.gmra.mxu0 %v667
        %v2554 = vpop.f32.mrf.mxu0
        %v2555 = vadd.f32 %v2542, %v2554
        %v2556 = vpop.f32.mrf.mxu0
        %2557 = vdwg.mxu0
        %2558 = vmatpush.bf16.msra.mxu0 %v1803
        %2559 = vmatpush.bf16.msra.mxu0 %v1799
        %2560 = vmatpush.bf16.msra.mxu0 %v1795
        %2561 = vmatpush.bf16.msra.mxu0 %v1791
        %2562 = vmatpush.bf16.msra.mxu0 %v1787
        %2563 = vmatpush.bf16.msra.mxu0 %v1783
        %2564 = vmatpush.bf16.msra.mxu0 %v1779
        %2565 = vmatpush.bf16.msra.mxu0 %v1775
        %2566 = vmatmul.bf16.gmra.mxu0 %v668
        %v2567 = vpop.f32.mrf.mxu0
        %v2568 = vadd.f32 %v2555, %v2567
        %v2569 = vpop.f32.mrf.mxu0
        %2570 = vdwg.mxu0
        %2571 = vmatpush.bf16.msra.mxu0 %v1835
        %2572 = vmatpush.bf16.msra.mxu0 %v1831
        %2573 = vmatpush.bf16.msra.mxu0 %v1827
        %2574 = vmatpush.bf16.msra.mxu0 %v1823
        %2575 = vmatpush.bf16.msra.mxu0 %v1819
        %2576 = vmatpush.bf16.msra.mxu0 %v1815
        %2577 = vmatpush.bf16.msra.mxu0 %v1811
        %2578 = vmatpush.bf16.msra.mxu0 %v1807
        %2579 = vmatmul.bf16.gmra.mxu0 %v669
        %v2580 = vpop.f32.mrf.mxu0
        %v2581 = vadd.f32 %v2568, %v2580
        %v2582 = vpop.f32.mrf.mxu0
        %2583 = vdwg.mxu0
        %2584 = vmatpush.bf16.msra.mxu0 %v1867
        %2585 = vmatpush.bf16.msra.mxu0 %v1863
        %2586 = vmatpush.bf16.msra.mxu0 %v1859
        %2587 = vmatpush.bf16.msra.mxu0 %v1855
        %2588 = vmatpush.bf16.msra.mxu0 %v1851
        %2589 = vmatpush.bf16.msra.mxu0 %v1847
        %2590 = vmatpush.bf16.msra.mxu0 %v1843
        %2591 = vmatpush.bf16.msra.mxu0 %v1839
        %2592 = vmatmul.bf16.gmra.mxu0 %v670
        %v2593 = vpop.f32.mrf.mxu0
        %v2594 = vadd.f32 %v2581, %v2593
        %v2595 = vpop.f32.mrf.mxu0
        %2596 = vdwg.mxu0
        %2597 = vmatpush.bf16.msra.mxu0 %v1899
        %2598 = vmatpush.bf16.msra.mxu0 %v1895
        %2599 = vmatpush.bf16.msra.mxu0 %v1891
        %2600 = vmatpush.bf16.msra.mxu0 %v1887
        %2601 = vmatpush.bf16.msra.mxu0 %v1883
        %2602 = vmatpush.bf16.msra.mxu0 %v1879
        %2603 = vmatpush.bf16.msra.mxu0 %v1875
        %2604 = vmatpush.bf16.msra.mxu0 %v1871
        %2605 = vmatmul.bf16.gmra.mxu0 %v671
        %v2606 = vpop.f32.mrf.mxu0
        %v2607 = vadd.f32 %v2594, %v2606
        %v2608 = vpop.f32.mrf.mxu0
        %2609 = vdwg.mxu0
        %2610 = vmatpush.bf16.msra.mxu0 %v1931
        %2611 = vmatpush.bf16.msra.mxu0 %v1927
        %2612 = vmatpush.bf16.msra.mxu0 %v1923
        %2613 = vmatpush.bf16.msra.mxu0 %v1919
        %2614 = vmatpush.bf16.msra.mxu0 %v1915
        %2615 = vmatpush.bf16.msra.mxu0 %v1911
        %2616 = vmatpush.bf16.msra.mxu0 %v1907
        %2617 = vmatpush.bf16.msra.mxu0 %v1903
        %2618 = vmatmul.bf16.gmra.mxu0 %v672
        %v2619 = vpop.f32.mrf.mxu0
        %v2620 = vadd.f32 %v2607, %v2619
        %v2621 = vpop.f32.mrf.mxu0
        %2622 = vdwg.mxu0
        %2623 = vmatpush.bf16.msra.mxu0 %v1963
        %2624 = vmatpush.bf16.msra.mxu0 %v1959
        %2625 = vmatpush.bf16.msra.mxu0 %v1955
        %2626 = vmatpush.bf16.msra.mxu0 %v1951
        %2627 = vmatpush.bf16.msra.mxu0 %v1947
        %2628 = vmatpush.bf16.msra.mxu0 %v1943
        %2629 = vmatpush.bf16.msra.mxu0 %v1939
        %2630 = vmatpush.bf16.msra.mxu0 %v1935
        %2631 = vmatmul.bf16.gmra.mxu0 %v673
        %v2632 = vpop.f32.mrf.mxu0
        %v2633 = vadd.f32 %v2620, %v2632
        %v2634 = vpop.f32.mrf.mxu0
        %2635 = vdwg.mxu0
        %vm2636 = vcmp.ge.f32.partialorder %v2321, 0.0
        %vm2637 = vcmp.ge.f32.partialorder %v2425, 0.0
        %vm2638 = vcmp.ge.f32.partialorder %v2529, 0.0
        %vm2639 = vcmp.ge.f32.partialorder %v2633, 0.0
        %v2640 = vmul.f32 %v2321, 0.01
        %v2641 = vmul.f32 %v2425, 0.01
        %v2642 = vmul.f32 %v2529, 0.01
        %v2643 = vmul.f32 %v2633, 0.01
        %v2644 = vsel %vm2636, %v2321, %v2640
        %v2645 = vsel %vm2637, %v2425, %v2641
        %v2646 = vsel %vm2638, %v2529, %v2642
        %v2647 = vsel %vm2639, %v2633, %v2643
        %v2648 = vpack.c.bf16 %v2644, %v2644
        %v2649 = vpack.c.bf16 %v2645, %v2645
        %v2650 = vpack.c.bf16 %v2646, %v2646
        %v2651 = vpack.c.bf16 %v2647, %v2647
        %v2652 = vld [vmem:[#allocation11] sm:$0x1]
        %v2653 = vld [vmem:[#allocation8] sm:$0xf]
        %v2654 = vld [vmem:[#allocation8 + $0x4] sm:$0xf]
        %v2655 = vld [vmem:[#allocation8 + $0x8] sm:$0xf]
        %v2656 = vld [vmem:[#allocation8 + $0xc] sm:$0xf]
        %v2657 = vld [vmem:[#allocation8 + $0x10] sm:$0xf]
        %v2658 = vld [vmem:[#allocation8 + $0x14] sm:$0xf]
        %v2659 = vld [vmem:[#allocation8 + $0x18] sm:$0xf]
        %v2660 = vld [vmem:[#allocation8 + $0x1c] sm:$0xf]
        %v2661 = vld [vmem:[#allocation8 + $0x20] sm:$0xf]
        %v2662 = vld [vmem:[#allocation8 + $0x24] sm:$0xf]
        %v2663 = vld [vmem:[#allocation8 + $0x28] sm:$0xf]
        %v2664 = vld [vmem:[#allocation8 + $0x2c] sm:$0xf]
        %v2665 = vld [vmem:[#allocation8 + $0x30] sm:$0xf]
        %v2666 = vld [vmem:[#allocation8 + $0x34] sm:$0xf]
        %v2667 = vld [vmem:[#allocation8 + $0x38] sm:$0xf]
        %v2668 = vld [vmem:[#allocation8 + $0x3c] sm:$0xf]
        %v2669 = vld [vmem:[#allocation8 + $0x40] sm:$0xf]
        %v2670 = vld [vmem:[#allocation8 + $0x44] sm:$0xf]
        %v2671 = vld [vmem:[#allocation8 + $0x48] sm:$0xf]
        %v2672 = vld [vmem:[#allocation8 + $0x4c] sm:$0xf]
        %v2673 = vld [vmem:[#allocation8 + $0x50] sm:$0xf]
        %v2674 = vld [vmem:[#allocation8 + $0x54] sm:$0xf]
        %v2675 = vld [vmem:[#allocation8 + $0x58] sm:$0xf]
        %v2676 = vld [vmem:[#allocation8 + $0x5c] sm:$0xf]
        %v2677 = vld [vmem:[#allocation8 + $0x60] sm:$0xf]
        %v2678 = vld [vmem:[#allocation8 + $0x64] sm:$0xf]
        %v2679 = vld [vmem:[#allocation8 + $0x68] sm:$0xf]
        %v2680 = vld [vmem:[#allocation8 + $0x6c] sm:$0xf]
        %v2681 = vld [vmem:[#allocation8 + $0x70] sm:$0xf]
        %v2682 = vld [vmem:[#allocation8 + $0x74] sm:$0xf]
        %v2683 = vld [vmem:[#allocation8 + $0x78] sm:$0xf]
        %v2684 = vld [vmem:[#allocation8 + $0x7c] sm:$0xf]
        %v2717 = vunpack.c.l.b16 %v2653
        %v2718 = vunpack.c.l.b16 %v2654
        %v2719 = vunpack.c.l.b16 %v2655
        %v2720 = vunpack.c.l.b16 %v2656
        %v2721 = vunpack.c.l.b16 %v2657
        %v2722 = vunpack.c.l.b16 %v2658
        %v2723 = vunpack.c.l.b16 %v2659
        %v2724 = vunpack.c.l.b16 %v2660
        %v2725 = vunpack.c.l.b16 %v2661
        %v2726 = vunpack.c.l.b16 %v2662
        %v2727 = vunpack.c.l.b16 %v2663
        %v2728 = vunpack.c.l.b16 %v2664
        %v2729 = vunpack.c.l.b16 %v2665
        %v2730 = vunpack.c.l.b16 %v2666
        %v2731 = vunpack.c.l.b16 %v2667
        %v2732 = vunpack.c.l.b16 %v2668
        %v2733 = vunpack.c.l.b16 %v2669
        %v2734 = vunpack.c.l.b16 %v2670
        %v2735 = vunpack.c.l.b16 %v2671
        %v2736 = vunpack.c.l.b16 %v2672
        %v2737 = vunpack.c.l.b16 %v2673
        %v2738 = vunpack.c.l.b16 %v2674
        %v2739 = vunpack.c.l.b16 %v2675
        %v2740 = vunpack.c.l.b16 %v2676
        %v2741 = vunpack.c.l.b16 %v2677
        %v2742 = vunpack.c.l.b16 %v2678
        %v2743 = vunpack.c.l.b16 %v2679
        %v2744 = vunpack.c.l.b16 %v2680
        %v2745 = vunpack.c.l.b16 %v2681
        %v2746 = vunpack.c.l.b16 %v2682
        %v2747 = vunpack.c.l.b16 %v2683
        %v2748 = vunpack.c.l.b16 %v2684
        %v2749 = vpack.c.b16 %v2718, %v2717
        %v2750 = vpack.c.b16 %v2720, %v2719
        %v2751 = vpack.c.b16 %v2722, %v2721
        %v2752 = vpack.c.b16 %v2724, %v2723
        %v2753 = vpack.c.b16 %v2726, %v2725
        %v2754 = vpack.c.b16 %v2728, %v2727
        %v2755 = vpack.c.b16 %v2730, %v2729
        %v2756 = vpack.c.b16 %v2732, %v2731
        %v2757 = vpack.c.b16 %v2734, %v2733
        %v2758 = vpack.c.b16 %v2736, %v2735
        %v2759 = vpack.c.b16 %v2738, %v2737
        %v2760 = vpack.c.b16 %v2740, %v2739
        %v2761 = vpack.c.b16 %v2742, %v2741
        %v2762 = vpack.c.b16 %v2744, %v2743
        %v2763 = vpack.c.b16 %v2746, %v2745
        %v2764 = vpack.c.b16 %v2748, %v2747
        %2781 = vmatpush.bf16.msra.mxu0 %v2756
        %2782 = vmatpush.bf16.msra.mxu0 %v2755
        %2783 = vmatpush.bf16.msra.mxu0 %v2754
        %2784 = vmatpush.bf16.msra.mxu0 %v2753
        %2785 = vmatpush.bf16.msra.mxu0 %v2752
        %2786 = vmatpush.bf16.msra.mxu0 %v2751
        %2787 = vmatpush.bf16.msra.mxu0 %v2750
        %2788 = vmatpush.bf16.msra.mxu0 %v2749
        %2789 = vmatmul.bf16.gmra.mxu0 %v2648
        %v2790 = vpop.f32.mrf.mxu0
        %v2791 = vadd.f32 0.0, %v2790
        %v2792 = vpop.f32.mrf.mxu0
        %2793 = vdwg.mxu0
        %2794 = vmatpush.bf16.msra.mxu0 %v2764
        %2795 = vmatpush.bf16.msra.mxu0 %v2763
        %2796 = vmatpush.bf16.msra.mxu0 %v2762
        %2797 = vmatpush.bf16.msra.mxu0 %v2761
        %2798 = vmatpush.bf16.msra.mxu0 %v2760
        %2799 = vmatpush.bf16.msra.mxu0 %v2759
        %2800 = vmatpush.bf16.msra.mxu0 %v2758
        %2801 = vmatpush.bf16.msra.mxu0 %v2757
        %2802 = vmatmul.bf16.gmra.mxu0 %v2649
        %v2803 = vpop.f32.mrf.mxu0
        %v2804 = vadd.f32 %v2791, %v2803
        %v2805 = vpop.f32.mrf.mxu0
        %2806 = vdwg.mxu0
        %v2807 = vld [vmem:[#allocation10] sm:$0xf]
        %v2808 = vld [vmem:[#allocation10 + $0x4] sm:$0xf]
        %v2809 = vld [vmem:[#allocation10 + $0x8] sm:$0xf]
        %v2810 = vld [vmem:[#allocation10 + $0xc] sm:$0xf]
        %v2811 = vld [vmem:[#allocation10 + $0x10] sm:$0xf]
        %v2812 = vld [vmem:[#allocation10 + $0x14] sm:$0xf]
        %v2813 = vld [vmem:[#allocation10 + $0x18] sm:$0xf]
        %v2814 = vld [vmem:[#allocation10 + $0x1c] sm:$0xf]
        %v2815 = vld [vmem:[#allocation10 + $0x20] sm:$0xf]
        %v2816 = vld [vmem:[#allocation10 + $0x24] sm:$0xf]
        %v2817 = vld [vmem:[#allocation10 + $0x28] sm:$0xf]
        %v2818 = vld [vmem:[#allocation10 + $0x2c] sm:$0xf]
        %v2819 = vld [vmem:[#allocation10 + $0x30] sm:$0xf]
        %v2820 = vld [vmem:[#allocation10 + $0x34] sm:$0xf]
        %v2821 = vld [vmem:[#allocation10 + $0x38] sm:$0xf]
        %v2822 = vld [vmem:[#allocation10 + $0x3c] sm:$0xf]
        %v2823 = vld [vmem:[#allocation10 + $0x40] sm:$0xf]
        %v2824 = vld [vmem:[#allocation10 + $0x44] sm:$0xf]
        %v2825 = vld [vmem:[#allocation10 + $0x48] sm:$0xf]
        %v2826 = vld [vmem:[#allocation10 + $0x4c] sm:$0xf]
        %v2827 = vld [vmem:[#allocation10 + $0x50] sm:$0xf]
        %v2828 = vld [vmem:[#allocation10 + $0x54] sm:$0xf]
        %v2829 = vld [vmem:[#allocation10 + $0x58] sm:$0xf]
        %v2830 = vld [vmem:[#allocation10 + $0x5c] sm:$0xf]
        %v2831 = vld [vmem:[#allocation10 + $0x60] sm:$0xf]
        %v2832 = vld [vmem:[#allocation10 + $0x64] sm:$0xf]
        %v2833 = vld [vmem:[#allocation10 + $0x68] sm:$0xf]
        %v2834 = vld [vmem:[#allocation10 + $0x6c] sm:$0xf]
        %v2835 = vld [vmem:[#allocation10 + $0x70] sm:$0xf]
        %v2836 = vld [vmem:[#allocation10 + $0x74] sm:$0xf]
        %v2837 = vld [vmem:[#allocation10 + $0x78] sm:$0xf]
        %v2838 = vld [vmem:[#allocation10 + $0x7c] sm:$0xf]
        %v2871 = vunpack.c.l.b16 %v2807
        %v2872 = vunpack.c.l.b16 %v2808
        %v2873 = vunpack.c.l.b16 %v2809
        %v2874 = vunpack.c.l.b16 %v2810
        %v2875 = vunpack.c.l.b16 %v2811
        %v2876 = vunpack.c.l.b16 %v2812
        %v2877 = vunpack.c.l.b16 %v2813
        %v2878 = vunpack.c.l.b16 %v2814
        %v2879 = vunpack.c.l.b16 %v2815
        %v2880 = vunpack.c.l.b16 %v2816
        %v2881 = vunpack.c.l.b16 %v2817
        %v2882 = vunpack.c.l.b16 %v2818
        %v2883 = vunpack.c.l.b16 %v2819
        %v2884 = vunpack.c.l.b16 %v2820
        %v2885 = vunpack.c.l.b16 %v2821
        %v2886 = vunpack.c.l.b16 %v2822
        %v2887 = vunpack.c.l.b16 %v2823
        %v2888 = vunpack.c.l.b16 %v2824
        %v2889 = vunpack.c.l.b16 %v2825
        %v2890 = vunpack.c.l.b16 %v2826
        %v2891 = vunpack.c.l.b16 %v2827
        %v2892 = vunpack.c.l.b16 %v2828
        %v2893 = vunpack.c.l.b16 %v2829
        %v2894 = vunpack.c.l.b16 %v2830
        %v2895 = vunpack.c.l.b16 %v2831
        %v2896 = vunpack.c.l.b16 %v2832
        %v2897 = vunpack.c.l.b16 %v2833
        %v2898 = vunpack.c.l.b16 %v2834
        %v2899 = vunpack.c.l.b16 %v2835
        %v2900 = vunpack.c.l.b16 %v2836
        %v2901 = vunpack.c.l.b16 %v2837
        %v2902 = vunpack.c.l.b16 %v2838
        %v2903 = vpack.c.b16 %v2872, %v2871
        %v2904 = vpack.c.b16 %v2874, %v2873
        %v2905 = vpack.c.b16 %v2876, %v2875
        %v2906 = vpack.c.b16 %v2878, %v2877
        %v2907 = vpack.c.b16 %v2880, %v2879
        %v2908 = vpack.c.b16 %v2882, %v2881
        %v2909 = vpack.c.b16 %v2884, %v2883
        %v2910 = vpack.c.b16 %v2886, %v2885
        %v2911 = vpack.c.b16 %v2888, %v2887
        %v2912 = vpack.c.b16 %v2890, %v2889
        %v2913 = vpack.c.b16 %v2892, %v2891
        %v2914 = vpack.c.b16 %v2894, %v2893
        %v2915 = vpack.c.b16 %v2896, %v2895
        %v2916 = vpack.c.b16 %v2898, %v2897
        %v2917 = vpack.c.b16 %v2900, %v2899
        %v2918 = vpack.c.b16 %v2902, %v2901
        %2935 = vmatpush.bf16.msra.mxu0 %v2910
        %2936 = vmatpush.bf16.msra.mxu0 %v2909
        %2937 = vmatpush.bf16.msra.mxu0 %v2908
        %2938 = vmatpush.bf16.msra.mxu0 %v2907
        %2939 = vmatpush.bf16.msra.mxu0 %v2906
        %2940 = vmatpush.bf16.msra.mxu0 %v2905
        %2941 = vmatpush.bf16.msra.mxu0 %v2904
        %2942 = vmatpush.bf16.msra.mxu0 %v2903
        %2943 = vmatmul.bf16.gmra.mxu0 %v2650
        %v2944 = vpop.f32.mrf.mxu0
        %v2945 = vadd.f32 0.0, %v2944
        %v2946 = vpop.f32.mrf.mxu0
        %2947 = vdwg.mxu0
        %2948 = vmatpush.bf16.msra.mxu0 %v2918
        %2949 = vmatpush.bf16.msra.mxu0 %v2917
        %2950 = vmatpush.bf16.msra.mxu0 %v2916
        %2951 = vmatpush.bf16.msra.mxu0 %v2915
        %2952 = vmatpush.bf16.msra.mxu0 %v2914
        %2953 = vmatpush.bf16.msra.mxu0 %v2913
        %2954 = vmatpush.bf16.msra.mxu0 %v2912
        %2955 = vmatpush.bf16.msra.mxu0 %v2911
        %2956 = vmatmul.bf16.gmra.mxu0 %v2651
        %v2957 = vpop.f32.mrf.mxu0
        %v2958 = vadd.f32 %v2945, %v2957
        %v2959 = vpop.f32.mrf.mxu0
        %2960 = vdwg.mxu0
        %v2961 = vsub.f32 %v2804, %v2958
        %v2963 = vperm.slane %v2652, 0
        %v2965 = vadd.f32 %v2961, %v2963
        %2966 = vmatpush.bf16.msra.mxu0 %v2756
        %2967 = vmatpush.bf16.msra.mxu0 %v2755
        %2968 = vmatpush.bf16.msra.mxu0 %v2754
        %2969 = vmatpush.bf16.msra.mxu0 %v2753
        %2970 = vmatpush.bf16.msra.mxu0 %v2752
        %2971 = vmatpush.bf16.msra.mxu0 %v2751
        %2972 = vmatpush.bf16.msra.mxu0 %v2750
        %2973 = vmatpush.bf16.msra.mxu0 %v2749
        %2974 = vmatmul.bf16.gmra.mxu0 %v2650
        %v2975 = vpop.f32.mrf.mxu0
        %v2976 = vadd.f32 0.0, %v2975
        %v2977 = vpop.f32.mrf.mxu0
        %2978 = vdwg.mxu0
        %2979 = vmatpush.bf16.msra.mxu0 %v2764
        %2980 = vmatpush.bf16.msra.mxu0 %v2763
        %2981 = vmatpush.bf16.msra.mxu0 %v2762
        %2982 = vmatpush.bf16.msra.mxu0 %v2761
        %2983 = vmatpush.bf16.msra.mxu0 %v2760
        %2984 = vmatpush.bf16.msra.mxu0 %v2759
        %2985 = vmatpush.bf16.msra.mxu0 %v2758
        %2986 = vmatpush.bf16.msra.mxu0 %v2757
        %2987 = vmatmul.bf16.gmra.mxu0 %v2651
        %v2988 = vpop.f32.mrf.mxu0
        %v2989 = vadd.f32 %v2976, %v2988
        %v2990 = vpop.f32.mrf.mxu0
        %2991 = vdwg.mxu0
        %2992 = vmatpush.bf16.msra.mxu0 %v2910
        %2993 = vmatpush.bf16.msra.mxu0 %v2909
        %2994 = vmatpush.bf16.msra.mxu0 %v2908
        %2995 = vmatpush.bf16.msra.mxu0 %v2907
        %2996 = vmatpush.bf16.msra.mxu0 %v2906
        %2997 = vmatpush.bf16.msra.mxu0 %v2905
        %2998 = vmatpush.bf16.msra.mxu0 %v2904
        %2999 = vmatpush.bf16.msra.mxu0 %v2903
        %3000 = vmatmul.bf16.gmra.mxu0 %v2648
        %v3001 = vpop.f32.mrf.mxu0
        %v3002 = vadd.f32 %v2989, %v3001
        %v3003 = vpop.f32.mrf.mxu0
        %3004 = vdwg.mxu0
        %3005 = vmatpush.bf16.msra.mxu0 %v2918
        %3006 = vmatpush.bf16.msra.mxu0 %v2917
        %3007 = vmatpush.bf16.msra.mxu0 %v2916
        %3008 = vmatpush.bf16.msra.mxu0 %v2915
        %3009 = vmatpush.bf16.msra.mxu0 %v2914
        %3010 = vmatpush.bf16.msra.mxu0 %v2913
        %3011 = vmatpush.bf16.msra.mxu0 %v2912
        %3012 = vmatpush.bf16.msra.mxu0 %v2911
        %3013 = vmatmul.bf16.gmra.mxu0 %v2649
        %v3014 = vpop.f32.mrf.mxu0
        %v3015 = vadd.f32 %v3002, %v3014
        %v3016 = vpop.f32.mrf.mxu0
        %3017 = vdwg.mxu0
        %v3018 = vadd.f32 %v3015, %v2963
        %v3019 = vpack.c.bf16 %v2965, %v2965
        %v3020 = vpack.c.bf16 %v3018, %v3018
        %v3021 = vld [vmem:[%s8] sm:$0x3]
        %v3022 = vld [vmem:[#allocation13] sm:$0xff]
        %v3023 = vld [vmem:[#allocation13 + $0x8] sm:$0xff]
        %v3024 = vld [vmem:[#allocation13 + $0x10] sm:$0xff]
        %v3025 = vld [vmem:[#allocation13 + $0x18] sm:$0xff]
        %v3026 = vld [vmem:[#allocation13 + $0x20] sm:$0xff]
        %v3027 = vld [vmem:[#allocation13 + $0x28] sm:$0xff]
        %v3028 = vld [vmem:[#allocation13 + $0x30] sm:$0xff]
        %v3029 = vld [vmem:[#allocation13 + $0x38] sm:$0xff]
        %v3030 = vld [vmem:[#allocation13 + $0x40] sm:$0xff]
        %v3031 = vld [vmem:[#allocation13 + $0x48] sm:$0xff]
        %v3032 = vld [vmem:[#allocation13 + $0x50] sm:$0xff]
        %v3033 = vld [vmem:[#allocation13 + $0x58] sm:$0xff]
        %v3034 = vld [vmem:[#allocation13 + $0x60] sm:$0xff]
        %v3035 = vld [vmem:[#allocation13 + $0x68] sm:$0xff]
        %v3036 = vld [vmem:[#allocation13 + $0x70] sm:$0xff]
        %v3037 = vld [vmem:[#allocation13 + $0x78] sm:$0xff]
        %v3054 = vunpack.c.l.b16 %v3022
        %v3055 = vunpack.c.h.b16 %v3022
        %v3056 = vunpack.c.l.b16 %v3023
        %v3057 = vunpack.c.h.b16 %v3023
        %v3058 = vunpack.c.l.b16 %v3024
        %v3059 = vunpack.c.h.b16 %v3024
        %v3060 = vunpack.c.l.b16 %v3025
        %v3061 = vunpack.c.h.b16 %v3025
        %v3062 = vunpack.c.l.b16 %v3026
        %v3063 = vunpack.c.h.b16 %v3026
        %v3064 = vunpack.c.l.b16 %v3027
        %v3065 = vunpack.c.h.b16 %v3027
        %v3066 = vunpack.c.l.b16 %v3028
        %v3067 = vunpack.c.h.b16 %v3028
        %v3068 = vunpack.c.l.b16 %v3029
        %v3069 = vunpack.c.h.b16 %v3029
        %v3070 = vunpack.c.l.b16 %v3030
        %v3071 = vunpack.c.h.b16 %v3030
        %v3072 = vunpack.c.l.b16 %v3031
        %v3073 = vunpack.c.h.b16 %v3031
        %v3074 = vunpack.c.l.b16 %v3032
        %v3075 = vunpack.c.h.b16 %v3032
        %v3076 = vunpack.c.l.b16 %v3033
        %v3077 = vunpack.c.h.b16 %v3033
        %v3078 = vunpack.c.l.b16 %v3034
        %v3079 = vunpack.c.h.b16 %v3034
        %v3080 = vunpack.c.l.b16 %v3035
        %v3081 = vunpack.c.h.b16 %v3035
        %v3082 = vunpack.c.l.b16 %v3036
        %v3083 = vunpack.c.h.b16 %v3036
        %v3084 = vunpack.c.l.b16 %v3037
        %v3085 = vunpack.c.h.b16 %v3037
        %v3086 = vpack.c.b16 %v3056, %v3054
        %v3087 = vpack.c.b16 %v3057, %v3055
        %v3088 = vpack.c.b16 %v3060, %v3058
        %v3089 = vpack.c.b16 %v3061, %v3059
        %v3090 = vpack.c.b16 %v3064, %v3062
        %v3091 = vpack.c.b16 %v3065, %v3063
        %v3092 = vpack.c.b16 %v3068, %v3066
        %v3093 = vpack.c.b16 %v3069, %v3067
        %v3094 = vpack.c.b16 %v3072, %v3070
        %v3095 = vpack.c.b16 %v3073, %v3071
        %v3096 = vpack.c.b16 %v3076, %v3074
        %v3097 = vpack.c.b16 %v3077, %v3075
        %v3098 = vpack.c.b16 %v3080, %v3078
        %v3099 = vpack.c.b16 %v3081, %v3079
        %v3100 = vpack.c.b16 %v3084, %v3082
        %v3101 = vpack.c.b16 %v3085, %v3083
        %3118 = vmatpush.bf16.msra.mxu0 %v3100
        %3119 = vmatpush.bf16.msra.mxu0 %v3098
        %3120 = vmatpush.bf16.msra.mxu0 %v3096
        %3121 = vmatpush.bf16.msra.mxu0 %v3094
        %3122 = vmatpush.bf16.msra.mxu0 %v3092
        %3123 = vmatpush.bf16.msra.mxu0 %v3090
        %3124 = vmatpush.bf16.msra.mxu0 %v3088
        %3125 = vmatpush.bf16.msra.mxu0 %v3086
        %3126 = vmatmul.bf16.gmra.mxu0 %v3019
        %v3127 = vpop.f32.mrf.mxu0
        %v3128 = vadd.f32 0.0, %v3127
        %v3129 = vpop.f32.mrf.mxu0
        %3130 = vdwg.mxu0
        %3131 = vmatpush.bf16.msra.mxu0 %v3101
        %3132 = vmatpush.bf16.msra.mxu0 %v3099
        %3133 = vmatpush.bf16.msra.mxu0 %v3097
        %3134 = vmatpush.bf16.msra.mxu0 %v3095
        %3135 = vmatpush.bf16.msra.mxu0 %v3093
        %3136 = vmatpush.bf16.msra.mxu0 %v3091
        %3137 = vmatpush.bf16.msra.mxu0 %v3089
        %3138 = vmatpush.bf16.msra.mxu0 %v3087
        %3139 = vmatmul.bf16.gmra.mxu0 %v3019
        %v3140 = vpop.f32.mrf.mxu0
        %v3141 = vadd.f32 0.0, %v3140
        %v3142 = vpop.f32.mrf.mxu0
        %3143 = vdwg.mxu0
        %v3144 = vld [vmem:[#allocation14] sm:$0xff]
        %v3145 = vld [vmem:[#allocation14 + $0x8] sm:$0xff]
        %v3146 = vld [vmem:[#allocation14 + $0x10] sm:$0xff]
        %v3147 = vld [vmem:[#allocation14 + $0x18] sm:$0xff]
        %v3148 = vld [vmem:[#allocation14 + $0x20] sm:$0xff]
        %v3149 = vld [vmem:[#allocation14 + $0x28] sm:$0xff]
        %v3150 = vld [vmem:[#allocation14 + $0x30] sm:$0xff]
        %v3151 = vld [vmem:[#allocation14 + $0x38] sm:$0xff]
        %v3152 = vld [vmem:[#allocation14 + $0x40] sm:$0xff]
        %v3153 = vld [vmem:[#allocation14 + $0x48] sm:$0xff]
        %v3154 = vld [vmem:[#allocation14 + $0x50] sm:$0xff]
        %v3155 = vld [vmem:[#allocation14 + $0x58] sm:$0xff]
        %v3156 = vld [vmem:[#allocation14 + $0x60] sm:$0xff]
        %v3157 = vld [vmem:[#allocation14 + $0x68] sm:$0xff]
        %v3158 = vld [vmem:[#allocation14 + $0x70] sm:$0xff]
        %v3159 = vld [vmem:[#allocation14 + $0x78] sm:$0xff]
        %v3176 = vunpack.c.l.b16 %v3144
        %v3177 = vunpack.c.h.b16 %v3144
        %v3178 = vunpack.c.l.b16 %v3145
        %v3179 = vunpack.c.h.b16 %v3145
        %v3180 = vunpack.c.l.b16 %v3146
        %v3181 = vunpack.c.h.b16 %v3146
        %v3182 = vunpack.c.l.b16 %v3147
        %v3183 = vunpack.c.h.b16 %v3147
        %v3184 = vunpack.c.l.b16 %v3148
        %v3185 = vunpack.c.h.b16 %v3148
        %v3186 = vunpack.c.l.b16 %v3149
        %v3187 = vunpack.c.h.b16 %v3149
        %v3188 = vunpack.c.l.b16 %v3150
        %v3189 = vunpack.c.h.b16 %v3150
        %v3190 = vunpack.c.l.b16 %v3151
        %v3191 = vunpack.c.h.b16 %v3151
        %v3192 = vunpack.c.l.b16 %v3152
        %v3193 = vunpack.c.h.b16 %v3152
        %v3194 = vunpack.c.l.b16 %v3153
        %v3195 = vunpack.c.h.b16 %v3153
        %v3196 = vunpack.c.l.b16 %v3154
        %v3197 = vunpack.c.h.b16 %v3154
        %v3198 = vunpack.c.l.b16 %v3155
        %v3199 = vunpack.c.h.b16 %v3155
        %v3200 = vunpack.c.l.b16 %v3156
        %v3201 = vunpack.c.h.b16 %v3156
        %v3202 = vunpack.c.l.b16 %v3157
        %v3203 = vunpack.c.h.b16 %v3157
        %v3204 = vunpack.c.l.b16 %v3158
        %v3205 = vunpack.c.h.b16 %v3158
        %v3206 = vunpack.c.l.b16 %v3159
        %v3207 = vunpack.c.h.b16 %v3159
        %v3208 = vpack.c.b16 %v3178, %v3176
        %v3209 = vpack.c.b16 %v3179, %v3177
        %v3210 = vpack.c.b16 %v3182, %v3180
        %v3211 = vpack.c.b16 %v3183, %v3181
        %v3212 = vpack.c.b16 %v3186, %v3184
        %v3213 = vpack.c.b16 %v3187, %v3185
        %v3214 = vpack.c.b16 %v3190, %v3188
        %v3215 = vpack.c.b16 %v3191, %v3189
        %v3216 = vpack.c.b16 %v3194, %v3192
        %v3217 = vpack.c.b16 %v3195, %v3193
        %v3218 = vpack.c.b16 %v3198, %v3196
        %v3219 = vpack.c.b16 %v3199, %v3197
        %v3220 = vpack.c.b16 %v3202, %v3200
        %v3221 = vpack.c.b16 %v3203, %v3201
        %v3222 = vpack.c.b16 %v3206, %v3204
        %v3223 = vpack.c.b16 %v3207, %v3205
        %3240 = vmatpush.bf16.msra.mxu0 %v3222
        %3241 = vmatpush.bf16.msra.mxu0 %v3220
        %3242 = vmatpush.bf16.msra.mxu0 %v3218
        %3243 = vmatpush.bf16.msra.mxu0 %v3216
        %3244 = vmatpush.bf16.msra.mxu0 %v3214
        %3245 = vmatpush.bf16.msra.mxu0 %v3212
        %3246 = vmatpush.bf16.msra.mxu0 %v3210
        %3247 = vmatpush.bf16.msra.mxu0 %v3208
        %3248 = vmatmul.bf16.gmra.mxu0 %v3020
        %v3249 = vpop.f32.mrf.mxu0
        %v3250 = vadd.f32 0.0, %v3249
        %v3251 = vpop.f32.mrf.mxu0
        %3252 = vdwg.mxu0
        %3253 = vmatpush.bf16.msra.mxu0 %v3223
        %3254 = vmatpush.bf16.msra.mxu0 %v3221
        %3255 = vmatpush.bf16.msra.mxu0 %v3219
        %3256 = vmatpush.bf16.msra.mxu0 %v3217
        %3257 = vmatpush.bf16.msra.mxu0 %v3215
        %3258 = vmatpush.bf16.msra.mxu0 %v3213
        %3259 = vmatpush.bf16.msra.mxu0 %v3211
        %3260 = vmatpush.bf16.msra.mxu0 %v3209
        %3261 = vmatmul.bf16.gmra.mxu0 %v3020
        %v3262 = vpop.f32.mrf.mxu0
        %v3263 = vadd.f32 0.0, %v3262
        %v3264 = vpop.f32.mrf.mxu0
        %3265 = vdwg.mxu0
        %v3266 = vsub.f32 %v3128, %v3250
        %v3267 = vsub.f32 %v3141, %v3263
        %v3269 = vperm.slane %v3021, 0
        %v3270 = vperm.slane %v3021, 1
        %v3273 = vadd.f32 %v3266, %v3269
        %v3274 = vadd.f32 %v3267, %v3270
        %vm3275 = vcmp.ge.f32.partialorder %v3273, 0.0
        %vm3276 = vcmp.ge.f32.partialorder %v3274, 0.0
        %v3277 = vmul.f32 %v3273, 0.01
        %v3278 = vmul.f32 %v3274, 0.01
        %v3279 = vsel %vm3275, %v3273, %v3277
        %v3280 = vsel %vm3276, %v3274, %v3278
        %v3281 = vpack.c.bf16 %v3279, %v3279
        %v3282 = vpack.c.bf16 %v3280, %v3280
        %3283 = vmatpush.bf16.msra.mxu0 %v3100
        %3284 = vmatpush.bf16.msra.mxu0 %v3098
        %3285 = vmatpush.bf16.msra.mxu0 %v3096
        %3286 = vmatpush.bf16.msra.mxu0 %v3094
        %3287 = vmatpush.bf16.msra.mxu0 %v3092
        %3288 = vmatpush.bf16.msra.mxu0 %v3090
        %3289 = vmatpush.bf16.msra.mxu0 %v3088
        %3290 = vmatpush.bf16.msra.mxu0 %v3086
        %3291 = vmatmul.bf16.gmra.mxu0 %v3020
        %v3292 = vpop.f32.mrf.mxu0
        %v3293 = vadd.f32 0.0, %v3292
        %v3294 = vpop.f32.mrf.mxu0
        %3295 = vdwg.mxu0
        %3296 = vmatpush.bf16.msra.mxu0 %v3101
        %3297 = vmatpush.bf16.msra.mxu0 %v3099
        %3298 = vmatpush.bf16.msra.mxu0 %v3097
        %3299 = vmatpush.bf16.msra.mxu0 %v3095
        %3300 = vmatpush.bf16.msra.mxu0 %v3093
        %3301 = vmatpush.bf16.msra.mxu0 %v3091
        %3302 = vmatpush.bf16.msra.mxu0 %v3089
        %3303 = vmatpush.bf16.msra.mxu0 %v3087
        %3304 = vmatmul.bf16.gmra.mxu0 %v3020
        %v3305 = vpop.f32.mrf.mxu0
        %v3306 = vadd.f32 0.0, %v3305
        %v3307 = vpop.f32.mrf.mxu0
        %3308 = vdwg.mxu0
        %3309 = vmatpush.bf16.msra.mxu0 %v3222
        %3310 = vmatpush.bf16.msra.mxu0 %v3220
        %3311 = vmatpush.bf16.msra.mxu0 %v3218
        %3312 = vmatpush.bf16.msra.mxu0 %v3216
        %3313 = vmatpush.bf16.msra.mxu0 %v3214
        %3314 = vmatpush.bf16.msra.mxu0 %v3212
        %3315 = vmatpush.bf16.msra.mxu0 %v3210
        %3316 = vmatpush.bf16.msra.mxu0 %v3208
        %3317 = vmatmul.bf16.gmra.mxu0 %v3019
        %v3318 = vpop.f32.mrf.mxu0
        %v3319 = vadd.f32 %v3293, %v3318
        %v3320 = vpop.f32.mrf.mxu0
        %3321 = vdwg.mxu0
        %3322 = vmatpush.bf16.msra.mxu0 %v3223
        %3323 = vmatpush.bf16.msra.mxu0 %v3221
        %3324 = vmatpush.bf16.msra.mxu0 %v3219
        %3325 = vmatpush.bf16.msra.mxu0 %v3217
        %3326 = vmatpush.bf16.msra.mxu0 %v3215
        %3327 = vmatpush.bf16.msra.mxu0 %v3213
        %3328 = vmatpush.bf16.msra.mxu0 %v3211
        %3329 = vmatpush.bf16.msra.mxu0 %v3209
        %3330 = vmatmul.bf16.gmra.mxu0 %v3019
        %v3331 = vpop.f32.mrf.mxu0
        %v3332 = vadd.f32 %v3306, %v3331
        %v3333 = vpop.f32.mrf.mxu0
        %3334 = vdwg.mxu0
        %v3335 = vadd.f32 %v3319, %v3269
        %v3336 = vadd.f32 %v3332, %v3270
        %vm3337 = vcmp.ge.f32.partialorder %v3335, 0.0
        %vm3338 = vcmp.ge.f32.partialorder %v3336, 0.0
        %v3339 = vmul.f32 %v3335, 0.01
        %v3340 = vmul.f32 %v3336, 0.01
        %v3341 = vsel %vm3337, %v3335, %v3339
        %v3342 = vsel %vm3338, %v3336, %v3340
        %v3343 = vpack.c.bf16 %v3341, %v3341
        %v3344 = vpack.c.bf16 %v3342, %v3342
        %v3345 = vld [vmem:[%s654] sm:$0xf]
        %v3346 = vld [vmem:[%s581] sm:$0xff]
        %v3347 = vld [vmem:[%s581 + $0x8] sm:$0xff]
        %v3348 = vld [vmem:[%s581 + $0x10] sm:$0xff]
        %v3349 = vld [vmem:[%s581 + $0x18] sm:$0xff]
        %v3350 = vld [vmem:[%s581 + $0x20] sm:$0xff]
        %v3351 = vld [vmem:[%s581 + $0x28] sm:$0xff]
        %v3352 = vld [vmem:[%s581 + $0x30] sm:$0xff]
        %v3353 = vld [vmem:[%s581 + $0x38] sm:$0xff]
        %v3354 = vld [vmem:[%s581 + $0x40] sm:$0xff]
        %v3355 = vld [vmem:[%s581 + $0x48] sm:$0xff]
        %v3356 = vld [vmem:[%s581 + $0x50] sm:$0xff]
        %v3357 = vld [vmem:[%s581 + $0x58] sm:$0xff]
        %v3358 = vld [vmem:[%s581 + $0x60] sm:$0xff]
        %v3359 = vld [vmem:[%s581 + $0x68] sm:$0xff]
        %v3360 = vld [vmem:[%s581 + $0x70] sm:$0xff]
        %v3361 = vld [vmem:[%s581 + $0x78] sm:$0xff]
        %v3362 = vld [vmem:[%s581 + $0x80] sm:$0xff]
        %v3363 = vld [vmem:[%s581 + $0x88] sm:$0xff]
        %v3364 = vld [vmem:[%s581 + $0x90] sm:$0xff]
        %v3365 = vld [vmem:[%s581 + $0x98] sm:$0xff]
        %v3366 = vld [vmem:[%s581 + $0xa0] sm:$0xff]
        %v3367 = vld [vmem:[%s581 + $0xa8] sm:$0xff]
        %v3368 = vld [vmem:[%s581 + $0xb0] sm:$0xff]
        %v3369 = vld [vmem:[%s581 + $0xb8] sm:$0xff]
        %v3370 = vld [vmem:[%s581 + $0xc0] sm:$0xff]
        %v3371 = vld [vmem:[%s581 + $0xc8] sm:$0xff]
        %v3372 = vld [vmem:[%s581 + $0xd0] sm:$0xff]
        %v3373 = vld [vmem:[%s581 + $0xd8] sm:$0xff]
        %v3374 = vld [vmem:[%s581 + $0xe0] sm:$0xff]
        %v3375 = vld [vmem:[%s581 + $0xe8] sm:$0xff]
        %v3376 = vld [vmem:[%s581 + $0xf0] sm:$0xff]
        %v3377 = vld [vmem:[%s581 + $0xf8] sm:$0xff]
        %v3378 = vld [vmem:[%s581 + $0x100] sm:$0xff]
        %v3379 = vld [vmem:[%s581 + $0x108] sm:$0xff]
        %v3380 = vld [vmem:[%s581 + $0x110] sm:$0xff]
        %v3381 = vld [vmem:[%s581 + $0x118] sm:$0xff]
        %v3382 = vld [vmem:[%s581 + $0x120] sm:$0xff]
        %v3383 = vld [vmem:[%s581 + $0x128] sm:$0xff]
        %v3384 = vld [vmem:[%s581 + $0x130] sm:$0xff]
        %v3385 = vld [vmem:[%s581 + $0x138] sm:$0xff]
        %v3386 = vld [vmem:[%s581 + $0x140] sm:$0xff]
        %v3387 = vld [vmem:[%s581 + $0x148] sm:$0xff]
        %v3388 = vld [vmem:[%s581 + $0x150] sm:$0xff]
        %v3389 = vld [vmem:[%s581 + $0x158] sm:$0xff]
        %v3390 = vld [vmem:[%s581 + $0x160] sm:$0xff]
        %v3391 = vld [vmem:[%s581 + $0x168] sm:$0xff]
        %v3392 = vld [vmem:[%s581 + $0x170] sm:$0xff]
        %v3393 = vld [vmem:[%s581 + $0x178] sm:$0xff]
        %v3394 = vld [vmem:[%s581 + $0x180] sm:$0xff]
        %v3395 = vld [vmem:[%s581 + $0x188] sm:$0xff]
        %v3396 = vld [vmem:[%s581 + $0x190] sm:$0xff]
        %v3397 = vld [vmem:[%s581 + $0x198] sm:$0xff]
        %v3398 = vld [vmem:[%s581 + $0x1a0] sm:$0xff]
        %v3399 = vld [vmem:[%s581 + $0x1a8] sm:$0xff]
        %v3400 = vld [vmem:[%s581 + $0x1b0] sm:$0xff]
        %v3401 = vld [vmem:[%s581 + $0x1b8] sm:$0xff]
        %v3402 = vld [vmem:[%s581 + $0x1c0] sm:$0xff]
        %v3403 = vld [vmem:[%s581 + $0x1c8] sm:$0xff]
        %v3404 = vld [vmem:[%s581 + $0x1d0] sm:$0xff]
        %v3405 = vld [vmem:[%s581 + $0x1d8] sm:$0xff]
        %v3406 = vld [vmem:[%s581 + $0x1e0] sm:$0xff]
        %v3407 = vld [vmem:[%s581 + $0x1e8] sm:$0xff]
        %v3408 = vld [vmem:[%s581 + $0x1f0] sm:$0xff]
        %v3409 = vld [vmem:[%s581 + $0x1f8] sm:$0xff]
        %v3474 = vunpack.c.l.b16 %v3346
        %v3475 = vunpack.c.h.b16 %v3346
        %v3476 = vunpack.c.l.b16 %v3347
        %v3477 = vunpack.c.h.b16 %v3347
        %v3478 = vunpack.c.l.b16 %v3348
        %v3479 = vunpack.c.h.b16 %v3348
        %v3480 = vunpack.c.l.b16 %v3349
        %v3481 = vunpack.c.h.b16 %v3349
        %v3482 = vunpack.c.l.b16 %v3350
        %v3483 = vunpack.c.h.b16 %v3350
        %v3484 = vunpack.c.l.b16 %v3351
        %v3485 = vunpack.c.h.b16 %v3351
        %v3486 = vunpack.c.l.b16 %v3352
        %v3487 = vunpack.c.h.b16 %v3352
        %v3488 = vunpack.c.l.b16 %v3353
        %v3489 = vunpack.c.h.b16 %v3353
        %v3490 = vunpack.c.l.b16 %v3354
        %v3491 = vunpack.c.h.b16 %v3354
        %v3492 = vunpack.c.l.b16 %v3355
        %v3493 = vunpack.c.h.b16 %v3355
        %v3494 = vunpack.c.l.b16 %v3356
        %v3495 = vunpack.c.h.b16 %v3356
        %v3496 = vunpack.c.l.b16 %v3357
        %v3497 = vunpack.c.h.b16 %v3357
        %v3498 = vunpack.c.l.b16 %v3358
        %v3499 = vunpack.c.h.b16 %v3358
        %v3500 = vunpack.c.l.b16 %v3359
        %v3501 = vunpack.c.h.b16 %v3359
        %v3502 = vunpack.c.l.b16 %v3360
        %v3503 = vunpack.c.h.b16 %v3360
        %v3504 = vunpack.c.l.b16 %v3361
        %v3505 = vunpack.c.h.b16 %v3361
        %v3506 = vunpack.c.l.b16 %v3362
        %v3507 = vunpack.c.h.b16 %v3362
        %v3508 = vunpack.c.l.b16 %v3363
        %v3509 = vunpack.c.h.b16 %v3363
        %v3510 = vunpack.c.l.b16 %v3364
        %v3511 = vunpack.c.h.b16 %v3364
        %v3512 = vunpack.c.l.b16 %v3365
        %v3513 = vunpack.c.h.b16 %v3365
        %v3514 = vunpack.c.l.b16 %v3366
        %v3515 = vunpack.c.h.b16 %v3366
        %v3516 = vunpack.c.l.b16 %v3367
        %v3517 = vunpack.c.h.b16 %v3367
        %v3518 = vunpack.c.l.b16 %v3368
        %v3519 = vunpack.c.h.b16 %v3368
        %v3520 = vunpack.c.l.b16 %v3369
        %v3521 = vunpack.c.h.b16 %v3369
        %v3522 = vunpack.c.l.b16 %v3370
        %v3523 = vunpack.c.h.b16 %v3370
        %v3524 = vunpack.c.l.b16 %v3371
        %v3525 = vunpack.c.h.b16 %v3371
        %v3526 = vunpack.c.l.b16 %v3372
        %v3527 = vunpack.c.h.b16 %v3372
        %v3528 = vunpack.c.l.b16 %v3373
        %v3529 = vunpack.c.h.b16 %v3373
        %v3530 = vunpack.c.l.b16 %v3374
        %v3531 = vunpack.c.h.b16 %v3374
        %v3532 = vunpack.c.l.b16 %v3375
        %v3533 = vunpack.c.h.b16 %v3375
        %v3534 = vunpack.c.l.b16 %v3376
        %v3535 = vunpack.c.h.b16 %v3376
        %v3536 = vunpack.c.l.b16 %v3377
        %v3537 = vunpack.c.h.b16 %v3377
        %v3538 = vunpack.c.l.b16 %v3378
        %v3539 = vunpack.c.h.b16 %v3378
        %v3540 = vunpack.c.l.b16 %v3379
        %v3541 = vunpack.c.h.b16 %v3379
        %v3542 = vunpack.c.l.b16 %v3380
        %v3543 = vunpack.c.h.b16 %v3380
        %v3544 = vunpack.c.l.b16 %v3381
        %v3545 = vunpack.c.h.b16 %v3381
        %v3546 = vunpack.c.l.b16 %v3382
        %v3547 = vunpack.c.h.b16 %v3382
        %v3548 = vunpack.c.l.b16 %v3383
        %v3549 = vunpack.c.h.b16 %v3383
        %v3550 = vunpack.c.l.b16 %v3384
        %v3551 = vunpack.c.h.b16 %v3384
        %v3552 = vunpack.c.l.b16 %v3385
        %v3553 = vunpack.c.h.b16 %v3385
        %v3554 = vunpack.c.l.b16 %v3386
        %v3555 = vunpack.c.h.b16 %v3386
        %v3556 = vunpack.c.l.b16 %v3387
        %v3557 = vunpack.c.h.b16 %v3387
        %v3558 = vunpack.c.l.b16 %v3388
        %v3559 = vunpack.c.h.b16 %v3388
        %v3560 = vunpack.c.l.b16 %v3389
        %v3561 = vunpack.c.h.b16 %v3389
        %v3562 = vunpack.c.l.b16 %v3390
        %v3563 = vunpack.c.h.b16 %v3390
        %v3564 = vunpack.c.l.b16 %v3391
        %v3565 = vunpack.c.h.b16 %v3391
        %v3566 = vunpack.c.l.b16 %v3392
        %v3567 = vunpack.c.h.b16 %v3392
        %v3568 = vunpack.c.l.b16 %v3393
        %v3569 = vunpack.c.h.b16 %v3393
        %v3570 = vunpack.c.l.b16 %v3394
        %v3571 = vunpack.c.h.b16 %v3394
        %v3572 = vunpack.c.l.b16 %v3395
        %v3573 = vunpack.c.h.b16 %v3395
        %v3574 = vunpack.c.l.b16 %v3396
        %v3575 = vunpack.c.h.b16 %v3396
        %v3576 = vunpack.c.l.b16 %v3397
        %v3577 = vunpack.c.h.b16 %v3397
        %v3578 = vunpack.c.l.b16 %v3398
        %v3579 = vunpack.c.h.b16 %v3398
        %v3580 = vunpack.c.l.b16 %v3399
        %v3581 = vunpack.c.h.b16 %v3399
        %v3582 = vunpack.c.l.b16 %v3400
        %v3583 = vunpack.c.h.b16 %v3400
        %v3584 = vunpack.c.l.b16 %v3401
        %v3585 = vunpack.c.h.b16 %v3401
        %v3586 = vunpack.c.l.b16 %v3402
        %v3587 = vunpack.c.h.b16 %v3402
        %v3588 = vunpack.c.l.b16 %v3403
        %v3589 = vunpack.c.h.b16 %v3403
        %v3590 = vunpack.c.l.b16 %v3404
        %v3591 = vunpack.c.h.b16 %v3404
        %v3592 = vunpack.c.l.b16 %v3405
        %v3593 = vunpack.c.h.b16 %v3405
        %v3594 = vunpack.c.l.b16 %v3406
        %v3595 = vunpack.c.h.b16 %v3406
        %v3596 = vunpack.c.l.b16 %v3407
        %v3597 = vunpack.c.h.b16 %v3407
        %v3598 = vunpack.c.l.b16 %v3408
        %v3599 = vunpack.c.h.b16 %v3408
        %v3600 = vunpack.c.l.b16 %v3409
        %v3601 = vunpack.c.h.b16 %v3409
        %v3602 = vpack.c.b16 %v3478, %v3474
        %v3603 = vpack.c.b16 %v3479, %v3475
        %v3604 = vpack.c.b16 %v3480, %v3476
        %v3605 = vpack.c.b16 %v3481, %v3477
        %v3606 = vpack.c.b16 %v3486, %v3482
        %v3607 = vpack.c.b16 %v3487, %v3483
        %v3608 = vpack.c.b16 %v3488, %v3484
        %v3609 = vpack.c.b16 %v3489, %v3485
        %v3610 = vpack.c.b16 %v3494, %v3490
        %v3611 = vpack.c.b16 %v3495, %v3491
        %v3612 = vpack.c.b16 %v3496, %v3492
        %v3613 = vpack.c.b16 %v3497, %v3493
        %v3614 = vpack.c.b16 %v3502, %v3498
        %v3615 = vpack.c.b16 %v3503, %v3499
        %v3616 = vpack.c.b16 %v3504, %v3500
        %v3617 = vpack.c.b16 %v3505, %v3501
        %v3618 = vpack.c.b16 %v3510, %v3506
        %v3619 = vpack.c.b16 %v3511, %v3507
        %v3620 = vpack.c.b16 %v3512, %v3508
        %v3621 = vpack.c.b16 %v3513, %v3509
        %v3622 = vpack.c.b16 %v3518, %v3514
        %v3623 = vpack.c.b16 %v3519, %v3515
        %v3624 = vpack.c.b16 %v3520, %v3516
        %v3625 = vpack.c.b16 %v3521, %v3517
        %v3626 = vpack.c.b16 %v3526, %v3522
        %v3627 = vpack.c.b16 %v3527, %v3523
        %v3628 = vpack.c.b16 %v3528, %v3524
        %v3629 = vpack.c.b16 %v3529, %v3525
        %v3630 = vpack.c.b16 %v3534, %v3530
        %v3631 = vpack.c.b16 %v3535, %v3531
        %v3632 = vpack.c.b16 %v3536, %v3532
        %v3633 = vpack.c.b16 %v3537, %v3533
        %v3634 = vpack.c.b16 %v3542, %v3538
        %v3635 = vpack.c.b16 %v3543, %v3539
        %v3636 = vpack.c.b16 %v3544, %v3540
        %v3637 = vpack.c.b16 %v3545, %v3541
        %v3638 = vpack.c.b16 %v3550, %v3546
        %v3639 = vpack.c.b16 %v3551, %v3547
        %v3640 = vpack.c.b16 %v3552, %v3548
        %v3641 = vpack.c.b16 %v3553, %v3549
        %v3642 = vpack.c.b16 %v3558, %v3554
        %v3643 = vpack.c.b16 %v3559, %v3555
        %v3644 = vpack.c.b16 %v3560, %v3556
        %v3645 = vpack.c.b16 %v3561, %v3557
        %v3646 = vpack.c.b16 %v3566, %v3562
        %v3647 = vpack.c.b16 %v3567, %v3563
        %v3648 = vpack.c.b16 %v3568, %v3564
        %v3649 = vpack.c.b16 %v3569, %v3565
        %v3650 = vpack.c.b16 %v3574, %v3570
        %v3651 = vpack.c.b16 %v3575, %v3571
        %v3652 = vpack.c.b16 %v3576, %v3572
        %v3653 = vpack.c.b16 %v3577, %v3573
        %v3654 = vpack.c.b16 %v3582, %v3578
        %v3655 = vpack.c.b16 %v3583, %v3579
        %v3656 = vpack.c.b16 %v3584, %v3580
        %v3657 = vpack.c.b16 %v3585, %v3581
        %v3658 = vpack.c.b16 %v3590, %v3586
        %v3659 = vpack.c.b16 %v3591, %v3587
        %v3660 = vpack.c.b16 %v3592, %v3588
        %v3661 = vpack.c.b16 %v3593, %v3589
        %v3662 = vpack.c.b16 %v3598, %v3594
        %v3663 = vpack.c.b16 %v3599, %v3595
        %v3664 = vpack.c.b16 %v3600, %v3596
        %v3665 = vpack.c.b16 %v3601, %v3597
        %3730 = vmatpush.bf16.msra.mxu0 %v3630
        %3731 = vmatpush.bf16.msra.mxu0 %v3626
        %3732 = vmatpush.bf16.msra.mxu0 %v3622
        %3733 = vmatpush.bf16.msra.mxu0 %v3618
        %3734 = vmatpush.bf16.msra.mxu0 %v3614
        %3735 = vmatpush.bf16.msra.mxu0 %v3610
        %3736 = vmatpush.bf16.msra.mxu0 %v3606
        %3737 = vmatpush.bf16.msra.mxu0 %v3602
        %3738 = vmatmul.bf16.gmra.mxu0 %v3281
        %v3739 = vpop.f32.mrf.mxu0
        %v3740 = vadd.f32 0.0, %v3739
        %v3741 = vpop.f32.mrf.mxu0
        %3742 = vdwg.mxu0
        %3743 = vmatpush.bf16.msra.mxu0 %v3662
        %3744 = vmatpush.bf16.msra.mxu0 %v3658
        %3745 = vmatpush.bf16.msra.mxu0 %v3654
        %3746 = vmatpush.bf16.msra.mxu0 %v3650
        %3747 = vmatpush.bf16.msra.mxu0 %v3646
        %3748 = vmatpush.bf16.msra.mxu0 %v3642
        %3749 = vmatpush.bf16.msra.mxu0 %v3638
        %3750 = vmatpush.bf16.msra.mxu0 %v3634
        %3751 = vmatmul.bf16.gmra.mxu0 %v3282
        %v3752 = vpop.f32.mrf.mxu0
        %v3753 = vadd.f32 %v3740, %v3752
        %v3754 = vpop.f32.mrf.mxu0
        %3755 = vdwg.mxu0
        %3756 = vmatpush.bf16.msra.mxu0 %v3631
        %3757 = vmatpush.bf16.msra.mxu0 %v3627
        %3758 = vmatpush.bf16.msra.mxu0 %v3623
        %3759 = vmatpush.bf16.msra.mxu0 %v3619
        %3760 = vmatpush.bf16.msra.mxu0 %v3615
        %3761 = vmatpush.bf16.msra.mxu0 %v3611
        %3762 = vmatpush.bf16.msra.mxu0 %v3607
        %3763 = vmatpush.bf16.msra.mxu0 %v3603
        %3764 = vmatmul.bf16.gmra.mxu0 %v3281
        %v3765 = vpop.f32.mrf.mxu0
        %v3766 = vadd.f32 0.0, %v3765
        %v3767 = vpop.f32.mrf.mxu0
        %3768 = vdwg.mxu0
        %3769 = vmatpush.bf16.msra.mxu0 %v3663
        %3770 = vmatpush.bf16.msra.mxu0 %v3659
        %3771 = vmatpush.bf16.msra.mxu0 %v3655
        %3772 = vmatpush.bf16.msra.mxu0 %v3651
        %3773 = vmatpush.bf16.msra.mxu0 %v3647
        %3774 = vmatpush.bf16.msra.mxu0 %v3643
        %3775 = vmatpush.bf16.msra.mxu0 %v3639
        %3776 = vmatpush.bf16.msra.mxu0 %v3635
        %3777 = vmatmul.bf16.gmra.mxu0 %v3282
        %v3778 = vpop.f32.mrf.mxu0
        %v3779 = vadd.f32 %v3766, %v3778
        %v3780 = vpop.f32.mrf.mxu0
        %3781 = vdwg.mxu0
        %3782 = vmatpush.bf16.msra.mxu0 %v3632
        %3783 = vmatpush.bf16.msra.mxu0 %v3628
        %3784 = vmatpush.bf16.msra.mxu0 %v3624
        %3785 = vmatpush.bf16.msra.mxu0 %v3620
        %3786 = vmatpush.bf16.msra.mxu0 %v3616
        %3787 = vmatpush.bf16.msra.mxu0 %v3612
        %3788 = vmatpush.bf16.msra.mxu0 %v3608
        %3789 = vmatpush.bf16.msra.mxu0 %v3604
        %3790 = vmatmul.bf16.gmra.mxu0 %v3281
        %v3791 = vpop.f32.mrf.mxu0
        %v3792 = vadd.f32 0.0, %v3791
        %v3793 = vpop.f32.mrf.mxu0
        %3794 = vdwg.mxu0
        %3795 = vmatpush.bf16.msra.mxu0 %v3664
        %3796 = vmatpush.bf16.msra.mxu0 %v3660
        %3797 = vmatpush.bf16.msra.mxu0 %v3656
        %3798 = vmatpush.bf16.msra.mxu0 %v3652
        %3799 = vmatpush.bf16.msra.mxu0 %v3648
        %3800 = vmatpush.bf16.msra.mxu0 %v3644
        %3801 = vmatpush.bf16.msra.mxu0 %v3640
        %3802 = vmatpush.bf16.msra.mxu0 %v3636
        %3803 = vmatmul.bf16.gmra.mxu0 %v3282
        %v3804 = vpop.f32.mrf.mxu0
        %v3805 = vadd.f32 %v3792, %v3804
        %v3806 = vpop.f32.mrf.mxu0
        %3807 = vdwg.mxu0
        %3808 = vmatpush.bf16.msra.mxu0 %v3633
        %3809 = vmatpush.bf16.msra.mxu0 %v3629
        %3810 = vmatpush.bf16.msra.mxu0 %v3625
        %3811 = vmatpush.bf16.msra.mxu0 %v3621
        %3812 = vmatpush.bf16.msra.mxu0 %v3617
        %3813 = vmatpush.bf16.msra.mxu0 %v3613
        %3814 = vmatpush.bf16.msra.mxu0 %v3609
        %3815 = vmatpush.bf16.msra.mxu0 %v3605
        %3816 = vmatmul.bf16.gmra.mxu0 %v3281
        %v3817 = vpop.f32.mrf.mxu0
        %v3818 = vadd.f32 0.0, %v3817
        %v3819 = vpop.f32.mrf.mxu0
        %3820 = vdwg.mxu0
        %3821 = vmatpush.bf16.msra.mxu0 %v3665
        %3822 = vmatpush.bf16.msra.mxu0 %v3661
        %3823 = vmatpush.bf16.msra.mxu0 %v3657
        %3824 = vmatpush.bf16.msra.mxu0 %v3653
        %3825 = vmatpush.bf16.msra.mxu0 %v3649
        %3826 = vmatpush.bf16.msra.mxu0 %v3645
        %3827 = vmatpush.bf16.msra.mxu0 %v3641
        %3828 = vmatpush.bf16.msra.mxu0 %v3637
        %3829 = vmatmul.bf16.gmra.mxu0 %v3282
        %v3830 = vpop.f32.mrf.mxu0
        %v3831 = vadd.f32 %v3818, %v3830
        %v3832 = vpop.f32.mrf.mxu0
        %3833 = vdwg.mxu0
        %v3834 = vld [vmem:[%s591] sm:$0xff]
        %v3835 = vld [vmem:[%s591 + $0x8] sm:$0xff]
        %v3836 = vld [vmem:[%s591 + $0x10] sm:$0xff]
        %v3837 = vld [vmem:[%s591 + $0x18] sm:$0xff]
        %v3838 = vld [vmem:[%s591 + $0x20] sm:$0xff]
        %v3839 = vld [vmem:[%s591 + $0x28] sm:$0xff]
        %v3840 = vld [vmem:[%s591 + $0x30] sm:$0xff]
        %v3841 = vld [vmem:[%s591 + $0x38] sm:$0xff]
        %v3842 = vld [vmem:[%s591 + $0x40] sm:$0xff]
        %v3843 = vld [vmem:[%s591 + $0x48] sm:$0xff]
        %v3844 = vld [vmem:[%s591 + $0x50] sm:$0xff]
        %v3845 = vld [vmem:[%s591 + $0x58] sm:$0xff]
        %v3846 = vld [vmem:[%s591 + $0x60] sm:$0xff]
        %v3847 = vld [vmem:[%s591 + $0x68] sm:$0xff]
        %v3848 = vld [vmem:[%s591 + $0x70] sm:$0xff]
        %v3849 = vld [vmem:[%s591 + $0x78] sm:$0xff]
        %v3850 = vld [vmem:[%s591 + $0x80] sm:$0xff]
        %v3851 = vld [vmem:[%s591 + $0x88] sm:$0xff]
        %v3852 = vld [vmem:[%s591 + $0x90] sm:$0xff]
        %v3853 = vld [vmem:[%s591 + $0x98] sm:$0xff]
        %v3854 = vld [vmem:[%s591 + $0xa0] sm:$0xff]
        %v3855 = vld [vmem:[%s591 + $0xa8] sm:$0xff]
        %v3856 = vld [vmem:[%s591 + $0xb0] sm:$0xff]
        %v3857 = vld [vmem:[%s591 + $0xb8] sm:$0xff]
        %v3858 = vld [vmem:[%s591 + $0xc0] sm:$0xff]
        %v3859 = vld [vmem:[%s591 + $0xc8] sm:$0xff]
        %v3860 = vld [vmem:[%s591 + $0xd0] sm:$0xff]
        %v3861 = vld [vmem:[%s591 + $0xd8] sm:$0xff]
        %v3862 = vld [vmem:[%s591 + $0xe0] sm:$0xff]
        %v3863 = vld [vmem:[%s591 + $0xe8] sm:$0xff]
        %v3864 = vld [vmem:[%s591 + $0xf0] sm:$0xff]
        %v3865 = vld [vmem:[%s591 + $0xf8] sm:$0xff]
        %v3866 = vld [vmem:[%s591 + $0x100] sm:$0xff]
        %v3867 = vld [vmem:[%s591 + $0x108] sm:$0xff]
        %v3868 = vld [vmem:[%s591 + $0x110] sm:$0xff]
        %v3869 = vld [vmem:[%s591 + $0x118] sm:$0xff]
        %v3870 = vld [vmem:[%s591 + $0x120] sm:$0xff]
        %v3871 = vld [vmem:[%s591 + $0x128] sm:$0xff]
        %v3872 = vld [vmem:[%s591 + $0x130] sm:$0xff]
        %v3873 = vld [vmem:[%s591 + $0x138] sm:$0xff]
        %v3874 = vld [vmem:[%s591 + $0x140] sm:$0xff]
        %v3875 = vld [vmem:[%s591 + $0x148] sm:$0xff]
        %v3876 = vld [vmem:[%s591 + $0x150] sm:$0xff]
        %v3877 = vld [vmem:[%s591 + $0x158] sm:$0xff]
        %v3878 = vld [vmem:[%s591 + $0x160] sm:$0xff]
        %v3879 = vld [vmem:[%s591 + $0x168] sm:$0xff]
        %v3880 = vld [vmem:[%s591 + $0x170] sm:$0xff]
        %v3881 = vld [vmem:[%s591 + $0x178] sm:$0xff]
        %v3882 = vld [vmem:[%s591 + $0x180] sm:$0xff]
        %v3883 = vld [vmem:[%s591 + $0x188] sm:$0xff]
        %v3884 = vld [vmem:[%s591 + $0x190] sm:$0xff]
        %v3885 = vld [vmem:[%s591 + $0x198] sm:$0xff]
        %v3886 = vld [vmem:[%s591 + $0x1a0] sm:$0xff]
        %v3887 = vld [vmem:[%s591 + $0x1a8] sm:$0xff]
        %v3888 = vld [vmem:[%s591 + $0x1b0] sm:$0xff]
        %v3889 = vld [vmem:[%s591 + $0x1b8] sm:$0xff]
        %v3890 = vld [vmem:[%s591 + $0x1c0] sm:$0xff]
        %v3891 = vld [vmem:[%s591 + $0x1c8] sm:$0xff]
        %v3892 = vld [vmem:[%s591 + $0x1d0] sm:$0xff]
        %v3893 = vld [vmem:[%s591 + $0x1d8] sm:$0xff]
        %v3894 = vld [vmem:[%s591 + $0x1e0] sm:$0xff]
        %v3895 = vld [vmem:[%s591 + $0x1e8] sm:$0xff]
        %v3896 = vld [vmem:[%s591 + $0x1f0] sm:$0xff]
        %v3897 = vld [vmem:[%s591 + $0x1f8] sm:$0xff]
        %v3962 = vunpack.c.l.b16 %v3834
        %v3963 = vunpack.c.h.b16 %v3834
        %v3964 = vunpack.c.l.b16 %v3835
        %v3965 = vunpack.c.h.b16 %v3835
        %v3966 = vunpack.c.l.b16 %v3836
        %v3967 = vunpack.c.h.b16 %v3836
        %v3968 = vunpack.c.l.b16 %v3837
        %v3969 = vunpack.c.h.b16 %v3837
        %v3970 = vunpack.c.l.b16 %v3838
        %v3971 = vunpack.c.h.b16 %v3838
        %v3972 = vunpack.c.l.b16 %v3839
        %v3973 = vunpack.c.h.b16 %v3839
        %v3974 = vunpack.c.l.b16 %v3840
        %v3975 = vunpack.c.h.b16 %v3840
        %v3976 = vunpack.c.l.b16 %v3841
        %v3977 = vunpack.c.h.b16 %v3841
        %v3978 = vunpack.c.l.b16 %v3842
        %v3979 = vunpack.c.h.b16 %v3842
        %v3980 = vunpack.c.l.b16 %v3843
        %v3981 = vunpack.c.h.b16 %v3843
        %v3982 = vunpack.c.l.b16 %v3844
        %v3983 = vunpack.c.h.b16 %v3844
        %v3984 = vunpack.c.l.b16 %v3845
        %v3985 = vunpack.c.h.b16 %v3845
        %v3986 = vunpack.c.l.b16 %v3846
        %v3987 = vunpack.c.h.b16 %v3846
        %v3988 = vunpack.c.l.b16 %v3847
        %v3989 = vunpack.c.h.b16 %v3847
        %v3990 = vunpack.c.l.b16 %v3848
        %v3991 = vunpack.c.h.b16 %v3848
        %v3992 = vunpack.c.l.b16 %v3849
        %v3993 = vunpack.c.h.b16 %v3849
        %v3994 = vunpack.c.l.b16 %v3850
        %v3995 = vunpack.c.h.b16 %v3850
        %v3996 = vunpack.c.l.b16 %v3851
        %v3997 = vunpack.c.h.b16 %v3851
        %v3998 = vunpack.c.l.b16 %v3852
        %v3999 = vunpack.c.h.b16 %v3852
        %v4000 = vunpack.c.l.b16 %v3853
        %v4001 = vunpack.c.h.b16 %v3853
        %v4002 = vunpack.c.l.b16 %v3854
        %v4003 = vunpack.c.h.b16 %v3854
        %v4004 = vunpack.c.l.b16 %v3855
        %v4005 = vunpack.c.h.b16 %v3855
        %v4006 = vunpack.c.l.b16 %v3856
        %v4007 = vunpack.c.h.b16 %v3856
        %v4008 = vunpack.c.l.b16 %v3857
        %v4009 = vunpack.c.h.b16 %v3857
        %v4010 = vunpack.c.l.b16 %v3858
        %v4011 = vunpack.c.h.b16 %v3858
        %v4012 = vunpack.c.l.b16 %v3859
        %v4013 = vunpack.c.h.b16 %v3859
        %v4014 = vunpack.c.l.b16 %v3860
        %v4015 = vunpack.c.h.b16 %v3860
        %v4016 = vunpack.c.l.b16 %v3861
        %v4017 = vunpack.c.h.b16 %v3861
        %v4018 = vunpack.c.l.b16 %v3862
        %v4019 = vunpack.c.h.b16 %v3862
        %v4020 = vunpack.c.l.b16 %v3863
        %v4021 = vunpack.c.h.b16 %v3863
        %v4022 = vunpack.c.l.b16 %v3864
        %v4023 = vunpack.c.h.b16 %v3864
        %v4024 = vunpack.c.l.b16 %v3865
        %v4025 = vunpack.c.h.b16 %v3865
        %v4026 = vunpack.c.l.b16 %v3866
        %v4027 = vunpack.c.h.b16 %v3866
        %v4028 = vunpack.c.l.b16 %v3867
        %v4029 = vunpack.c.h.b16 %v3867
        %v4030 = vunpack.c.l.b16 %v3868
        %v4031 = vunpack.c.h.b16 %v3868
        %v4032 = vunpack.c.l.b16 %v3869
        %v4033 = vunpack.c.h.b16 %v3869
        %v4034 = vunpack.c.l.b16 %v3870
        %v4035 = vunpack.c.h.b16 %v3870
        %v4036 = vunpack.c.l.b16 %v3871
        %v4037 = vunpack.c.h.b16 %v3871
        %v4038 = vunpack.c.l.b16 %v3872
        %v4039 = vunpack.c.h.b16 %v3872
        %v4040 = vunpack.c.l.b16 %v3873
        %v4041 = vunpack.c.h.b16 %v3873
        %v4042 = vunpack.c.l.b16 %v3874
        %v4043 = vunpack.c.h.b16 %v3874
        %v4044 = vunpack.c.l.b16 %v3875
        %v4045 = vunpack.c.h.b16 %v3875
        %v4046 = vunpack.c.l.b16 %v3876
        %v4047 = vunpack.c.h.b16 %v3876
        %v4048 = vunpack.c.l.b16 %v3877
        %v4049 = vunpack.c.h.b16 %v3877
        %v4050 = vunpack.c.l.b16 %v3878
        %v4051 = vunpack.c.h.b16 %v3878
        %v4052 = vunpack.c.l.b16 %v3879
        %v4053 = vunpack.c.h.b16 %v3879
        %v4054 = vunpack.c.l.b16 %v3880
        %v4055 = vunpack.c.h.b16 %v3880
        %v4056 = vunpack.c.l.b16 %v3881
        %v4057 = vunpack.c.h.b16 %v3881
        %v4058 = vunpack.c.l.b16 %v3882
        %v4059 = vunpack.c.h.b16 %v3882
        %v4060 = vunpack.c.l.b16 %v3883
        %v4061 = vunpack.c.h.b16 %v3883
        %v4062 = vunpack.c.l.b16 %v3884
        %v4063 = vunpack.c.h.b16 %v3884
        %v4064 = vunpack.c.l.b16 %v3885
        %v4065 = vunpack.c.h.b16 %v3885
        %v4066 = vunpack.c.l.b16 %v3886
        %v4067 = vunpack.c.h.b16 %v3886
        %v4068 = vunpack.c.l.b16 %v3887
        %v4069 = vunpack.c.h.b16 %v3887
        %v4070 = vunpack.c.l.b16 %v3888
        %v4071 = vunpack.c.h.b16 %v3888
        %v4072 = vunpack.c.l.b16 %v3889
        %v4073 = vunpack.c.h.b16 %v3889
        %v4074 = vunpack.c.l.b16 %v3890
        %v4075 = vunpack.c.h.b16 %v3890
        %v4076 = vunpack.c.l.b16 %v3891
        %v4077 = vunpack.c.h.b16 %v3891
        %v4078 = vunpack.c.l.b16 %v3892
        %v4079 = vunpack.c.h.b16 %v3892
        %v4080 = vunpack.c.l.b16 %v3893
        %v4081 = vunpack.c.h.b16 %v3893
        %v4082 = vunpack.c.l.b16 %v3894
        %v4083 = vunpack.c.h.b16 %v3894
        %v4084 = vunpack.c.l.b16 %v3895
        %v4085 = vunpack.c.h.b16 %v3895
        %v4086 = vunpack.c.l.b16 %v3896
        %v4087 = vunpack.c.h.b16 %v3896
        %v4088 = vunpack.c.l.b16 %v3897
        %v4089 = vunpack.c.h.b16 %v3897
        %v4090 = vpack.c.b16 %v3966, %v3962
        %v4091 = vpack.c.b16 %v3967, %v3963
        %v4092 = vpack.c.b16 %v3968, %v3964
        %v4093 = vpack.c.b16 %v3969, %v3965
        %v4094 = vpack.c.b16 %v3974, %v3970
        %v4095 = vpack.c.b16 %v3975, %v3971
        %v4096 = vpack.c.b16 %v3976, %v3972
        %v4097 = vpack.c.b16 %v3977, %v3973
        %v4098 = vpack.c.b16 %v3982, %v3978
        %v4099 = vpack.c.b16 %v3983, %v3979
        %v4100 = vpack.c.b16 %v3984, %v3980
        %v4101 = vpack.c.b16 %v3985, %v3981
        %v4102 = vpack.c.b16 %v3990, %v3986
        %v4103 = vpack.c.b16 %v3991, %v3987
        %v4104 = vpack.c.b16 %v3992, %v3988
        %v4105 = vpack.c.b16 %v3993, %v3989
        %v4106 = vpack.c.b16 %v3998, %v3994
        %v4107 = vpack.c.b16 %v3999, %v3995
        %v4108 = vpack.c.b16 %v4000, %v3996
        %v4109 = vpack.c.b16 %v4001, %v3997
        %v4110 = vpack.c.b16 %v4006, %v4002
        %v4111 = vpack.c.b16 %v4007, %v4003
        %v4112 = vpack.c.b16 %v4008, %v4004
        %v4113 = vpack.c.b16 %v4009, %v4005
        %v4114 = vpack.c.b16 %v4014, %v4010
        %v4115 = vpack.c.b16 %v4015, %v4011
        %v4116 = vpack.c.b16 %v4016, %v4012
        %v4117 = vpack.c.b16 %v4017, %v4013
        %v4118 = vpack.c.b16 %v4022, %v4018
        %v4119 = vpack.c.b16 %v4023, %v4019
        %v4120 = vpack.c.b16 %v4024, %v4020
        %v4121 = vpack.c.b16 %v4025, %v4021
        %v4122 = vpack.c.b16 %v4030, %v4026
        %v4123 = vpack.c.b16 %v4031, %v4027
        %v4124 = vpack.c.b16 %v4032, %v4028
        %v4125 = vpack.c.b16 %v4033, %v4029
        %v4126 = vpack.c.b16 %v4038, %v4034
        %v4127 = vpack.c.b16 %v4039, %v4035
        %v4128 = vpack.c.b16 %v4040, %v4036
        %v4129 = vpack.c.b16 %v4041, %v4037
        %v4130 = vpack.c.b16 %v4046, %v4042
        %v4131 = vpack.c.b16 %v4047, %v4043
        %v4132 = vpack.c.b16 %v4048, %v4044
        %v4133 = vpack.c.b16 %v4049, %v4045
        %v4134 = vpack.c.b16 %v4054, %v4050
        %v4135 = vpack.c.b16 %v4055, %v4051
        %v4136 = vpack.c.b16 %v4056, %v4052
        %v4137 = vpack.c.b16 %v4057, %v4053
        %v4138 = vpack.c.b16 %v4062, %v4058
        %v4139 = vpack.c.b16 %v4063, %v4059
        %v4140 = vpack.c.b16 %v4064, %v4060
        %v4141 = vpack.c.b16 %v4065, %v4061
        %v4142 = vpack.c.b16 %v4070, %v4066
        %v4143 = vpack.c.b16 %v4071, %v4067
        %v4144 = vpack.c.b16 %v4072, %v4068
        %v4145 = vpack.c.b16 %v4073, %v4069
        %v4146 = vpack.c.b16 %v4078, %v4074
        %v4147 = vpack.c.b16 %v4079, %v4075
        %v4148 = vpack.c.b16 %v4080, %v4076
        %v4149 = vpack.c.b16 %v4081, %v4077
        %v4150 = vpack.c.b16 %v4086, %v4082
        %v4151 = vpack.c.b16 %v4087, %v4083
        %v4152 = vpack.c.b16 %v4088, %v4084
        %v4153 = vpack.c.b16 %v4089, %v4085
        %4218 = vmatpush.bf16.msra.mxu0 %v4118
        %4219 = vmatpush.bf16.msra.mxu0 %v4114
        %4220 = vmatpush.bf16.msra.mxu0 %v4110
        %4221 = vmatpush.bf16.msra.mxu0 %v4106
        %4222 = vmatpush.bf16.msra.mxu0 %v4102
        %4223 = vmatpush.bf16.msra.mxu0 %v4098
        %4224 = vmatpush.bf16.msra.mxu0 %v4094
        %4225 = vmatpush.bf16.msra.mxu0 %v4090
        %4226 = vmatmul.bf16.gmra.mxu0 %v3343
        %v4227 = vpop.f32.mrf.mxu0
        %v4228 = vadd.f32 0.0, %v4227
        %v4229 = vpop.f32.mrf.mxu0
        %4230 = vdwg.mxu0
        %4231 = vmatpush.bf16.msra.mxu0 %v4150
        %4232 = vmatpush.bf16.msra.mxu0 %v4146
        %4233 = vmatpush.bf16.msra.mxu0 %v4142
        %4234 = vmatpush.bf16.msra.mxu0 %v4138
        %4235 = vmatpush.bf16.msra.mxu0 %v4134
        %4236 = vmatpush.bf16.msra.mxu0 %v4130
        %4237 = vmatpush.bf16.msra.mxu0 %v4126
        %4238 = vmatpush.bf16.msra.mxu0 %v4122
        %4239 = vmatmul.bf16.gmra.mxu0 %v3344
        %v4240 = vpop.f32.mrf.mxu0
        %v4241 = vadd.f32 %v4228, %v4240
        %v4242 = vpop.f32.mrf.mxu0
        %4243 = vdwg.mxu0
        %4244 = vmatpush.bf16.msra.mxu0 %v4119
        %4245 = vmatpush.bf16.msra.mxu0 %v4115
        %4246 = vmatpush.bf16.msra.mxu0 %v4111
        %4247 = vmatpush.bf16.msra.mxu0 %v4107
        %4248 = vmatpush.bf16.msra.mxu0 %v4103
        %4249 = vmatpush.bf16.msra.mxu0 %v4099
        %4250 = vmatpush.bf16.msra.mxu0 %v4095
        %4251 = vmatpush.bf16.msra.mxu0 %v4091
        %4252 = vmatmul.bf16.gmra.mxu0 %v3343
        %v4253 = vpop.f32.mrf.mxu0
        %v4254 = vadd.f32 0.0, %v4253
        %v4255 = vpop.f32.mrf.mxu0
        %4256 = vdwg.mxu0
        %4257 = vmatpush.bf16.msra.mxu0 %v4151
        %4258 = vmatpush.bf16.msra.mxu0 %v4147
        %4259 = vmatpush.bf16.msra.mxu0 %v4143
        %4260 = vmatpush.bf16.msra.mxu0 %v4139
        %4261 = vmatpush.bf16.msra.mxu0 %v4135
        %4262 = vmatpush.bf16.msra.mxu0 %v4131
        %4263 = vmatpush.bf16.msra.mxu0 %v4127
        %4264 = vmatpush.bf16.msra.mxu0 %v4123
        %4265 = vmatmul.bf16.gmra.mxu0 %v3344
        %v4266 = vpop.f32.mrf.mxu0
        %v4267 = vadd.f32 %v4254, %v4266
        %v4268 = vpop.f32.mrf.mxu0
        %4269 = vdwg.mxu0
        %4270 = vmatpush.bf16.msra.mxu0 %v4120
        %4271 = vmatpush.bf16.msra.mxu0 %v4116
        %4272 = vmatpush.bf16.msra.mxu0 %v4112
        %4273 = vmatpush.bf16.msra.mxu0 %v4108
        %4274 = vmatpush.bf16.msra.mxu0 %v4104
        %4275 = vmatpush.bf16.msra.mxu0 %v4100
        %4276 = vmatpush.bf16.msra.mxu0 %v4096
        %4277 = vmatpush.bf16.msra.mxu0 %v4092
        %4278 = vmatmul.bf16.gmra.mxu0 %v3343
        %v4279 = vpop.f32.mrf.mxu0
        %v4280 = vadd.f32 0.0, %v4279
        %v4281 = vpop.f32.mrf.mxu0
        %4282 = vdwg.mxu0
        %4283 = vmatpush.bf16.msra.mxu0 %v4152
        %4284 = vmatpush.bf16.msra.mxu0 %v4148
        %4285 = vmatpush.bf16.msra.mxu0 %v4144
        %4286 = vmatpush.bf16.msra.mxu0 %v4140
        %4287 = vmatpush.bf16.msra.mxu0 %v4136
        %4288 = vmatpush.bf16.msra.mxu0 %v4132
        %4289 = vmatpush.bf16.msra.mxu0 %v4128
        %4290 = vmatpush.bf16.msra.mxu0 %v4124
        %4291 = vmatmul.bf16.gmra.mxu0 %v3344
        %v4292 = vpop.f32.mrf.mxu0
        %v4293 = vadd.f32 %v4280, %v4292
        %v4294 = vpop.f32.mrf.mxu0
        %4295 = vdwg.mxu0
        %4296 = vmatpush.bf16.msra.mxu0 %v4121
        %4297 = vmatpush.bf16.msra.mxu0 %v4117
        %4298 = vmatpush.bf16.msra.mxu0 %v4113
        %4299 = vmatpush.bf16.msra.mxu0 %v4109
        %4300 = vmatpush.bf16.msra.mxu0 %v4105
        %4301 = vmatpush.bf16.msra.mxu0 %v4101
        %4302 = vmatpush.bf16.msra.mxu0 %v4097
        %4303 = vmatpush.bf16.msra.mxu0 %v4093
        %4304 = vmatmul.bf16.gmra.mxu0 %v3343
        %v4305 = vpop.f32.mrf.mxu0
        %v4306 = vadd.f32 0.0, %v4305
        %v4307 = vpop.f32.mrf.mxu0
        %4308 = vdwg.mxu0
        %4309 = vmatpush.bf16.msra.mxu0 %v4153
        %4310 = vmatpush.bf16.msra.mxu0 %v4149
        %4311 = vmatpush.bf16.msra.mxu0 %v4145
        %4312 = vmatpush.bf16.msra.mxu0 %v4141
        %4313 = vmatpush.bf16.msra.mxu0 %v4137
        %4314 = vmatpush.bf16.msra.mxu0 %v4133
        %4315 = vmatpush.bf16.msra.mxu0 %v4129
        %4316 = vmatpush.bf16.msra.mxu0 %v4125
        %4317 = vmatmul.bf16.gmra.mxu0 %v3344
        %v4318 = vpop.f32.mrf.mxu0
        %v4319 = vadd.f32 %v4306, %v4318
        %v4320 = vpop.f32.mrf.mxu0
        %4321 = vdwg.mxu0
        %v4322 = vsub.f32 %v3753, %v4241
        %v4323 = vsub.f32 %v3779, %v4267
        %v4324 = vsub.f32 %v3805, %v4293
        %v4325 = vsub.f32 %v3831, %v4319
        %v4327 = vperm.slane %v3345, 0
        %v4328 = vperm.slane %v3345, 1
        %v4329 = vperm.slane %v3345, 2
        %v4330 = vperm.slane %v3345, 3
        %v4335 = vadd.f32 %v4322, %v4327
        %v4336 = vadd.f32 %v4323, %v4328
        %v4337 = vadd.f32 %v4324, %v4329
        %v4338 = vadd.f32 %v4325, %v4330
        %4339 = vst [vmem:[%s641] sm:$0xff] %v4335
        %4340 = vst [vmem:[%s641 + $0x8] sm:$0xff] %v4336
        %4341 = vst [vmem:[%s641 + $0x10] sm:$0xff] %v4337
        %4342 = vst [vmem:[%s641 + $0x18] sm:$0xff] %v4338
        %v4343 = vld [vmem:[%s591] sm:$0xff]
        %v4344 = vld [vmem:[%s591 + $0x8] sm:$0xff]
        %v4345 = vld [vmem:[%s591 + $0x10] sm:$0xff]
        %v4346 = vld [vmem:[%s591 + $0x18] sm:$0xff]
        %v4347 = vld [vmem:[%s591 + $0x20] sm:$0xff]
        %v4348 = vld [vmem:[%s591 + $0x28] sm:$0xff]
        %v4349 = vld [vmem:[%s591 + $0x30] sm:$0xff]
        %v4350 = vld [vmem:[%s591 + $0x38] sm:$0xff]
        %v4351 = vld [vmem:[%s591 + $0x40] sm:$0xff]
        %v4352 = vld [vmem:[%s591 + $0x48] sm:$0xff]
        %v4353 = vld [vmem:[%s591 + $0x50] sm:$0xff]
        %v4354 = vld [vmem:[%s591 + $0x58] sm:$0xff]
        %v4355 = vld [vmem:[%s591 + $0x60] sm:$0xff]
        %v4356 = vld [vmem:[%s591 + $0x68] sm:$0xff]
        %v4357 = vld [vmem:[%s591 + $0x70] sm:$0xff]
        %v4358 = vld [vmem:[%s591 + $0x78] sm:$0xff]
        %v4359 = vld [vmem:[%s591 + $0x80] sm:$0xff]
        %v4360 = vld [vmem:[%s591 + $0x88] sm:$0xff]
        %v4361 = vld [vmem:[%s591 + $0x90] sm:$0xff]
        %v4362 = vld [vmem:[%s591 + $0x98] sm:$0xff]
        %v4363 = vld [vmem:[%s591 + $0xa0] sm:$0xff]
        %v4364 = vld [vmem:[%s591 + $0xa8] sm:$0xff]
        %v4365 = vld [vmem:[%s591 + $0xb0] sm:$0xff]
        %v4366 = vld [vmem:[%s591 + $0xb8] sm:$0xff]
        %v4367 = vld [vmem:[%s591 + $0xc0] sm:$0xff]
        %v4368 = vld [vmem:[%s591 + $0xc8] sm:$0xff]
        %v4369 = vld [vmem:[%s591 + $0xd0] sm:$0xff]
        %v4370 = vld [vmem:[%s591 + $0xd8] sm:$0xff]
        %v4371 = vld [vmem:[%s591 + $0xe0] sm:$0xff]
        %v4372 = vld [vmem:[%s591 + $0xe8] sm:$0xff]
        %v4373 = vld [vmem:[%s591 + $0xf0] sm:$0xff]
        %v4374 = vld [vmem:[%s591 + $0xf8] sm:$0xff]
        %v4375 = vld [vmem:[%s591 + $0x100] sm:$0xff]
        %v4376 = vld [vmem:[%s591 + $0x108] sm:$0xff]
        %v4377 = vld [vmem:[%s591 + $0x110] sm:$0xff]
        %v4378 = vld [vmem:[%s591 + $0x118] sm:$0xff]
        %v4379 = vld [vmem:[%s591 + $0x120] sm:$0xff]
        %v4380 = vld [vmem:[%s591 + $0x128] sm:$0xff]
        %v4381 = vld [vmem:[%s591 + $0x130] sm:$0xff]
        %v4382 = vld [vmem:[%s591 + $0x138] sm:$0xff]
        %v4383 = vld [vmem:[%s591 + $0x140] sm:$0xff]
        %v4384 = vld [vmem:[%s591 + $0x148] sm:$0xff]
        %v4385 = vld [vmem:[%s591 + $0x150] sm:$0xff]
        %v4386 = vld [vmem:[%s591 + $0x158] sm:$0xff]
        %v4387 = vld [vmem:[%s591 + $0x160] sm:$0xff]
        %v4388 = vld [vmem:[%s591 + $0x168] sm:$0xff]
        %v4389 = vld [vmem:[%s591 + $0x170] sm:$0xff]
        %v4390 = vld [vmem:[%s591 + $0x178] sm:$0xff]
        %v4391 = vld [vmem:[%s591 + $0x180] sm:$0xff]
        %v4392 = vld [vmem:[%s591 + $0x188] sm:$0xff]
        %v4393 = vld [vmem:[%s591 + $0x190] sm:$0xff]
        %v4394 = vld [vmem:[%s591 + $0x198] sm:$0xff]
        %v4395 = vld [vmem:[%s591 + $0x1a0] sm:$0xff]
        %v4396 = vld [vmem:[%s591 + $0x1a8] sm:$0xff]
        %v4397 = vld [vmem:[%s591 + $0x1b0] sm:$0xff]
        %v4398 = vld [vmem:[%s591 + $0x1b8] sm:$0xff]
        %v4399 = vld [vmem:[%s591 + $0x1c0] sm:$0xff]
        %v4400 = vld [vmem:[%s591 + $0x1c8] sm:$0xff]
        %v4401 = vld [vmem:[%s591 + $0x1d0] sm:$0xff]
        %v4402 = vld [vmem:[%s591 + $0x1d8] sm:$0xff]
        %v4403 = vld [vmem:[%s591 + $0x1e0] sm:$0xff]
        %v4404 = vld [vmem:[%s591 + $0x1e8] sm:$0xff]
        %v4405 = vld [vmem:[%s591 + $0x1f0] sm:$0xff]
        %v4406 = vld [vmem:[%s591 + $0x1f8] sm:$0xff]
        %v4407 = vld [vmem:[%s581] sm:$0xff]
        %v4408 = vld [vmem:[%s581 + $0x8] sm:$0xff]
        %v4409 = vld [vmem:[%s581 + $0x10] sm:$0xff]
        %v4410 = vld [vmem:[%s581 + $0x18] sm:$0xff]
        %v4411 = vld [vmem:[%s581 + $0x20] sm:$0xff]
        %v4412 = vld [vmem:[%s581 + $0x28] sm:$0xff]
        %v4413 = vld [vmem:[%s581 + $0x30] sm:$0xff]
        %v4414 = vld [vmem:[%s581 + $0x38] sm:$0xff]
        %v4415 = vld [vmem:[%s581 + $0x40] sm:$0xff]
        %v4416 = vld [vmem:[%s581 + $0x48] sm:$0xff]
        %v4417 = vld [vmem:[%s581 + $0x50] sm:$0xff]
        %v4418 = vld [vmem:[%s581 + $0x58] sm:$0xff]
        %v4419 = vld [vmem:[%s581 + $0x60] sm:$0xff]
        %v4420 = vld [vmem:[%s581 + $0x68] sm:$0xff]
        %v4421 = vld [vmem:[%s581 + $0x70] sm:$0xff]
        %v4422 = vld [vmem:[%s581 + $0x78] sm:$0xff]
        %v4423 = vld [vmem:[%s581 + $0x80] sm:$0xff]
        %v4424 = vld [vmem:[%s581 + $0x88] sm:$0xff]
        %v4425 = vld [vmem:[%s581 + $0x90] sm:$0xff]
        %v4426 = vld [vmem:[%s581 + $0x98] sm:$0xff]
        %v4427 = vld [vmem:[%s581 + $0xa0] sm:$0xff]
        %v4428 = vld [vmem:[%s581 + $0xa8] sm:$0xff]
        %v4429 = vld [vmem:[%s581 + $0xb0] sm:$0xff]
        %v4430 = vld [vmem:[%s581 + $0xb8] sm:$0xff]
        %v4431 = vld [vmem:[%s581 + $0xc0] sm:$0xff]
        %v4432 = vld [vmem:[%s581 + $0xc8] sm:$0xff]
        %v4433 = vld [vmem:[%s581 + $0xd0] sm:$0xff]
        %v4434 = vld [vmem:[%s581 + $0xd8] sm:$0xff]
        %v4435 = vld [vmem:[%s581 + $0xe0] sm:$0xff]
        %v4436 = vld [vmem:[%s581 + $0xe8] sm:$0xff]
        %v4437 = vld [vmem:[%s581 + $0xf0] sm:$0xff]
        %v4438 = vld [vmem:[%s581 + $0xf8] sm:$0xff]
        %v4439 = vld [vmem:[%s581 + $0x100] sm:$0xff]
        %v4440 = vld [vmem:[%s581 + $0x108] sm:$0xff]
        %v4441 = vld [vmem:[%s581 + $0x110] sm:$0xff]
        %v4442 = vld [vmem:[%s581 + $0x118] sm:$0xff]
        %v4443 = vld [vmem:[%s581 + $0x120] sm:$0xff]
        %v4444 = vld [vmem:[%s581 + $0x128] sm:$0xff]
        %v4445 = vld [vmem:[%s581 + $0x130] sm:$0xff]
        %v4446 = vld [vmem:[%s581 + $0x138] sm:$0xff]
        %v4447 = vld [vmem:[%s581 + $0x140] sm:$0xff]
        %v4448 = vld [vmem:[%s581 + $0x148] sm:$0xff]
        %v4449 = vld [vmem:[%s581 + $0x150] sm:$0xff]
        %v4450 = vld [vmem:[%s581 + $0x158] sm:$0xff]
        %v4451 = vld [vmem:[%s581 + $0x160] sm:$0xff]
        %v4452 = vld [vmem:[%s581 + $0x168] sm:$0xff]
        %v4453 = vld [vmem:[%s581 + $0x170] sm:$0xff]
        %v4454 = vld [vmem:[%s581 + $0x178] sm:$0xff]
        %v4455 = vld [vmem:[%s581 + $0x180] sm:$0xff]
        %v4456 = vld [vmem:[%s581 + $0x188] sm:$0xff]
        %v4457 = vld [vmem:[%s581 + $0x190] sm:$0xff]
        %v4458 = vld [vmem:[%s581 + $0x198] sm:$0xff]
        %v4459 = vld [vmem:[%s581 + $0x1a0] sm:$0xff]
        %v4460 = vld [vmem:[%s581 + $0x1a8] sm:$0xff]
        %v4461 = vld [vmem:[%s581 + $0x1b0] sm:$0xff]
        %v4462 = vld [vmem:[%s581 + $0x1b8] sm:$0xff]
        %v4463 = vld [vmem:[%s581 + $0x1c0] sm:$0xff]
        %v4464 = vld [vmem:[%s581 + $0x1c8] sm:$0xff]
        %v4465 = vld [vmem:[%s581 + $0x1d0] sm:$0xff]
        %v4466 = vld [vmem:[%s581 + $0x1d8] sm:$0xff]
        %v4467 = vld [vmem:[%s581 + $0x1e0] sm:$0xff]
        %v4468 = vld [vmem:[%s581 + $0x1e8] sm:$0xff]
        %v4469 = vld [vmem:[%s581 + $0x1f0] sm:$0xff]
        %v4470 = vld [vmem:[%s581 + $0x1f8] sm:$0xff]
        %v4535 = vunpack.c.l.b16 %v4407
        %v4536 = vunpack.c.h.b16 %v4407
        %v4537 = vunpack.c.l.b16 %v4408
        %v4538 = vunpack.c.h.b16 %v4408
        %v4539 = vunpack.c.l.b16 %v4409
        %v4540 = vunpack.c.h.b16 %v4409
        %v4541 = vunpack.c.l.b16 %v4410
        %v4542 = vunpack.c.h.b16 %v4410
        %v4543 = vunpack.c.l.b16 %v4411
        %v4544 = vunpack.c.h.b16 %v4411
        %v4545 = vunpack.c.l.b16 %v4412
        %v4546 = vunpack.c.h.b16 %v4412
        %v4547 = vunpack.c.l.b16 %v4413
        %v4548 = vunpack.c.h.b16 %v4413
        %v4549 = vunpack.c.l.b16 %v4414
        %v4550 = vunpack.c.h.b16 %v4414
        %v4551 = vunpack.c.l.b16 %v4415
        %v4552 = vunpack.c.h.b16 %v4415
        %v4553 = vunpack.c.l.b16 %v4416
        %v4554 = vunpack.c.h.b16 %v4416
        %v4555 = vunpack.c.l.b16 %v4417
        %v4556 = vunpack.c.h.b16 %v4417
        %v4557 = vunpack.c.l.b16 %v4418
        %v4558 = vunpack.c.h.b16 %v4418
        %v4559 = vunpack.c.l.b16 %v4419
        %v4560 = vunpack.c.h.b16 %v4419
        %v4561 = vunpack.c.l.b16 %v4420
        %v4562 = vunpack.c.h.b16 %v4420
        %v4563 = vunpack.c.l.b16 %v4421
        %v4564 = vunpack.c.h.b16 %v4421
        %v4565 = vunpack.c.l.b16 %v4422
        %v4566 = vunpack.c.h.b16 %v4422
        %v4567 = vunpack.c.l.b16 %v4423
        %v4568 = vunpack.c.h.b16 %v4423
        %v4569 = vunpack.c.l.b16 %v4424
        %v4570 = vunpack.c.h.b16 %v4424
        %v4571 = vunpack.c.l.b16 %v4425
        %v4572 = vunpack.c.h.b16 %v4425
        %v4573 = vunpack.c.l.b16 %v4426
        %v4574 = vunpack.c.h.b16 %v4426
        %v4575 = vunpack.c.l.b16 %v4427
        %v4576 = vunpack.c.h.b16 %v4427
        %v4577 = vunpack.c.l.b16 %v4428
        %v4578 = vunpack.c.h.b16 %v4428
        %v4579 = vunpack.c.l.b16 %v4429
        %v4580 = vunpack.c.h.b16 %v4429
        %v4581 = vunpack.c.l.b16 %v4430
        %v4582 = vunpack.c.h.b16 %v4430
        %v4583 = vunpack.c.l.b16 %v4431
        %v4584 = vunpack.c.h.b16 %v4431
        %v4585 = vunpack.c.l.b16 %v4432
        %v4586 = vunpack.c.h.b16 %v4432
        %v4587 = vunpack.c.l.b16 %v4433
        %v4588 = vunpack.c.h.b16 %v4433
        %v4589 = vunpack.c.l.b16 %v4434
        %v4590 = vunpack.c.h.b16 %v4434
        %v4591 = vunpack.c.l.b16 %v4435
        %v4592 = vunpack.c.h.b16 %v4435
        %v4593 = vunpack.c.l.b16 %v4436
        %v4594 = vunpack.c.h.b16 %v4436
        %v4595 = vunpack.c.l.b16 %v4437
        %v4596 = vunpack.c.h.b16 %v4437
        %v4597 = vunpack.c.l.b16 %v4438
        %v4598 = vunpack.c.h.b16 %v4438
        %v4599 = vunpack.c.l.b16 %v4439
        %v4600 = vunpack.c.h.b16 %v4439
        %v4601 = vunpack.c.l.b16 %v4440
        %v4602 = vunpack.c.h.b16 %v4440
        %v4603 = vunpack.c.l.b16 %v4441
        %v4604 = vunpack.c.h.b16 %v4441
        %v4605 = vunpack.c.l.b16 %v4442
        %v4606 = vunpack.c.h.b16 %v4442
        %v4607 = vunpack.c.l.b16 %v4443
        %v4608 = vunpack.c.h.b16 %v4443
        %v4609 = vunpack.c.l.b16 %v4444
        %v4610 = vunpack.c.h.b16 %v4444
        %v4611 = vunpack.c.l.b16 %v4445
        %v4612 = vunpack.c.h.b16 %v4445
        %v4613 = vunpack.c.l.b16 %v4446
        %v4614 = vunpack.c.h.b16 %v4446
        %v4615 = vunpack.c.l.b16 %v4447
        %v4616 = vunpack.c.h.b16 %v4447
        %v4617 = vunpack.c.l.b16 %v4448
        %v4618 = vunpack.c.h.b16 %v4448
        %v4619 = vunpack.c.l.b16 %v4449
        %v4620 = vunpack.c.h.b16 %v4449
        %v4621 = vunpack.c.l.b16 %v4450
        %v4622 = vunpack.c.h.b16 %v4450
        %v4623 = vunpack.c.l.b16 %v4451
        %v4624 = vunpack.c.h.b16 %v4451
        %v4625 = vunpack.c.l.b16 %v4452
        %v4626 = vunpack.c.h.b16 %v4452
        %v4627 = vunpack.c.l.b16 %v4453
        %v4628 = vunpack.c.h.b16 %v4453
        %v4629 = vunpack.c.l.b16 %v4454
        %v4630 = vunpack.c.h.b16 %v4454
        %v4631 = vunpack.c.l.b16 %v4455
        %v4632 = vunpack.c.h.b16 %v4455
        %v4633 = vunpack.c.l.b16 %v4456
        %v4634 = vunpack.c.h.b16 %v4456
        %v4635 = vunpack.c.l.b16 %v4457
        %v4636 = vunpack.c.h.b16 %v4457
        %v4637 = vunpack.c.l.b16 %v4458
        %v4638 = vunpack.c.h.b16 %v4458
        %v4639 = vunpack.c.l.b16 %v4459
        %v4640 = vunpack.c.h.b16 %v4459
        %v4641 = vunpack.c.l.b16 %v4460
        %v4642 = vunpack.c.h.b16 %v4460
        %v4643 = vunpack.c.l.b16 %v4461
        %v4644 = vunpack.c.h.b16 %v4461
        %v4645 = vunpack.c.l.b16 %v4462
        %v4646 = vunpack.c.h.b16 %v4462
        %v4647 = vunpack.c.l.b16 %v4463
        %v4648 = vunpack.c.h.b16 %v4463
        %v4649 = vunpack.c.l.b16 %v4464
        %v4650 = vunpack.c.h.b16 %v4464
        %v4651 = vunpack.c.l.b16 %v4465
        %v4652 = vunpack.c.h.b16 %v4465
        %v4653 = vunpack.c.l.b16 %v4466
        %v4654 = vunpack.c.h.b16 %v4466
        %v4655 = vunpack.c.l.b16 %v4467
        %v4656 = vunpack.c.h.b16 %v4467
        %v4657 = vunpack.c.l.b16 %v4468
        %v4658 = vunpack.c.h.b16 %v4468
        %v4659 = vunpack.c.l.b16 %v4469
        %v4660 = vunpack.c.h.b16 %v4469
        %v4661 = vunpack.c.l.b16 %v4470
        %v4662 = vunpack.c.h.b16 %v4470
        %v4663 = vpack.c.b16 %v4539, %v4535
        %v4664 = vpack.c.b16 %v4540, %v4536
        %v4665 = vpack.c.b16 %v4541, %v4537
        %v4666 = vpack.c.b16 %v4542, %v4538
        %v4667 = vpack.c.b16 %v4547, %v4543
        %v4668 = vpack.c.b16 %v4548, %v4544
        %v4669 = vpack.c.b16 %v4549, %v4545
        %v4670 = vpack.c.b16 %v4550, %v4546
        %v4671 = vpack.c.b16 %v4555, %v4551
        %v4672 = vpack.c.b16 %v4556, %v4552
        %v4673 = vpack.c.b16 %v4557, %v4553
        %v4674 = vpack.c.b16 %v4558, %v4554
        %v4675 = vpack.c.b16 %v4563, %v4559
        %v4676 = vpack.c.b16 %v4564, %v4560
        %v4677 = vpack.c.b16 %v4565, %v4561
        %v4678 = vpack.c.b16 %v4566, %v4562
        %v4679 = vpack.c.b16 %v4571, %v4567
        %v4680 = vpack.c.b16 %v4572, %v4568
        %v4681 = vpack.c.b16 %v4573, %v4569
        %v4682 = vpack.c.b16 %v4574, %v4570
        %v4683 = vpack.c.b16 %v4579, %v4575
        %v4684 = vpack.c.b16 %v4580, %v4576
        %v4685 = vpack.c.b16 %v4581, %v4577
        %v4686 = vpack.c.b16 %v4582, %v4578
        %v4687 = vpack.c.b16 %v4587, %v4583
        %v4688 = vpack.c.b16 %v4588, %v4584
        %v4689 = vpack.c.b16 %v4589, %v4585
        %v4690 = vpack.c.b16 %v4590, %v4586
        %v4691 = vpack.c.b16 %v4595, %v4591
        %v4692 = vpack.c.b16 %v4596, %v4592
        %v4693 = vpack.c.b16 %v4597, %v4593
        %v4694 = vpack.c.b16 %v4598, %v4594
        %v4695 = vpack.c.b16 %v4603, %v4599
        %v4696 = vpack.c.b16 %v4604, %v4600
        %v4697 = vpack.c.b16 %v4605, %v4601
        %v4698 = vpack.c.b16 %v4606, %v4602
        %v4699 = vpack.c.b16 %v4611, %v4607
        %v4700 = vpack.c.b16 %v4612, %v4608
        %v4701 = vpack.c.b16 %v4613, %v4609
        %v4702 = vpack.c.b16 %v4614, %v4610
        %v4703 = vpack.c.b16 %v4619, %v4615
        %v4704 = vpack.c.b16 %v4620, %v4616
        %v4705 = vpack.c.b16 %v4621, %v4617
        %v4706 = vpack.c.b16 %v4622, %v4618
        %v4707 = vpack.c.b16 %v4627, %v4623
        %v4708 = vpack.c.b16 %v4628, %v4624
        %v4709 = vpack.c.b16 %v4629, %v4625
        %v4710 = vpack.c.b16 %v4630, %v4626
        %v4711 = vpack.c.b16 %v4635, %v4631
        %v4712 = vpack.c.b16 %v4636, %v4632
        %v4713 = vpack.c.b16 %v4637, %v4633
        %v4714 = vpack.c.b16 %v4638, %v4634
        %v4715 = vpack.c.b16 %v4643, %v4639
        %v4716 = vpack.c.b16 %v4644, %v4640
        %v4717 = vpack.c.b16 %v4645, %v4641
        %v4718 = vpack.c.b16 %v4646, %v4642
        %v4719 = vpack.c.b16 %v4651, %v4647
        %v4720 = vpack.c.b16 %v4652, %v4648
        %v4721 = vpack.c.b16 %v4653, %v4649
        %v4722 = vpack.c.b16 %v4654, %v4650
        %v4723 = vpack.c.b16 %v4659, %v4655
        %v4724 = vpack.c.b16 %v4660, %v4656
        %v4725 = vpack.c.b16 %v4661, %v4657
        %v4726 = vpack.c.b16 %v4662, %v4658
        %4791 = vmatpush.bf16.msra.mxu0 %v4691
        %4792 = vmatpush.bf16.msra.mxu0 %v4687
        %4793 = vmatpush.bf16.msra.mxu0 %v4683
        %4794 = vmatpush.bf16.msra.mxu0 %v4679
        %4795 = vmatpush.bf16.msra.mxu0 %v4675
        %4796 = vmatpush.bf16.msra.mxu0 %v4671
        %4797 = vmatpush.bf16.msra.mxu0 %v4667
        %4798 = vmatpush.bf16.msra.mxu0 %v4663
        %4799 = vmatmul.bf16.gmra.mxu0 %v3343
        %v4800 = vpop.f32.mrf.mxu0
        %v4801 = vadd.f32 0.0, %v4800
        %v4802 = vpop.f32.mrf.mxu0
        %4803 = vdwg.mxu0
        %4804 = vmatpush.bf16.msra.mxu0 %v4723
        %4805 = vmatpush.bf16.msra.mxu0 %v4719
        %4806 = vmatpush.bf16.msra.mxu0 %v4715
        %4807 = vmatpush.bf16.msra.mxu0 %v4711
        %4808 = vmatpush.bf16.msra.mxu0 %v4707
        %4809 = vmatpush.bf16.msra.mxu0 %v4703
        %4810 = vmatpush.bf16.msra.mxu0 %v4699
        %4811 = vmatpush.bf16.msra.mxu0 %v4695
        %4812 = vmatmul.bf16.gmra.mxu0 %v3344
        %v4813 = vpop.f32.mrf.mxu0
        %v4814 = vadd.f32 %v4801, %v4813
        %v4815 = vpop.f32.mrf.mxu0
        %4816 = vdwg.mxu0
        %4817 = vmatpush.bf16.msra.mxu0 %v4692
        %4818 = vmatpush.bf16.msra.mxu0 %v4688
        %4819 = vmatpush.bf16.msra.mxu0 %v4684
        %4820 = vmatpush.bf16.msra.mxu0 %v4680
        %4821 = vmatpush.bf16.msra.mxu0 %v4676
        %4822 = vmatpush.bf16.msra.mxu0 %v4672
        %4823 = vmatpush.bf16.msra.mxu0 %v4668
        %4824 = vmatpush.bf16.msra.mxu0 %v4664
        %4825 = vmatmul.bf16.gmra.mxu0 %v3343
        %v4826 = vpop.f32.mrf.mxu0
        %v4827 = vadd.f32 0.0, %v4826
        %v4828 = vpop.f32.mrf.mxu0
        %4829 = vdwg.mxu0
        %4830 = vmatpush.bf16.msra.mxu0 %v4724
        %4831 = vmatpush.bf16.msra.mxu0 %v4720
        %4832 = vmatpush.bf16.msra.mxu0 %v4716
        %4833 = vmatpush.bf16.msra.mxu0 %v4712
        %4834 = vmatpush.bf16.msra.mxu0 %v4708
        %4835 = vmatpush.bf16.msra.mxu0 %v4704
        %4836 = vmatpush.bf16.msra.mxu0 %v4700
        %4837 = vmatpush.bf16.msra.mxu0 %v4696
        %4838 = vmatmul.bf16.gmra.mxu0 %v3344
        %v4839 = vpop.f32.mrf.mxu0
        %v4840 = vadd.f32 %v4827, %v4839
        %v4841 = vpop.f32.mrf.mxu0
        %4842 = vdwg.mxu0
        %4843 = vmatpush.bf16.msra.mxu0 %v4693
        %4844 = vmatpush.bf16.msra.mxu0 %v4689
        %4845 = vmatpush.bf16.msra.mxu0 %v4685
        %4846 = vmatpush.bf16.msra.mxu0 %v4681
        %4847 = vmatpush.bf16.msra.mxu0 %v4677
        %4848 = vmatpush.bf16.msra.mxu0 %v4673
        %4849 = vmatpush.bf16.msra.mxu0 %v4669
        %4850 = vmatpush.bf16.msra.mxu0 %v4665
        %4851 = vmatmul.bf16.gmra.mxu0 %v3343
        %v4852 = vpop.f32.mrf.mxu0
        %v4853 = vadd.f32 0.0, %v4852
        %v4854 = vpop.f32.mrf.mxu0
        %4855 = vdwg.mxu0
        %4856 = vmatpush.bf16.msra.mxu0 %v4725
        %4857 = vmatpush.bf16.msra.mxu0 %v4721
        %4858 = vmatpush.bf16.msra.mxu0 %v4717
        %4859 = vmatpush.bf16.msra.mxu0 %v4713
        %4860 = vmatpush.bf16.msra.mxu0 %v4709
        %4861 = vmatpush.bf16.msra.mxu0 %v4705
        %4862 = vmatpush.bf16.msra.mxu0 %v4701
        %4863 = vmatpush.bf16.msra.mxu0 %v4697
        %4864 = vmatmul.bf16.gmra.mxu0 %v3344
        %v4865 = vpop.f32.mrf.mxu0
        %v4866 = vadd.f32 %v4853, %v4865
        %v4867 = vpop.f32.mrf.mxu0
        %4868 = vdwg.mxu0
        %4869 = vmatpush.bf16.msra.mxu0 %v4694
        %4870 = vmatpush.bf16.msra.mxu0 %v4690
        %4871 = vmatpush.bf16.msra.mxu0 %v4686
        %4872 = vmatpush.bf16.msra.mxu0 %v4682
        %4873 = vmatpush.bf16.msra.mxu0 %v4678
        %4874 = vmatpush.bf16.msra.mxu0 %v4674
        %4875 = vmatpush.bf16.msra.mxu0 %v4670
        %4876 = vmatpush.bf16.msra.mxu0 %v4666
        %4877 = vmatmul.bf16.gmra.mxu0 %v3343
        %v4878 = vpop.f32.mrf.mxu0
        %v4879 = vadd.f32 0.0, %v4878
        %v4880 = vpop.f32.mrf.mxu0
        %4881 = vdwg.mxu0
        %4882 = vmatpush.bf16.msra.mxu0 %v4726
        %4883 = vmatpush.bf16.msra.mxu0 %v4722
        %4884 = vmatpush.bf16.msra.mxu0 %v4718
        %4885 = vmatpush.bf16.msra.mxu0 %v4714
        %4886 = vmatpush.bf16.msra.mxu0 %v4710
        %4887 = vmatpush.bf16.msra.mxu0 %v4706
        %4888 = vmatpush.bf16.msra.mxu0 %v4702
        %4889 = vmatpush.bf16.msra.mxu0 %v4698
        %4890 = vmatmul.bf16.gmra.mxu0 %v3344
        %v4891 = vpop.f32.mrf.mxu0
        %v4892 = vadd.f32 %v4879, %v4891
        %v4893 = vpop.f32.mrf.mxu0
        %4894 = vdwg.mxu0
        %v4959 = vunpack.c.l.b16 %v4343
        %v4960 = vunpack.c.h.b16 %v4343
        %v4961 = vunpack.c.l.b16 %v4344
        %v4962 = vunpack.c.h.b16 %v4344
        %v4963 = vunpack.c.l.b16 %v4345
        %v4964 = vunpack.c.h.b16 %v4345
        %v4965 = vunpack.c.l.b16 %v4346
        %v4966 = vunpack.c.h.b16 %v4346
        %v4967 = vunpack.c.l.b16 %v4347
        %v4968 = vunpack.c.h.b16 %v4347
        %v4969 = vunpack.c.l.b16 %v4348
        %v4970 = vunpack.c.h.b16 %v4348
        %v4971 = vunpack.c.l.b16 %v4349
        %v4972 = vunpack.c.h.b16 %v4349
        %v4973 = vunpack.c.l.b16 %v4350
        %v4974 = vunpack.c.h.b16 %v4350
        %v4975 = vunpack.c.l.b16 %v4351
        %v4976 = vunpack.c.h.b16 %v4351
        %v4977 = vunpack.c.l.b16 %v4352
        %v4978 = vunpack.c.h.b16 %v4352
        %v4979 = vunpack.c.l.b16 %v4353
        %v4980 = vunpack.c.h.b16 %v4353
        %v4981 = vunpack.c.l.b16 %v4354
        %v4982 = vunpack.c.h.b16 %v4354
        %v4983 = vunpack.c.l.b16 %v4355
        %v4984 = vunpack.c.h.b16 %v4355
        %v4985 = vunpack.c.l.b16 %v4356
        %v4986 = vunpack.c.h.b16 %v4356
        %v4987 = vunpack.c.l.b16 %v4357
        %v4988 = vunpack.c.h.b16 %v4357
        %v4989 = vunpack.c.l.b16 %v4358
        %v4990 = vunpack.c.h.b16 %v4358
        %v4991 = vunpack.c.l.b16 %v4359
        %v4992 = vunpack.c.h.b16 %v4359
        %v4993 = vunpack.c.l.b16 %v4360
        %v4994 = vunpack.c.h.b16 %v4360
        %v4995 = vunpack.c.l.b16 %v4361
        %v4996 = vunpack.c.h.b16 %v4361
        %v4997 = vunpack.c.l.b16 %v4362
        %v4998 = vunpack.c.h.b16 %v4362
        %v4999 = vunpack.c.l.b16 %v4363
        %v5000 = vunpack.c.h.b16 %v4363
        %v5001 = vunpack.c.l.b16 %v4364
        %v5002 = vunpack.c.h.b16 %v4364
        %v5003 = vunpack.c.l.b16 %v4365
        %v5004 = vunpack.c.h.b16 %v4365
        %v5005 = vunpack.c.l.b16 %v4366
        %v5006 = vunpack.c.h.b16 %v4366
        %v5007 = vunpack.c.l.b16 %v4367
        %v5008 = vunpack.c.h.b16 %v4367
        %v5009 = vunpack.c.l.b16 %v4368
        %v5010 = vunpack.c.h.b16 %v4368
        %v5011 = vunpack.c.l.b16 %v4369
        %v5012 = vunpack.c.h.b16 %v4369
        %v5013 = vunpack.c.l.b16 %v4370
        %v5014 = vunpack.c.h.b16 %v4370
        %v5015 = vunpack.c.l.b16 %v4371
        %v5016 = vunpack.c.h.b16 %v4371
        %v5017 = vunpack.c.l.b16 %v4372
        %v5018 = vunpack.c.h.b16 %v4372
        %v5019 = vunpack.c.l.b16 %v4373
        %v5020 = vunpack.c.h.b16 %v4373
        %v5021 = vunpack.c.l.b16 %v4374
        %v5022 = vunpack.c.h.b16 %v4374
        %v5023 = vunpack.c.l.b16 %v4375
        %v5024 = vunpack.c.h.b16 %v4375
        %v5025 = vunpack.c.l.b16 %v4376
        %v5026 = vunpack.c.h.b16 %v4376
        %v5027 = vunpack.c.l.b16 %v4377
        %v5028 = vunpack.c.h.b16 %v4377
        %v5029 = vunpack.c.l.b16 %v4378
        %v5030 = vunpack.c.h.b16 %v4378
        %v5031 = vunpack.c.l.b16 %v4379
        %v5032 = vunpack.c.h.b16 %v4379
        %v5033 = vunpack.c.l.b16 %v4380
        %v5034 = vunpack.c.h.b16 %v4380
        %v5035 = vunpack.c.l.b16 %v4381
        %v5036 = vunpack.c.h.b16 %v4381
        %v5037 = vunpack.c.l.b16 %v4382
        %v5038 = vunpack.c.h.b16 %v4382
        %v5039 = vunpack.c.l.b16 %v4383
        %v5040 = vunpack.c.h.b16 %v4383
        %v5041 = vunpack.c.l.b16 %v4384
        %v5042 = vunpack.c.h.b16 %v4384
        %v5043 = vunpack.c.l.b16 %v4385
        %v5044 = vunpack.c.h.b16 %v4385
        %v5045 = vunpack.c.l.b16 %v4386
        %v5046 = vunpack.c.h.b16 %v4386
        %v5047 = vunpack.c.l.b16 %v4387
        %v5048 = vunpack.c.h.b16 %v4387
        %v5049 = vunpack.c.l.b16 %v4388
        %v5050 = vunpack.c.h.b16 %v4388
        %v5051 = vunpack.c.l.b16 %v4389
        %v5052 = vunpack.c.h.b16 %v4389
        %v5053 = vunpack.c.l.b16 %v4390
        %v5054 = vunpack.c.h.b16 %v4390
        %v5055 = vunpack.c.l.b16 %v4391
        %v5056 = vunpack.c.h.b16 %v4391
        %v5057 = vunpack.c.l.b16 %v4392
        %v5058 = vunpack.c.h.b16 %v4392
        %v5059 = vunpack.c.l.b16 %v4393
        %v5060 = vunpack.c.h.b16 %v4393
        %v5061 = vunpack.c.l.b16 %v4394
        %v5062 = vunpack.c.h.b16 %v4394
        %v5063 = vunpack.c.l.b16 %v4395
        %v5064 = vunpack.c.h.b16 %v4395
        %v5065 = vunpack.c.l.b16 %v4396
        %v5066 = vunpack.c.h.b16 %v4396
        %v5067 = vunpack.c.l.b16 %v4397
        %v5068 = vunpack.c.h.b16 %v4397
        %v5069 = vunpack.c.l.b16 %v4398
        %v5070 = vunpack.c.h.b16 %v4398
        %v5071 = vunpack.c.l.b16 %v4399
        %v5072 = vunpack.c.h.b16 %v4399
        %v5073 = vunpack.c.l.b16 %v4400
        %v5074 = vunpack.c.h.b16 %v4400
        %v5075 = vunpack.c.l.b16 %v4401
        %v5076 = vunpack.c.h.b16 %v4401
        %v5077 = vunpack.c.l.b16 %v4402
        %v5078 = vunpack.c.h.b16 %v4402
        %v5079 = vunpack.c.l.b16 %v4403
        %v5080 = vunpack.c.h.b16 %v4403
        %v5081 = vunpack.c.l.b16 %v4404
        %v5082 = vunpack.c.h.b16 %v4404
        %v5083 = vunpack.c.l.b16 %v4405
        %v5084 = vunpack.c.h.b16 %v4405
        %v5085 = vunpack.c.l.b16 %v4406
        %v5086 = vunpack.c.h.b16 %v4406
        %v5087 = vpack.c.b16 %v4963, %v4959
        %v5088 = vpack.c.b16 %v4964, %v4960
        %v5089 = vpack.c.b16 %v4965, %v4961
        %v5090 = vpack.c.b16 %v4966, %v4962
        %v5091 = vpack.c.b16 %v4971, %v4967
        %v5092 = vpack.c.b16 %v4972, %v4968
        %v5093 = vpack.c.b16 %v4973, %v4969
        %v5094 = vpack.c.b16 %v4974, %v4970
        %v5095 = vpack.c.b16 %v4979, %v4975
        %v5096 = vpack.c.b16 %v4980, %v4976
        %v5097 = vpack.c.b16 %v4981, %v4977
        %v5098 = vpack.c.b16 %v4982, %v4978
        %v5099 = vpack.c.b16 %v4987, %v4983
        %v5100 = vpack.c.b16 %v4988, %v4984
        %v5101 = vpack.c.b16 %v4989, %v4985
        %v5102 = vpack.c.b16 %v4990, %v4986
        %v5103 = vpack.c.b16 %v4995, %v4991
        %v5104 = vpack.c.b16 %v4996, %v4992
        %v5105 = vpack.c.b16 %v4997, %v4993
        %v5106 = vpack.c.b16 %v4998, %v4994
        %v5107 = vpack.c.b16 %v5003, %v4999
        %v5108 = vpack.c.b16 %v5004, %v5000
        %v5109 = vpack.c.b16 %v5005, %v5001
        %v5110 = vpack.c.b16 %v5006, %v5002
        %v5111 = vpack.c.b16 %v5011, %v5007
        %v5112 = vpack.c.b16 %v5012, %v5008
        %v5113 = vpack.c.b16 %v5013, %v5009
        %v5114 = vpack.c.b16 %v5014, %v5010
        %v5115 = vpack.c.b16 %v5019, %v5015
        %v5116 = vpack.c.b16 %v5020, %v5016
        %v5117 = vpack.c.b16 %v5021, %v5017
        %v5118 = vpack.c.b16 %v5022, %v5018
        %v5119 = vpack.c.b16 %v5027, %v5023
        %v5120 = vpack.c.b16 %v5028, %v5024
        %v5121 = vpack.c.b16 %v5029, %v5025
        %v5122 = vpack.c.b16 %v5030, %v5026
        %v5123 = vpack.c.b16 %v5035, %v5031
        %v5124 = vpack.c.b16 %v5036, %v5032
        %v5125 = vpack.c.b16 %v5037, %v5033
        %v5126 = vpack.c.b16 %v5038, %v5034
        %v5127 = vpack.c.b16 %v5043, %v5039
        %v5128 = vpack.c.b16 %v5044, %v5040
        %v5129 = vpack.c.b16 %v5045, %v5041
        %v5130 = vpack.c.b16 %v5046, %v5042
        %v5131 = vpack.c.b16 %v5051, %v5047
        %v5132 = vpack.c.b16 %v5052, %v5048
        %v5133 = vpack.c.b16 %v5053, %v5049
        %v5134 = vpack.c.b16 %v5054, %v5050
        %v5135 = vpack.c.b16 %v5059, %v5055
        %v5136 = vpack.c.b16 %v5060, %v5056
        %v5137 = vpack.c.b16 %v5061, %v5057
        %v5138 = vpack.c.b16 %v5062, %v5058
        %v5139 = vpack.c.b16 %v5067, %v5063
        %v5140 = vpack.c.b16 %v5068, %v5064
        %v5141 = vpack.c.b16 %v5069, %v5065
        %v5142 = vpack.c.b16 %v5070, %v5066
        %v5143 = vpack.c.b16 %v5075, %v5071
        %v5144 = vpack.c.b16 %v5076, %v5072
        %v5145 = vpack.c.b16 %v5077, %v5073
        %v5146 = vpack.c.b16 %v5078, %v5074
        %v5147 = vpack.c.b16 %v5083, %v5079
        %v5148 = vpack.c.b16 %v5084, %v5080
        %v5149 = vpack.c.b16 %v5085, %v5081
        %v5150 = vpack.c.b16 %v5086, %v5082
        %5215 = vmatpush.bf16.msra.mxu0 %v5115
        %5216 = vmatpush.bf16.msra.mxu0 %v5111
        %5217 = vmatpush.bf16.msra.mxu0 %v5107
        %5218 = vmatpush.bf16.msra.mxu0 %v5103
        %5219 = vmatpush.bf16.msra.mxu0 %v5099
        %5220 = vmatpush.bf16.msra.mxu0 %v5095
        %5221 = vmatpush.bf16.msra.mxu0 %v5091
        %5222 = vmatpush.bf16.msra.mxu0 %v5087
        %5223 = vmatmul.bf16.gmra.mxu0 %v3281
        %v5224 = vpop.f32.mrf.mxu0
        %v5225 = vadd.f32 %v4814, %v5224
        %v5226 = vpop.f32.mrf.mxu0
        %5227 = vdwg.mxu0
        %5228 = vmatpush.bf16.msra.mxu0 %v5147
        %5229 = vmatpush.bf16.msra.mxu0 %v5143
        %5230 = vmatpush.bf16.msra.mxu0 %v5139
        %5231 = vmatpush.bf16.msra.mxu0 %v5135
        %5232 = vmatpush.bf16.msra.mxu0 %v5131
        %5233 = vmatpush.bf16.msra.mxu0 %v5127
        %5234 = vmatpush.bf16.msra.mxu0 %v5123
        %5235 = vmatpush.bf16.msra.mxu0 %v5119
        %5236 = vmatmul.bf16.gmra.mxu0 %v3282
        %v5237 = vpop.f32.mrf.mxu0
        %v5238 = vadd.f32 %v5225, %v5237
        %v5239 = vpop.f32.mrf.mxu0
        %5240 = vdwg.mxu0
        %5241 = vmatpush.bf16.msra.mxu0 %v5116
        %5242 = vmatpush.bf16.msra.mxu0 %v5112
        %5243 = vmatpush.bf16.msra.mxu0 %v5108
        %5244 = vmatpush.bf16.msra.mxu0 %v5104
        %5245 = vmatpush.bf16.msra.mxu0 %v5100
        %5246 = vmatpush.bf16.msra.mxu0 %v5096
        %5247 = vmatpush.bf16.msra.mxu0 %v5092
        %5248 = vmatpush.bf16.msra.mxu0 %v5088
        %5249 = vmatmul.bf16.gmra.mxu0 %v3281
        %v5250 = vpop.f32.mrf.mxu0
        %v5251 = vadd.f32 %v4840, %v5250
        %v5252 = vpop.f32.mrf.mxu0
        %5253 = vdwg.mxu0
        %5254 = vmatpush.bf16.msra.mxu0 %v5148
        %5255 = vmatpush.bf16.msra.mxu0 %v5144
        %5256 = vmatpush.bf16.msra.mxu0 %v5140
        %5257 = vmatpush.bf16.msra.mxu0 %v5136
        %5258 = vmatpush.bf16.msra.mxu0 %v5132
        %5259 = vmatpush.bf16.msra.mxu0 %v5128
        %5260 = vmatpush.bf16.msra.mxu0 %v5124
        %5261 = vmatpush.bf16.msra.mxu0 %v5120
        %5262 = vmatmul.bf16.gmra.mxu0 %v3282
        %v5263 = vpop.f32.mrf.mxu0
        %v5264 = vadd.f32 %v5251, %v5263
        %v5265 = vpop.f32.mrf.mxu0
        %5266 = vdwg.mxu0
        %5267 = vmatpush.bf16.msra.mxu0 %v5117
        %5268 = vmatpush.bf16.msra.mxu0 %v5113
        %5269 = vmatpush.bf16.msra.mxu0 %v5109
        %5270 = vmatpush.bf16.msra.mxu0 %v5105
        %5271 = vmatpush.bf16.msra.mxu0 %v5101
        %5272 = vmatpush.bf16.msra.mxu0 %v5097
        %5273 = vmatpush.bf16.msra.mxu0 %v5093
        %5274 = vmatpush.bf16.msra.mxu0 %v5089
        %5275 = vmatmul.bf16.gmra.mxu0 %v3281
        %v5276 = vpop.f32.mrf.mxu0
        %v5277 = vadd.f32 %v4866, %v5276
        %v5278 = vpop.f32.mrf.mxu0
        %5279 = vdwg.mxu0
        %5280 = vmatpush.bf16.msra.mxu0 %v5149
        %5281 = vmatpush.bf16.msra.mxu0 %v5145
        %5282 = vmatpush.bf16.msra.mxu0 %v5141
        %5283 = vmatpush.bf16.msra.mxu0 %v5137
        %5284 = vmatpush.bf16.msra.mxu0 %v5133
        %5285 = vmatpush.bf16.msra.mxu0 %v5129
        %5286 = vmatpush.bf16.msra.mxu0 %v5125
        %5287 = vmatpush.bf16.msra.mxu0 %v5121
        %5288 = vmatmul.bf16.gmra.mxu0 %v3282
        %v5289 = vpop.f32.mrf.mxu0
        %v5290 = vadd.f32 %v5277, %v5289
        %v5291 = vpop.f32.mrf.mxu0
        %5292 = vdwg.mxu0
        %5293 = vmatpush.bf16.msra.mxu0 %v5118
        %5294 = vmatpush.bf16.msra.mxu0 %v5114
        %5295 = vmatpush.bf16.msra.mxu0 %v5110
        %5296 = vmatpush.bf16.msra.mxu0 %v5106
        %5297 = vmatpush.bf16.msra.mxu0 %v5102
        %5298 = vmatpush.bf16.msra.mxu0 %v5098
        %5299 = vmatpush.bf16.msra.mxu0 %v5094
        %5300 = vmatpush.bf16.msra.mxu0 %v5090
        %5301 = vmatmul.bf16.gmra.mxu0 %v3281
        %v5302 = vpop.f32.mrf.mxu0
        %v5303 = vadd.f32 %v4892, %v5302
        %v5304 = vpop.f32.mrf.mxu0
        %5305 = vdwg.mxu0
        %5306 = vmatpush.bf16.msra.mxu0 %v5150
        %5307 = vmatpush.bf16.msra.mxu0 %v5146
        %5308 = vmatpush.bf16.msra.mxu0 %v5142
        %5309 = vmatpush.bf16.msra.mxu0 %v5138
        %5310 = vmatpush.bf16.msra.mxu0 %v5134
        %5311 = vmatpush.bf16.msra.mxu0 %v5130
        %5312 = vmatpush.bf16.msra.mxu0 %v5126
        %5313 = vmatpush.bf16.msra.mxu0 %v5122
        %5314 = vmatmul.bf16.gmra.mxu0 %v3282
        %v5315 = vpop.f32.mrf.mxu0
        %v5316 = vadd.f32 %v5303, %v5315
        %v5317 = vpop.f32.mrf.mxu0
        %5318 = vdwg.mxu0
        %v5319 = vadd.f32 %v5238, %v4327
        %v5320 = vadd.f32 %v5264, %v4328
        %v5321 = vadd.f32 %v5290, %v4329
        %v5322 = vadd.f32 %v5316, %v4330
        %5323 = vst [vmem:[%s648] sm:$0xff] %v5319
        %5324 = vst [vmem:[%s648 + $0x8] sm:$0xff] %v5320
        %5325 = vst [vmem:[%s648 + $0x10] sm:$0xff] %v5321
        %5326 = vst [vmem:[%s648 + $0x18] sm:$0xff] %v5322
        %s5327 = sand.u32 %s311, 1
        %s5328 = scalar_lea.sflag [#allocation4], %s5327
        %s5329 = sand.u32 %s311, 1
        %s5330 = smul.addr %s5329, 32
        %s5331 = scalar_lea.vmem [#allocation18], %s5330
        %s5332 = sand.u32 %s337, 1
        %s5333 = scalar_lea.sflag [#allocation20], %s5332
        %s5334 = sand.u32 %s337, 1
        %s5335 = smul.addr %s5334, 32
        %s5336 = scalar_lea.vmem [#allocation19], %s5335
        // Predicated region
        $region109: #{tpu_custom_call.1} parent=67 // pred_check
          %p5337 = pneg %p321
        $region110: #{tpu_custom_call.1} parent=67 // pred_check_branch
          %5339 = sbr.rel (%p5337) target = $region112
        $region111: #{tpu_custom_call.1} parent=67 // pred_region
          %s5340 = smul.u32 4, %s36
          %5342 = vsyncadd %s5328, 0
          %s5343 = smul.addr %s5340, 8
          %s5344 = scalar_lea.hbm %s12, %s5343
          %s5346 = sshll.u32 %s5331, 4
          %s5347 = int_to_ptr.vmem [resolvable:$true] %s5346
          %s5348 = sshll.u32 %s5344, 4
          %s5349 = int_to_ptr.hbm [resolvable:$true] %s5348
          %5351 = dma.vmem_to_hbm [thread:$0]  %s5347, 512, %s5349, %s5328
        $region112: #{tpu_custom_call.1} parent=67 // pred_fallthru
          _
        // Predicated region
        $region113: #{tpu_custom_call.1} parent=67 // pred_check
          %p5352 = pneg %p347
        $region114: #{tpu_custom_call.1} parent=67 // pred_check_branch
          %5354 = sbr.rel (%p5352) target = $region116
        $region115: #{tpu_custom_call.1} parent=67 // pred_region
          %s5355 = smul.u32 4, %s36
          %5357 = vsyncadd %s5333, 0
          %s5358 = smul.addr %s5355, 8
          %s5359 = scalar_lea.hbm %s13, %s5358
          %s5361 = sshll.u32 %s5336, 4
          %s5362 = int_to_ptr.vmem [resolvable:$true] %s5361
          %s5363 = sshll.u32 %s5359, 4
          %s5364 = int_to_ptr.hbm [resolvable:$true] %s5363
          %5366 = dma.vmem_to_hbm [thread:$0]  %s5362, 512, %s5364, %s5333
        $region116: #{tpu_custom_call.1} parent=67 // pred_fallthru
          _
      $region68: #{tpu_custom_call.1} parent=5 // pred_fallthru
        _
      %p5367 = scmp.le.s32.totalorder 2, %s31
      // Predicated region
      $region117: #{tpu_custom_call.1} parent=5 // pred_check
        %p5368 = pneg %p5367
      $region118: #{tpu_custom_call.1} parent=5 // pred_check_branch
        %5370 = sbr.rel (%p5368) target = $region120
      $region119: #{tpu_custom_call.1} parent=5 // pred_region
        %s5371 = ssub.s32 %s31, 2
        // Predicated region
        $region121: #{tpu_custom_call.1} parent=119 // pred_check
          %p5372 = pneg %p327
        $region122: #{tpu_custom_call.1} parent=119 // pred_check_branch
          %5374 = sbr.rel (%p5372) target = $region124
        $region123: #{tpu_custom_call.1} parent=119 // pred_region
          %s5375 = sand.u32 %s312, 1
          %s5376 = scalar_lea.sflag [#allocation4], %s5375
          %s5377 = sand.u32 %s312, 1
          %s5378 = smul.addr %s5377, 32
          %s5379 = scalar_lea.vmem [#allocation18], %s5378
          %5381 = dma.done %s5376, 512
        $region124: #{tpu_custom_call.1} parent=119 // pred_fallthru
          _
        // Predicated region
        $region125: #{tpu_custom_call.1} parent=119 // pred_check
          %p5382 = pneg %p353
        $region126: #{tpu_custom_call.1} parent=119 // pred_check_branch
          %5384 = sbr.rel (%p5382) target = $region128
        $region127: #{tpu_custom_call.1} parent=119 // pred_region
          %s5385 = sand.u32 %s338, 1
          %s5386 = scalar_lea.sflag [#allocation20], %s5385
          %s5387 = sand.u32 %s338, 1
          %s5388 = smul.addr %s5387, 32
          %s5389 = scalar_lea.vmem [#allocation19], %s5388
          %5391 = dma.done %s5386, 512
        $region128: #{tpu_custom_call.1} parent=119 // pred_fallthru
          _
      $region120: #{tpu_custom_call.1} parent=5 // pred_fallthru
        _
    $region6: #{tpu_custom_call.1} parent=1 // loop_footer
      %s35 = sadd.s32 1, %s31
    $region7: #{tpu_custom_call.1} parent=1 // loop_footer_branch
      %30 = sbr.rel target = $region3
    $region8: #{tpu_custom_call.1} parent=1 // loop_exit
      _
    %5392 = vsyncpa [#allocation3], 1
    %s5393 = scalar_lea.sflag [#allocation3], 1
    %5394 = vsyncpa %s5393, 1
    %5395 = vsyncpa [#allocation6], 1
    %5396 = vsyncpa [#allocation9], 1
    %5397 = vsyncpa [#allocation12], 1
    %5398 = vsyncpa [#allocation15], 1
    %5399 = vsyncpa [#allocation4], 1
    %s5400 = scalar_lea.sflag [#allocation4], 1
    %5401 = vsyncpa %s5400, 1
    %5402 = vsyncpa [#allocation20], 1
    %s5403 = scalar_lea.sflag [#allocation20], 1
    %5404 = vsyncpa %s5403, 1

</llo_original>
